<compile_context>
chip_gen: v7x
topology: tpu7x:2x2x1
jax: 0.10.0
libtpu: 0.0.40
codegen_flags: <defaults>
</compile_context>

<pallas_src>
import functools

import jax
import jax.numpy as jnp
import numpy as np
from jax.experimental import pallas as pl
from jax.experimental.pallas import tpu as pltpu

BN_EPS = 1e-5
_LAYER_CFG = [(4, 1, 0), (4, 2, 1), (4, 2, 1), (4, 2, 1)]  # (k, stride, pad)


# ----------------------------------------------------------------------------
# One-time parameter / constant preparation (host side, outside the forward).
# ----------------------------------------------------------------------------
def _banded_subpixel_matrices(w, win):
    """ConvTranspose2d(Cin,Cout,4,stride=2,pad=1) weight (Cin,Cout,4,4) ->
    4 banded GEMM matrices M[j] of shape (win*Cin, 2*win*Cout) such that with
    T_j = X @ M[j] (rows = height, lanes = (x, channel)):
        out[2q]   = T0[q-1] + T1[q]        (T0[-1] = 0)
        out[2q+1] = T2[q]   + T3[q+1]      (T3[H]  = 0)
    The x-direction taps, x zero-padding and output-column interleave are all
    folded into M."""
    cin, cout = w.shape[0], w.shape[1]
    wout = 2 * win
    m = np.zeros((4, win * cin, wout * cout), np.float32)
    for ry in range(2):
        for dy in range(2):
            ky = 3 - ry - 2 * dy
            for xo in range(wout):
                rx, p = xo % 2, xo // 2
                for dx in range(2):
                    ix = p + rx + dx - 1
                    if 0 <= ix < win:
                        kx = 3 - rx - 2 * dx
                        m[2 * ry + dy,
                          ix * cin:(ix + 1) * cin,
                          xo * cout:(xo + 1) * cout] = w[:, :, ky, kx]
    return m


def _upconv_row_mats(batch, hin):
    """4 placement matrices P_j, shape (batch*2*hin, batch*hin), block-diagonal
    over samples, so that out = sum_j P_j @ T_j realises the y-shift, the
    per-sample zero padding and the even/odd row interleave."""
    hout = 2 * hin
    p = np.zeros((4, batch * hout, batch * hin), np.float32)
    for b in range(batch):
        ro, co = b * hout, b * hin
        for q in range(hin):
            if q >= 1:
                p[0, ro + 2 * q, co + q - 1] = 1.0
            p[1, ro + 2 * q, co + q] = 1.0
            p[2, ro + 2 * q + 1, co + q] = 1.0
            if q + 1 < hin:
                p[3, ro + 2 * q + 1, co + q + 1] = 1.0
    return p


def _layer1_row_mats(batch):
    """4 placement matrices P_ky, shape (batch*4, batch): row b*4+ky of the
    layer-1 output takes the ky-th lane block of sample b's GEMM row."""
    p = np.zeros((4, batch * 4, batch), np.float32)
    for b in range(batch):
        for ky in range(4):
            p[ky, b * 4 + ky, b] = 1.0
    return p


def prepare_params(params, nz=16, ngf=8, nc=1, batch=2):
    """Hoisted re-layout of the PyTorch-style params (once per checkpoint /
    batch size).  The row-placement matrices are batch-shaped."""
    assert nc == 1, "final-layer folding assumes nc == 1"
    c1, c2, c3, c4 = ngf * 8, ngf * 4, ngf * 2, ngf
    chans = (c1, c2, c3, c4)
    convs = [np.asarray(w, np.float32) for w in params["convs"]]

    # Layer 1 (4x4, stride 1, pad 0 on a 1x1 input) == plain GEMM; lane order
    # of the output row is (ky, kx, co).
    w1m = np.transpose(convs[0], (0, 2, 3, 1)).reshape(nz, 16 * c1)

    # Layers 2-4: 4 banded sub-pixel tap matrices hstacked into one RHS.
    mcats = []
    for i, win in enumerate((4, 8, 16)):
        m = _banded_subpixel_matrices(convs[i + 1], win)
        mcats.append(np.concatenate(list(m), axis=1))     # (win*Cin, 4*2win*Cout)

    # Row placement (shift + interleave + per-sample pad) matrices.
    p1 = _layer1_row_mats(batch)
    prow = [_upconv_row_mats(batch, h) for h in (4, 8, 16)]

    # BatchNorm lane->channel selector and channel->lane broadcast matrices,
    # plus stacked (gamma; beta).
    sels, selts, gbs = [], [], []
    for w_sp, ch, g, b in zip((4, 8, 16, 32), chans,
                              params["gammas"], params["betas"]):
        s = np.zeros((w_sp * ch, ch), np.float32)
        s[np.arange(w_sp * ch), np.arange(w_sp * ch) % ch] = 1.0
        sels.append(s)
        selts.append(np.ascontiguousarray(s.T))
        gbs.append(np.stack([np.asarray(g, np.float32),
                             np.asarray(b, np.float32)], axis=0))  # (2, C)

    # Final ConvTranspose2d(ngf, 1, 1, 1, pad=2): x-crop + 1x1 conv folded into
    # a lane-dense (32*c4, 128) matrix (cols 28..127 are zero padding).
    w5 = convs[4][:, 0, 0, 0]                             # (c4,)
    w5pad = np.zeros((32 * c4, 128), np.float32)
    for x in range(2, 30):
        w5pad[x * c4:(x + 1) * c4, x - 2] = w5

    bf = jnp.bfloat16
    return {
        "w1m": jnp.asarray(w1m, bf),
        "mcat": [jnp.asarray(m, bf) for m in mcats],
        "p1": jnp.asarray(p1, bf),
        "prow": [jnp.asarray(p, bf) for p in prow],
        "sel": [jnp.asarray(s) for s in sels],     # f32: keeps BN stats in f32
        "selt": [jnp.asarray(t) for t in selts],   # f32: keeps BN affine in f32
        "gb": [jnp.asarray(g) for g in gbs],
        "w5pad": jnp.asarray(w5pad, bf),
    }


# ----------------------------------------------------------------------------
# The fused Pallas kernel (whole generator forward, VMEM resident, batched).
# ----------------------------------------------------------------------------
def _generator_kernel(z_ref, w1m_ref, m2_ref, m3_ref, m4_ref,
                      p1_ref, p2_ref, p3_ref, p4_ref,
                      s1_ref, s2_ref, s3_ref, s4_ref,
                      t1_ref, t2_ref, t3_ref, t4_ref,
                      gb1_ref, gb2_ref, gb3_ref, gb4_ref,
                      w5_ref, out_ref, *, batch):
    f32 = jnp.float32
    bf16 = jnp.bfloat16

    def row_place(t, p_ref):
        # out = sum_j P_j @ T_j where T_j are the 4 equal lane blocks of t.
        # One bf16 cast, lane slices at multiples of 128, 4 small bf16 GEMMs.
        tb = t.astype(bf16)
        n = tb.shape[1] // 4
        acc = jnp.dot(p_ref[0], tb[:, :n], preferred_element_type=f32)
        for j in range(1, 4):
            acc = acc + jnp.dot(p_ref[j], tb[:, j * n:(j + 1) * n],
                                preferred_element_type=f32)
        return acc

    def bn_relu(x, s_ref, t_ref, gb_ref, spatial):
        # Training-mode BatchNorm2d (biased batch stats over N,H,W) + ReLU.
        inv_count = 1.0 / float(batch * spatial * spatial)
        cs = jnp.sum(x, axis=0, keepdims=True)                    # (1, W*C)
        cq = jnp.sum(x * x, axis=0, keepdims=True)
        stc = jnp.dot(jnp.concatenate([cs, cq], axis=0), s_ref[...],
                      preferred_element_type=f32) * inv_count     # (2, C)
        mean = stc[0:1]
        var = jnp.maximum(stc[1:2] - mean * mean, 0.0)            # clamp -> no NaN
        gb = gb_ref[...]                                          # (2, C)
        scale_c = gb[0:1] * jax.lax.rsqrt(var + BN_EPS)
        shift_c = gb[1:2] - mean * scale_c
        ssl = jnp.dot(jnp.concatenate([scale_c, shift_c], axis=0), t_ref[...],
                      preferred_element_type=f32)                 # (2, W*C)
        return jnp.maximum(x * ssl[0:1] + ssl[1:2], 0.0)

    # ---- Layer 1: ConvTranspose2d(nz, 8*ngf, 4, 1, 0) on a 1x1 input -------
    y1 = jnp.dot(z_ref[...].astype(bf16), w1m_ref[...],
                 preferred_element_type=f32)                      # (B, 16*c1)
    x = bn_relu(row_place(y1, p1_ref), s1_ref, t1_ref, gb1_ref, 4)

    # ---- Layers 2-4: ConvTranspose2d(., ., 4, 2, 1) + BN + ReLU ------------
    for m_ref, p_ref, s_ref, t_ref, gb_ref, sp in (
            (m2_ref, p2_ref, s2_ref, t2_ref, gb2_ref, 8),
            (m3_ref, p3_ref, s3_ref, t3_ref, gb3_ref, 16),
            (m4_ref, p4_ref, s4_ref, t4_ref, gb4_ref, 32)):
        t = jnp.dot(x.astype(bf16), m_ref[...],
                    preferred_element_type=f32)                   # (B*H, 4*N)
        x = bn_relu(row_place(t, p_ref), s_ref, t_ref, gb_ref, sp)

    # ---- Final ConvTranspose2d(ngf, 1, 1, 1, pad=2) + Tanh ------------------
    # x-crop folded into w5_ref; lane-dense (B*32, 128) slab, single store.
    y5 = jnp.dot(x.astype(bf16), w5_ref[...], preferred_element_type=f32)
    out_ref[...] = jnp.tanh(y5)


def _fused_forward(prep, z2):
    batch = z2.shape[0]
    inputs = [z2, prep["w1m"],
              prep["mcat"][0], prep["mcat"][1], prep["mcat"][2],
              prep["p1"], prep["prow"][0], prep["prow"][1], prep["prow"][2],
              prep["sel"][0], prep["sel"][1], prep["sel"][2], prep["sel"][3],
              prep["selt"][0], prep["selt"][1], prep["selt"][2], prep["selt"][3],
              prep["gb"][0], prep["gb"][1], prep["gb"][2], prep["gb"][3],
              prep["w5pad"]]
    return pl.pallas_call(
        functools.partial(_generator_kernel, batch=batch),
        out_shape=jax.ShapeDtypeStruct((batch * 32, 128), jnp.float32),
        in_specs=[pl.BlockSpec(memory_space=pltpu.MemorySpace.VMEM)
                  for _ in inputs],
        out_specs=pl.BlockSpec(memory_space=pltpu.MemorySpace.VMEM),
    )(*inputs)


def generator_forward(prep, z_nchw):
    n = z_nchw.shape[0]
    z2 = z_nchw.reshape(n, -1).astype(jnp.float32)                # (N, nz)
    slab = _fused_forward(prep, z2)                               # (N*32, 128)
    img = slab.reshape(n, 32, 128)[:, 2:30, :28]                  # row/lane crop
    return img[:, None, :, :]                                     # NCHW (nc=1)


# ----------------------------------------------------------------------------
# Parameter init (matches the PyTorch module structure; nc=1, small nz/ngf).
# ----------------------------------------------------------------------------
def init_generator_params(key, nc=1, nz=16, ngf=8):
    chans = [nz, ngf * 8, ngf * 4, ngf * 2, ngf, nc]
    conv_shapes = [
        (chans[0], chans[1], 4, 4),
        (chans[1], chans[2], 4, 4),
        (chans[2], chans[3], 4, 4),
        (chans[3], chans[4], 4, 4),
        (chans[4], chans[5], 1, 1),
    ]
    params = {"convs": [], "gammas": [], "betas": []}
    keys = jax.random.split(key, 16)
    ki = 0
    for shp in conv_shapes:
        params["convs"].append(
            0.02 * jax.random.normal(keys[ki], shp, jnp.float32))
        ki += 1
    for c in chans[1:5]:  # four BatchNorm layers
        params["gammas"].append(
            1.0 + 0.02 * jax.random.normal(keys[ki], (c,), jnp.float32))
        ki += 1
        params["betas"].append(
            0.01 * jax.random.normal(keys[ki], (c,), jnp.float32))
        ki += 1
    return params


# ----------------------------------------------------------------------------
# Pure-JAX reference (lax.conv_general_dilated, f32 HIGHEST) for sanity check.
# ----------------------------------------------------------------------------
def _reference_forward(params, z_nchw):
    hi = jax.lax.Precision.HIGHEST
    x = z_nchw.astype(jnp.float32)
    for i, (k, s, p) in enumerate(_LAYER_CFG):
        w = params["convs"][i]                                    # (Ci,Co,K,K)
        w_conv = jnp.transpose(w[:, :, ::-1, ::-1], (1, 0, 2, 3))  # OIHW
        x = jax.lax.conv_general_dilated(
            x, w_conv, window_strides=(1, 1),
            padding=[(k - 1 - p, k - 1 - p)] * 2,
            lhs_dilation=(s, s),
            dimension_numbers=("NCHW", "OIHW", "NCHW"), precision=hi)
        mean = x.mean(axis=(0, 2, 3), keepdims=True)
        var = ((x - mean) ** 2).mean(axis=(0, 2, 3), keepdims=True)
        x = (x - mean) / jnp.sqrt(var + BN_EPS)
        x = x * params["gammas"][i].reshape(1, -1, 1, 1) \
              + params["betas"][i].reshape(1, -1, 1, 1)
        x = jnp.maximum(x, 0.0)
    w_conv = jnp.transpose(params["convs"][4], (1, 0, 2, 3))      # (nc,ngf,1,1)
    x = jax.lax.conv_general_dilated(
        x, w_conv, window_strides=(1, 1), padding=[(-2, -2), (-2, -2)],
        dimension_numbers=("NCHW", "OIHW", "NCHW"), precision=hi)
    return jnp.tanh(x)


# ----------------------------------------------------------------------------
if __name__ == "__main__":
    # Small config consistent with the module: nz=16, ngf=8, nc=1, batch=2.
    NC, NZ, NGF, BATCH = 1, 16, 8, 2

    key = jax.random.PRNGKey(0)
    pkey, zkey = jax.random.split(key)
    params = init_generator_params(pkey, nc=NC, nz=NZ, ngf=NGF)
    prep = prepare_params(params, nz=NZ, ngf=NGF, nc=NC, batch=BATCH)
    z = jax.random.normal(zkey, (BATCH, NZ, 1, 1), jnp.float32)

    fwd = jax.jit(generator_forward)
    out = jax.block_until_ready(fwd(prep, z))
    assert out.shape == (BATCH, NC, 28, 28), out.shape

    ref = jax.block_until_ready(_reference_forward(params, z))
    # bf16 MXU operands vs the all-f32 reference -> small (<=1e-2-ish) diffs.
    np.testing.assert_allclose(np.asarray(out), np.asarray(ref),
                               atol=2e-2, rtol=2e-2)
    print("KERNEL_OK")
</pallas_src>

<mosaic_0001>
module attributes {stable_mosaic.version = 11 : i64} {
  func.func @_generator_kernel(%arg0: memref<2x16xf32, #tpu.memory_space<vmem>>, %arg1: memref<16x1024xbf16, #tpu.memory_space<vmem>>, %arg2: memref<256x1024xbf16, #tpu.memory_space<vmem>>, %arg3: memref<256x1024xbf16, #tpu.memory_space<vmem>>, %arg4: memref<256x1024xbf16, #tpu.memory_space<vmem>>, %arg5: memref<4x8x2xbf16, #tpu.memory_space<vmem>>, %arg6: memref<4x16x8xbf16, #tpu.memory_space<vmem>>, %arg7: memref<4x32x16xbf16, #tpu.memory_space<vmem>>, %arg8: memref<4x64x32xbf16, #tpu.memory_space<vmem>>, %arg9: memref<256x64xf32, #tpu.memory_space<vmem>>, %arg10: memref<256x32xf32, #tpu.memory_space<vmem>>, %arg11: memref<256x16xf32, #tpu.memory_space<vmem>>, %arg12: memref<256x8xf32, #tpu.memory_space<vmem>>, %arg13: memref<64x256xf32, #tpu.memory_space<vmem>>, %arg14: memref<32x256xf32, #tpu.memory_space<vmem>>, %arg15: memref<16x256xf32, #tpu.memory_space<vmem>>, %arg16: memref<8x256xf32, #tpu.memory_space<vmem>>, %arg17: memref<2x64xf32, #tpu.memory_space<vmem>>, %arg18: memref<2x32xf32, #tpu.memory_space<vmem>>, %arg19: memref<2x16xf32, #tpu.memory_space<vmem>>, %arg20: memref<2x8xf32, #tpu.memory_space<vmem>>, %arg21: memref<256x128xbf16, #tpu.memory_space<vmem>>, %arg22: memref<64x128xf32, #tpu.memory_space<vmem>>) attributes {dimension_semantics = [], scalar_prefetch = 0 : i64, scratch_operands = 0 : i64, tpu.core_type = #tpu.core_type<tc>} {
    %c0 = arith.constant 0 : index
    %c0_0 = arith.constant 0 : index
    %0 = vector.load %arg0[%c0, %c0_0] : memref<2x16xf32, #tpu.memory_space<vmem>>, vector<2x16xf32>
    %1 = arith.truncf %0 : vector<2x16xf32> to vector<2x16xbf16>
    %c0_1 = arith.constant 0 : index
    %c0_2 = arith.constant 0 : index
    %2 = vector.load %arg1[%c0_1, %c0_2] : memref<16x1024xbf16, #tpu.memory_space<vmem>>, vector<16x1024xbf16>
    %cst = arith.constant dense<0.000000e+00> : vector<2x1024xf32>
    %3 = tpu.matmul %1, %2, %cst {dimension_numbers = #tpu.dot_dimension_numbers<[1], [0], [0], [1], [0, 0, 1, 1], [], []>} : vector<2x16xbf16>, vector<16x1024xbf16>, vector<2x1024xf32> -> vector<2x1024xf32>
    %4 = arith.truncf %3 : vector<2x1024xf32> to vector<2x1024xbf16>
    %c0_3 = arith.constant 0 : index
    %c0_4 = arith.constant 0 : index
    %c0_5 = arith.constant 0 : index
    %5 = vector.load %arg5[%c0_3, %c0_4, %c0_5] : memref<4x8x2xbf16, #tpu.memory_space<vmem>>, vector<1x8x2xbf16>
    %6 = vector.shape_cast %5 : vector<1x8x2xbf16> to vector<8x2xbf16>
    %7 = vector.extract_strided_slice %4 {offsets = [0, 0], sizes = [2, 256], strides = [1, 1]} : vector<2x1024xbf16> to vector<2x256xbf16>
    %cst_6 = arith.constant dense<0.000000e+00> : vector<8x256xf32>
    %8 = tpu.matmul %6, %7, %cst_6 {dimension_numbers = #tpu.dot_dimension_numbers<[1], [0], [0], [1], [0, 0, 1, 1], [], []>} : vector<8x2xbf16>, vector<2x256xbf16>, vector<8x256xf32> -> vector<8x256xf32>
    %c1 = arith.constant 1 : index
    %c0_7 = arith.constant 0 : index
    %c0_8 = arith.constant 0 : index
    %9 = vector.load %arg5[%c1, %c0_7, %c0_8] : memref<4x8x2xbf16, #tpu.memory_space<vmem>>, vector<1x8x2xbf16>
    %10 = vector.shape_cast %9 : vector<1x8x2xbf16> to vector<8x2xbf16>
    %11 = vector.extract_strided_slice %4 {offsets = [0, 256], sizes = [2, 256], strides = [1, 1]} : vector<2x1024xbf16> to vector<2x256xbf16>
    %cst_9 = arith.constant dense<0.000000e+00> : vector<8x256xf32>
    %12 = tpu.matmul %10, %11, %cst_9 {dimension_numbers = #tpu.dot_dimension_numbers<[1], [0], [0], [1], [0, 0, 1, 1], [], []>} : vector<8x2xbf16>, vector<2x256xbf16>, vector<8x256xf32> -> vector<8x256xf32>
    %13 = arith.addf %8, %12 : vector<8x256xf32>
    %c2 = arith.constant 2 : index
    %c0_10 = arith.constant 0 : index
    %c0_11 = arith.constant 0 : index
    %14 = vector.load %arg5[%c2, %c0_10, %c0_11] : memref<4x8x2xbf16, #tpu.memory_space<vmem>>, vector<1x8x2xbf16>
    %15 = vector.shape_cast %14 : vector<1x8x2xbf16> to vector<8x2xbf16>
    %16 = vector.extract_strided_slice %4 {offsets = [0, 512], sizes = [2, 256], strides = [1, 1]} : vector<2x1024xbf16> to vector<2x256xbf16>
    %cst_12 = arith.constant dense<0.000000e+00> : vector<8x256xf32>
    %17 = tpu.matmul %15, %16, %cst_12 {dimension_numbers = #tpu.dot_dimension_numbers<[1], [0], [0], [1], [0, 0, 1, 1], [], []>} : vector<8x2xbf16>, vector<2x256xbf16>, vector<8x256xf32> -> vector<8x256xf32>
    %18 = arith.addf %13, %17 : vector<8x256xf32>
    %c3 = arith.constant 3 : index
    %c0_13 = arith.constant 0 : index
    %c0_14 = arith.constant 0 : index
    %19 = vector.load %arg5[%c3, %c0_13, %c0_14] : memref<4x8x2xbf16, #tpu.memory_space<vmem>>, vector<1x8x2xbf16>
    %20 = vector.shape_cast %19 : vector<1x8x2xbf16> to vector<8x2xbf16>
    %21 = vector.extract_strided_slice %4 {offsets = [0, 768], sizes = [2, 256], strides = [1, 1]} : vector<2x1024xbf16> to vector<2x256xbf16>
    %cst_15 = arith.constant dense<0.000000e+00> : vector<8x256xf32>
    %22 = tpu.matmul %20, %21, %cst_15 {dimension_numbers = #tpu.dot_dimension_numbers<[1], [0], [0], [1], [0, 0, 1, 1], [], []>} : vector<8x2xbf16>, vector<2x256xbf16>, vector<8x256xf32> -> vector<8x256xf32>
    %23 = arith.addf %18, %22 : vector<8x256xf32>
    %cst_16 = arith.constant dense<0.000000e+00> : vector<256xf32>
    %24 = vector.multi_reduction <add>, %23, %cst_16 [0] : vector<8x256xf32> to vector<256xf32>
    %25 = vector.shape_cast %24 : vector<256xf32> to vector<1x256xf32>
    %26 = arith.mulf %23, %23 : vector<8x256xf32>
    %cst_17 = arith.constant dense<0.000000e+00> : vector<256xf32>
    %27 = vector.multi_reduction <add>, %26, %cst_17 [0] : vector<8x256xf32> to vector<256xf32>
    %28 = vector.shape_cast %27 : vector<256xf32> to vector<1x256xf32>
    %29 = tpu.concatenate %25, %28 in 0 : vector<1x256xf32>, vector<1x256xf32> -> vector<2x256xf32>
    %c0_18 = arith.constant 0 : index
    %c0_19 = arith.constant 0 : index
    %30 = vector.load %arg9[%c0_18, %c0_19] : memref<256x64xf32, #tpu.memory_space<vmem>>, vector<256x64xf32>
    %cst_20 = arith.constant dense<0.000000e+00> : vector<2x64xf32>
    %31 = tpu.matmul %29, %30, %cst_20 {dimension_numbers = #tpu.dot_dimension_numbers<[1], [0], [0], [1], [0, 0, 1, 1], [], []>} : vector<2x256xf32>, vector<256x64xf32>, vector<2x64xf32> -> vector<2x64xf32>
    %cst_21 = arith.constant 3.125000e-02 : f32
    %32 = vector.broadcast %cst_21 : f32 to vector<2x64xf32>
    %33 = arith.mulf %31, %32 : vector<2x64xf32>
    %34 = vector.extract_strided_slice %33 {offsets = [0, 0], sizes = [1, 64], strides = [1, 1]} : vector<2x64xf32> to vector<1x64xf32>
    %35 = vector.extract_strided_slice %33 {offsets = [1, 0], sizes = [1, 64], strides = [1, 1]} : vector<2x64xf32> to vector<1x64xf32>
    %36 = arith.mulf %34, %34 : vector<1x64xf32>
    %37 = arith.subf %35, %36 : vector<1x64xf32>
    %cst_22 = arith.constant 0.000000e+00 : f32
    %38 = vector.broadcast %cst_22 : f32 to vector<1x64xf32>
    %39 = arith.maximumf %37, %38 : vector<1x64xf32>
    %c0_23 = arith.constant 0 : index
    %c0_24 = arith.constant 0 : index
    %40 = vector.load %arg17[%c0_23, %c0_24] : memref<2x64xf32, #tpu.memory_space<vmem>>, vector<2x64xf32>
    %41 = vector.extract_strided_slice %40 {offsets = [0, 0], sizes = [1, 64], strides = [1, 1]} : vector<2x64xf32> to vector<1x64xf32>
    %cst_25 = arith.constant 9.99999974E-6 : f32
    %42 = vector.broadcast %cst_25 : f32 to vector<1x64xf32>
    %43 = arith.addf %39, %42 : vector<1x64xf32>
    %44 = math.rsqrt %43 : vector<1x64xf32>
    %45 = arith.mulf %41, %44 : vector<1x64xf32>
    %46 = vector.extract_strided_slice %40 {offsets = [1, 0], sizes = [1, 64], strides = [1, 1]} : vector<2x64xf32> to vector<1x64xf32>
    %47 = arith.mulf %34, %45 : vector<1x64xf32>
    %48 = arith.subf %46, %47 : vector<1x64xf32>
    %49 = tpu.concatenate %45, %48 in 0 : vector<1x64xf32>, vector<1x64xf32> -> vector<2x64xf32>
    %c0_26 = arith.constant 0 : index
    %c0_27 = arith.constant 0 : index
    %50 = vector.load %arg13[%c0_26, %c0_27] : memref<64x256xf32, #tpu.memory_space<vmem>>, vector<64x256xf32>
    %cst_28 = arith.constant dense<0.000000e+00> : vector<2x256xf32>
    %51 = tpu.matmul %49, %50, %cst_28 {dimension_numbers = #tpu.dot_dimension_numbers<[1], [0], [0], [1], [0, 0, 1, 1], [], []>} : vector<2x64xf32>, vector<64x256xf32>, vector<2x256xf32> -> vector<2x256xf32>
    %52 = vector.extract_strided_slice %51 {offsets = [0, 0], sizes = [1, 256], strides = [1, 1]} : vector<2x256xf32> to vector<1x256xf32>
    %53 = vector.broadcast %52 : vector<1x256xf32> to vector<8x256xf32>
    %54 = arith.mulf %23, %53 : vector<8x256xf32>
    %55 = vector.extract_strided_slice %51 {offsets = [1, 0], sizes = [1, 256], strides = [1, 1]} : vector<2x256xf32> to vector<1x256xf32>
    %56 = vector.broadcast %55 : vector<1x256xf32> to vector<8x256xf32>
    %57 = arith.addf %54, %56 : vector<8x256xf32>
    %cst_29 = arith.constant 0.000000e+00 : f32
    %58 = vector.broadcast %cst_29 : f32 to vector<8x256xf32>
    %59 = arith.maximumf %57, %58 : vector<8x256xf32>
    %60 = arith.truncf %59 : vector<8x256xf32> to vector<8x256xbf16>
    %c0_30 = arith.constant 0 : index
    %c0_31 = arith.constant 0 : index
    %61 = vector.load %arg2[%c0_30, %c0_31] : memref<256x1024xbf16, #tpu.memory_space<vmem>>, vector<256x1024xbf16>
    %cst_32 = arith.constant dense<0.000000e+00> : vector<8x1024xf32>
    %62 = tpu.matmul %60, %61, %cst_32 {dimension_numbers = #tpu.dot_dimension_numbers<[1], [0], [0], [1], [0, 0, 1, 1], [], []>} : vector<8x256xbf16>, vector<256x1024xbf16>, vector<8x1024xf32> -> vector<8x1024xf32>
    %63 = arith.truncf %62 : vector<8x1024xf32> to vector<8x1024xbf16>
    %c0_33 = arith.constant 0 : index
    %c0_34 = arith.constant 0 : index
    %c0_35 = arith.constant 0 : index
    %64 = vector.load %arg6[%c0_33, %c0_34, %c0_35] : memref<4x16x8xbf16, #tpu.memory_space<vmem>>, vector<1x16x8xbf16>
    %65 = vector.shape_cast %64 : vector<1x16x8xbf16> to vector<16x8xbf16>
    %66 = vector.extract_strided_slice %63 {offsets = [0, 0], sizes = [8, 256], strides = [1, 1]} : vector<8x1024xbf16> to vector<8x256xbf16>
    %cst_36 = arith.constant dense<0.000000e+00> : vector<16x256xf32>
    %67 = tpu.matmul %65, %66, %cst_36 {dimension_numbers = #tpu.dot_dimension_numbers<[1], [0], [0], [1], [0, 0, 1, 1], [], []>} : vector<16x8xbf16>, vector<8x256xbf16>, vector<16x256xf32> -> vector<16x256xf32>
    %c1_37 = arith.constant 1 : index
    %c0_38 = arith.constant 0 : index
    %c0_39 = arith.constant 0 : index
    %68 = vector.load %arg6[%c1_37, %c0_38, %c0_39] : memref<4x16x8xbf16, #tpu.memory_space<vmem>>, vector<1x16x8xbf16>
    %69 = vector.shape_cast %68 : vector<1x16x8xbf16> to vector<16x8xbf16>
    %70 = vector.extract_strided_slice %63 {offsets = [0, 256], sizes = [8, 256], strides = [1, 1]} : vector<8x1024xbf16> to vector<8x256xbf16>
    %cst_40 = arith.constant dense<0.000000e+00> : vector<16x256xf32>
    %71 = tpu.matmul %69, %70, %cst_40 {dimension_numbers = #tpu.dot_dimension_numbers<[1], [0], [0], [1], [0, 0, 1, 1], [], []>} : vector<16x8xbf16>, vector<8x256xbf16>, vector<16x256xf32> -> vector<16x256xf32>
    %72 = arith.addf %67, %71 : vector<16x256xf32>
    %c2_41 = arith.constant 2 : index
    %c0_42 = arith.constant 0 : index
    %c0_43 = arith.constant 0 : index
    %73 = vector.load %arg6[%c2_41, %c0_42, %c0_43] : memref<4x16x8xbf16, #tpu.memory_space<vmem>>, vector<1x16x8xbf16>
    %74 = vector.shape_cast %73 : vector<1x16x8xbf16> to vector<16x8xbf16>
    %75 = vector.extract_strided_slice %63 {offsets = [0, 512], sizes = [8, 256], strides = [1, 1]} : vector<8x1024xbf16> to vector<8x256xbf16>
    %cst_44 = arith.constant dense<0.000000e+00> : vector<16x256xf32>
    %76 = tpu.matmul %74, %75, %cst_44 {dimension_numbers = #tpu.dot_dimension_numbers<[1], [0], [0], [1], [0, 0, 1, 1], [], []>} : vector<16x8xbf16>, vector<8x256xbf16>, vector<16x256xf32> -> vector<16x256xf32>
    %77 = arith.addf %72, %76 : vector<16x256xf32>
    %c3_45 = arith.constant 3 : index
    %c0_46 = arith.constant 0 : index
    %c0_47 = arith.constant 0 : index
    %78 = vector.load %arg6[%c3_45, %c0_46, %c0_47] : memref<4x16x8xbf16, #tpu.memory_space<vmem>>, vector<1x16x8xbf16>
    %79 = vector.shape_cast %78 : vector<1x16x8xbf16> to vector<16x8xbf16>
    %80 = vector.extract_strided_slice %63 {offsets = [0, 768], sizes = [8, 256], strides = [1, 1]} : vector<8x1024xbf16> to vector<8x256xbf16>
    %cst_48 = arith.constant dense<0.000000e+00> : vector<16x256xf32>
    %81 = tpu.matmul %79, %80, %cst_48 {dimension_numbers = #tpu.dot_dimension_numbers<[1], [0], [0], [1], [0, 0, 1, 1], [], []>} : vector<16x8xbf16>, vector<8x256xbf16>, vector<16x256xf32> -> vector<16x256xf32>
    %82 = arith.addf %77, %81 : vector<16x256xf32>
    %cst_49 = arith.constant dense<0.000000e+00> : vector<256xf32>
    %83 = vector.multi_reduction <add>, %82, %cst_49 [0] : vector<16x256xf32> to vector<256xf32>
    %84 = vector.shape_cast %83 : vector<256xf32> to vector<1x256xf32>
    %85 = arith.mulf %82, %82 : vector<16x256xf32>
    %cst_50 = arith.constant dense<0.000000e+00> : vector<256xf32>
    %86 = vector.multi_reduction <add>, %85, %cst_50 [0] : vector<16x256xf32> to vector<256xf32>
    %87 = vector.shape_cast %86 : vector<256xf32> to vector<1x256xf32>
    %88 = tpu.concatenate %84, %87 in 0 : vector<1x256xf32>, vector<1x256xf32> -> vector<2x256xf32>
    %c0_51 = arith.constant 0 : index
    %c0_52 = arith.constant 0 : index
    %89 = vector.load %arg10[%c0_51, %c0_52] : memref<256x32xf32, #tpu.memory_space<vmem>>, vector<256x32xf32>
    %cst_53 = arith.constant dense<0.000000e+00> : vector<2x32xf32>
    %90 = tpu.matmul %88, %89, %cst_53 {dimension_numbers = #tpu.dot_dimension_numbers<[1], [0], [0], [1], [0, 0, 1, 1], [], []>} : vector<2x256xf32>, vector<256x32xf32>, vector<2x32xf32> -> vector<2x32xf32>
    %cst_54 = arith.constant 7.812500e-03 : f32
    %91 = vector.broadcast %cst_54 : f32 to vector<2x32xf32>
    %92 = arith.mulf %90, %91 : vector<2x32xf32>
    %93 = vector.extract_strided_slice %92 {offsets = [0, 0], sizes = [1, 32], strides = [1, 1]} : vector<2x32xf32> to vector<1x32xf32>
    %94 = vector.extract_strided_slice %92 {offsets = [1, 0], sizes = [1, 32], strides = [1, 1]} : vector<2x32xf32> to vector<1x32xf32>
    %95 = arith.mulf %93, %93 : vector<1x32xf32>
    %96 = arith.subf %94, %95 : vector<1x32xf32>
    %cst_55 = arith.constant 0.000000e+00 : f32
    %97 = vector.broadcast %cst_55 : f32 to vector<1x32xf32>
    %98 = arith.maximumf %96, %97 : vector<1x32xf32>
    %c0_56 = arith.constant 0 : index
    %c0_57 = arith.constant 0 : index
    %99 = vector.load %arg18[%c0_56, %c0_57] : memref<2x32xf32, #tpu.memory_space<vmem>>, vector<2x32xf32>
    %100 = vector.extract_strided_slice %99 {offsets = [0, 0], sizes = [1, 32], strides = [1, 1]} : vector<2x32xf32> to vector<1x32xf32>
    %cst_58 = arith.constant 9.99999974E-6 : f32
    %101 = vector.broadcast %cst_58 : f32 to vector<1x32xf32>
    %102 = arith.addf %98, %101 : vector<1x32xf32>
    %103 = math.rsqrt %102 : vector<1x32xf32>
    %104 = arith.mulf %100, %103 : vector<1x32xf32>
    %105 = vector.extract_strided_slice %99 {offsets = [1, 0], sizes = [1, 32], strides = [1, 1]} : vector<2x32xf32> to vector<1x32xf32>
    %106 = arith.mulf %93, %104 : vector<1x32xf32>
    %107 = arith.subf %105, %106 : vector<1x32xf32>
    %108 = tpu.concatenate %104, %107 in 0 : vector<1x32xf32>, vector<1x32xf32> -> vector<2x32xf32>
    %c0_59 = arith.constant 0 : index
    %c0_60 = arith.constant 0 : index
    %109 = vector.load %arg14[%c0_59, %c0_60] : memref<32x256xf32, #tpu.memory_space<vmem>>, vector<32x256xf32>
    %cst_61 = arith.constant dense<0.000000e+00> : vector<2x256xf32>
    %110 = tpu.matmul %108, %109, %cst_61 {dimension_numbers = #tpu.dot_dimension_numbers<[1], [0], [0], [1], [0, 0, 1, 1], [], []>} : vector<2x32xf32>, vector<32x256xf32>, vector<2x256xf32> -> vector<2x256xf32>
    %111 = vector.extract_strided_slice %110 {offsets = [0, 0], sizes = [1, 256], strides = [1, 1]} : vector<2x256xf32> to vector<1x256xf32>
    %112 = vector.broadcast %111 : vector<1x256xf32> to vector<16x256xf32>
    %113 = arith.mulf %82, %112 : vector<16x256xf32>
    %114 = vector.extract_strided_slice %110 {offsets = [1, 0], sizes = [1, 256], strides = [1, 1]} : vector<2x256xf32> to vector<1x256xf32>
    %115 = vector.broadcast %114 : vector<1x256xf32> to vector<16x256xf32>
    %116 = arith.addf %113, %115 : vector<16x256xf32>
    %cst_62 = arith.constant 0.000000e+00 : f32
    %117 = vector.broadcast %cst_62 : f32 to vector<16x256xf32>
    %118 = arith.maximumf %116, %117 : vector<16x256xf32>
    %119 = arith.truncf %118 : vector<16x256xf32> to vector<16x256xbf16>
    %c0_63 = arith.constant 0 : index
    %c0_64 = arith.constant 0 : index
    %120 = vector.load %arg3[%c0_63, %c0_64] : memref<256x1024xbf16, #tpu.memory_space<vmem>>, vector<256x1024xbf16>
    %cst_65 = arith.constant dense<0.000000e+00> : vector<16x1024xf32>
    %121 = tpu.matmul %119, %120, %cst_65 {dimension_numbers = #tpu.dot_dimension_numbers<[1], [0], [0], [1], [0, 0, 1, 1], [], []>} : vector<16x256xbf16>, vector<256x1024xbf16>, vector<16x1024xf32> -> vector<16x1024xf32>
    %122 = arith.truncf %121 : vector<16x1024xf32> to vector<16x1024xbf16>
    %c0_66 = arith.constant 0 : index
    %c0_67 = arith.constant 0 : index
    %c0_68 = arith.constant 0 : index
    %123 = vector.load %arg7[%c0_66, %c0_67, %c0_68] : memref<4x32x16xbf16, #tpu.memory_space<vmem>>, vector<1x32x16xbf16>
    %124 = vector.shape_cast %123 : vector<1x32x16xbf16> to vector<32x16xbf16>
    %125 = vector.extract_strided_slice %122 {offsets = [0, 0], sizes = [16, 256], strides = [1, 1]} : vector<16x1024xbf16> to vector<16x256xbf16>
    %cst_69 = arith.constant dense<0.000000e+00> : vector<32x256xf32>
    %126 = tpu.matmul %124, %125, %cst_69 {dimension_numbers = #tpu.dot_dimension_numbers<[1], [0], [0], [1], [0, 0, 1, 1], [], []>} : vector<32x16xbf16>, vector<16x256xbf16>, vector<32x256xf32> -> vector<32x256xf32>
    %c1_70 = arith.constant 1 : index
    %c0_71 = arith.constant 0 : index
    %c0_72 = arith.constant 0 : index
    %127 = vector.load %arg7[%c1_70, %c0_71, %c0_72] : memref<4x32x16xbf16, #tpu.memory_space<vmem>>, vector<1x32x16xbf16>
    %128 = vector.shape_cast %127 : vector<1x32x16xbf16> to vector<32x16xbf16>
    %129 = vector.extract_strided_slice %122 {offsets = [0, 256], sizes = [16, 256], strides = [1, 1]} : vector<16x1024xbf16> to vector<16x256xbf16>
    %cst_73 = arith.constant dense<0.000000e+00> : vector<32x256xf32>
    %130 = tpu.matmul %128, %129, %cst_73 {dimension_numbers = #tpu.dot_dimension_numbers<[1], [0], [0], [1], [0, 0, 1, 1], [], []>} : vector<32x16xbf16>, vector<16x256xbf16>, vector<32x256xf32> -> vector<32x256xf32>
    %131 = arith.addf %126, %130 : vector<32x256xf32>
    %c2_74 = arith.constant 2 : index
    %c0_75 = arith.constant 0 : index
    %c0_76 = arith.constant 0 : index
    %132 = vector.load %arg7[%c2_74, %c0_75, %c0_76] : memref<4x32x16xbf16, #tpu.memory_space<vmem>>, vector<1x32x16xbf16>
    %133 = vector.shape_cast %132 : vector<1x32x16xbf16> to vector<32x16xbf16>
    %134 = vector.extract_strided_slice %122 {offsets = [0, 512], sizes = [16, 256], strides = [1, 1]} : vector<16x1024xbf16> to vector<16x256xbf16>
    %cst_77 = arith.constant dense<0.000000e+00> : vector<32x256xf32>
    %135 = tpu.matmul %133, %134, %cst_77 {dimension_numbers = #tpu.dot_dimension_numbers<[1], [0], [0], [1], [0, 0, 1, 1], [], []>} : vector<32x16xbf16>, vector<16x256xbf16>, vector<32x256xf32> -> vector<32x256xf32>
    %136 = arith.addf %131, %135 : vector<32x256xf32>
    %c3_78 = arith.constant 3 : index
    %c0_79 = arith.constant 0 : index
    %c0_80 = arith.constant 0 : index
    %137 = vector.load %arg7[%c3_78, %c0_79, %c0_80] : memref<4x32x16xbf16, #tpu.memory_space<vmem>>, vector<1x32x16xbf16>
    %138 = vector.shape_cast %137 : vector<1x32x16xbf16> to vector<32x16xbf16>
    %139 = vector.extract_strided_slice %122 {offsets = [0, 768], sizes = [16, 256], strides = [1, 1]} : vector<16x1024xbf16> to vector<16x256xbf16>
    %cst_81 = arith.constant dense<0.000000e+00> : vector<32x256xf32>
    %140 = tpu.matmul %138, %139, %cst_81 {dimension_numbers = #tpu.dot_dimension_numbers<[1], [0], [0], [1], [0, 0, 1, 1], [], []>} : vector<32x16xbf16>, vector<16x256xbf16>, vector<32x256xf32> -> vector<32x256xf32>
    %141 = arith.addf %136, %140 : vector<32x256xf32>
    %cst_82 = arith.constant dense<0.000000e+00> : vector<256xf32>
    %142 = vector.multi_reduction <add>, %141, %cst_82 [0] : vector<32x256xf32> to vector<256xf32>
    %143 = vector.shape_cast %142 : vector<256xf32> to vector<1x256xf32>
    %144 = arith.mulf %141, %141 : vector<32x256xf32>
    %cst_83 = arith.constant dense<0.000000e+00> : vector<256xf32>
    %145 = vector.multi_reduction <add>, %144, %cst_83 [0] : vector<32x256xf32> to vector<256xf32>
    %146 = vector.shape_cast %145 : vector<256xf32> to vector<1x256xf32>
    %147 = tpu.concatenate %143, %146 in 0 : vector<1x256xf32>, vector<1x256xf32> -> vector<2x256xf32>
    %c0_84 = arith.constant 0 : index
    %c0_85 = arith.constant 0 : index
    %148 = vector.load %arg11[%c0_84, %c0_85] : memref<256x16xf32, #tpu.memory_space<vmem>>, vector<256x16xf32>
    %cst_86 = arith.constant dense<0.000000e+00> : vector<2x16xf32>
    %149 = tpu.matmul %147, %148, %cst_86 {dimension_numbers = #tpu.dot_dimension_numbers<[1], [0], [0], [1], [0, 0, 1, 1], [], []>} : vector<2x256xf32>, vector<256x16xf32>, vector<2x16xf32> -> vector<2x16xf32>
    %cst_87 = arith.constant 0.001953125 : f32
    %150 = vector.broadcast %cst_87 : f32 to vector<2x16xf32>
    %151 = arith.mulf %149, %150 : vector<2x16xf32>
    %152 = vector.extract_strided_slice %151 {offsets = [0, 0], sizes = [1, 16], strides = [1, 1]} : vector<2x16xf32> to vector<1x16xf32>
    %153 = vector.extract_strided_slice %151 {offsets = [1, 0], sizes = [1, 16], strides = [1, 1]} : vector<2x16xf32> to vector<1x16xf32>
    %154 = arith.mulf %152, %152 : vector<1x16xf32>
    %155 = arith.subf %153, %154 : vector<1x16xf32>
    %cst_88 = arith.constant 0.000000e+00 : f32
    %156 = vector.broadcast %cst_88 : f32 to vector<1x16xf32>
    %157 = arith.maximumf %155, %156 : vector<1x16xf32>
    %c0_89 = arith.constant 0 : index
    %c0_90 = arith.constant 0 : index
    %158 = vector.load %arg19[%c0_89, %c0_90] : memref<2x16xf32, #tpu.memory_space<vmem>>, vector<2x16xf32>
    %159 = vector.extract_strided_slice %158 {offsets = [0, 0], sizes = [1, 16], strides = [1, 1]} : vector<2x16xf32> to vector<1x16xf32>
    %cst_91 = arith.constant 9.99999974E-6 : f32
    %160 = vector.broadcast %cst_91 : f32 to vector<1x16xf32>
    %161 = arith.addf %157, %160 : vector<1x16xf32>
    %162 = math.rsqrt %161 : vector<1x16xf32>
    %163 = arith.mulf %159, %162 : vector<1x16xf32>
    %164 = vector.extract_strided_slice %158 {offsets = [1, 0], sizes = [1, 16], strides = [1, 1]} : vector<2x16xf32> to vector<1x16xf32>
    %165 = arith.mulf %152, %163 : vector<1x16xf32>
    %166 = arith.subf %164, %165 : vector<1x16xf32>
    %167 = tpu.concatenate %163, %166 in 0 : vector<1x16xf32>, vector<1x16xf32> -> vector<2x16xf32>
    %c0_92 = arith.constant 0 : index
    %c0_93 = arith.constant 0 : index
    %168 = vector.load %arg15[%c0_92, %c0_93] : memref<16x256xf32, #tpu.memory_space<vmem>>, vector<16x256xf32>
    %cst_94 = arith.constant dense<0.000000e+00> : vector<2x256xf32>
    %169 = tpu.matmul %167, %168, %cst_94 {dimension_numbers = #tpu.dot_dimension_numbers<[1], [0], [0], [1], [0, 0, 1, 1], [], []>} : vector<2x16xf32>, vector<16x256xf32>, vector<2x256xf32> -> vector<2x256xf32>
    %170 = vector.extract_strided_slice %169 {offsets = [0, 0], sizes = [1, 256], strides = [1, 1]} : vector<2x256xf32> to vector<1x256xf32>
    %171 = vector.broadcast %170 : vector<1x256xf32> to vector<32x256xf32>
    %172 = arith.mulf %141, %171 : vector<32x256xf32>
    %173 = vector.extract_strided_slice %169 {offsets = [1, 0], sizes = [1, 256], strides = [1, 1]} : vector<2x256xf32> to vector<1x256xf32>
    %174 = vector.broadcast %173 : vector<1x256xf32> to vector<32x256xf32>
    %175 = arith.addf %172, %174 : vector<32x256xf32>
    %cst_95 = arith.constant 0.000000e+00 : f32
    %176 = vector.broadcast %cst_95 : f32 to vector<32x256xf32>
    %177 = arith.maximumf %175, %176 : vector<32x256xf32>
    %178 = arith.truncf %177 : vector<32x256xf32> to vector<32x256xbf16>
    %c0_96 = arith.constant 0 : index
    %c0_97 = arith.constant 0 : index
    %179 = vector.load %arg4[%c0_96, %c0_97] : memref<256x1024xbf16, #tpu.memory_space<vmem>>, vector<256x1024xbf16>
    %cst_98 = arith.constant dense<0.000000e+00> : vector<32x1024xf32>
    %180 = tpu.matmul %178, %179, %cst_98 {dimension_numbers = #tpu.dot_dimension_numbers<[1], [0], [0], [1], [0, 0, 1, 1], [], []>} : vector<32x256xbf16>, vector<256x1024xbf16>, vector<32x1024xf32> -> vector<32x1024xf32>
    %181 = arith.truncf %180 : vector<32x1024xf32> to vector<32x1024xbf16>
    %c0_99 = arith.constant 0 : index
    %c0_100 = arith.constant 0 : index
    %c0_101 = arith.constant 0 : index
    %182 = vector.load %arg8[%c0_99, %c0_100, %c0_101] : memref<4x64x32xbf16, #tpu.memory_space<vmem>>, vector<1x64x32xbf16>
    %183 = vector.shape_cast %182 : vector<1x64x32xbf16> to vector<64x32xbf16>
    %184 = vector.extract_strided_slice %181 {offsets = [0, 0], sizes = [32, 256], strides = [1, 1]} : vector<32x1024xbf16> to vector<32x256xbf16>
    %cst_102 = arith.constant dense<0.000000e+00> : vector<64x256xf32>
    %185 = tpu.matmul %183, %184, %cst_102 {dimension_numbers = #tpu.dot_dimension_numbers<[1], [0], [0], [1], [0, 0, 1, 1], [], []>} : vector<64x32xbf16>, vector<32x256xbf16>, vector<64x256xf32> -> vector<64x256xf32>
    %c1_103 = arith.constant 1 : index
    %c0_104 = arith.constant 0 : index
    %c0_105 = arith.constant 0 : index
    %186 = vector.load %arg8[%c1_103, %c0_104, %c0_105] : memref<4x64x32xbf16, #tpu.memory_space<vmem>>, vector<1x64x32xbf16>
    %187 = vector.shape_cast %186 : vector<1x64x32xbf16> to vector<64x32xbf16>
    %188 = vector.extract_strided_slice %181 {offsets = [0, 256], sizes = [32, 256], strides = [1, 1]} : vector<32x1024xbf16> to vector<32x256xbf16>
    %cst_106 = arith.constant dense<0.000000e+00> : vector<64x256xf32>
    %189 = tpu.matmul %187, %188, %cst_106 {dimension_numbers = #tpu.dot_dimension_numbers<[1], [0], [0], [1], [0, 0, 1, 1], [], []>} : vector<64x32xbf16>, vector<32x256xbf16>, vector<64x256xf32> -> vector<64x256xf32>
    %190 = arith.addf %185, %189 : vector<64x256xf32>
    %c2_107 = arith.constant 2 : index
    %c0_108 = arith.constant 0 : index
    %c0_109 = arith.constant 0 : index
    %191 = vector.load %arg8[%c2_107, %c0_108, %c0_109] : memref<4x64x32xbf16, #tpu.memory_space<vmem>>, vector<1x64x32xbf16>
    %192 = vector.shape_cast %191 : vector<1x64x32xbf16> to vector<64x32xbf16>
    %193 = vector.extract_strided_slice %181 {offsets = [0, 512], sizes = [32, 256], strides = [1, 1]} : vector<32x1024xbf16> to vector<32x256xbf16>
    %cst_110 = arith.constant dense<0.000000e+00> : vector<64x256xf32>
    %194 = tpu.matmul %192, %193, %cst_110 {dimension_numbers = #tpu.dot_dimension_numbers<[1], [0], [0], [1], [0, 0, 1, 1], [], []>} : vector<64x32xbf16>, vector<32x256xbf16>, vector<64x256xf32> -> vector<64x256xf32>
    %195 = arith.addf %190, %194 : vector<64x256xf32>
    %c3_111 = arith.constant 3 : index
    %c0_112 = arith.constant 0 : index
    %c0_113 = arith.constant 0 : index
    %196 = vector.load %arg8[%c3_111, %c0_112, %c0_113] : memref<4x64x32xbf16, #tpu.memory_space<vmem>>, vector<1x64x32xbf16>
    %197 = vector.shape_cast %196 : vector<1x64x32xbf16> to vector<64x32xbf16>
    %198 = vector.extract_strided_slice %181 {offsets = [0, 768], sizes = [32, 256], strides = [1, 1]} : vector<32x1024xbf16> to vector<32x256xbf16>
    %cst_114 = arith.constant dense<0.000000e+00> : vector<64x256xf32>
    %199 = tpu.matmul %197, %198, %cst_114 {dimension_numbers = #tpu.dot_dimension_numbers<[1], [0], [0], [1], [0, 0, 1, 1], [], []>} : vector<64x32xbf16>, vector<32x256xbf16>, vector<64x256xf32> -> vector<64x256xf32>
    %200 = arith.addf %195, %199 : vector<64x256xf32>
    %cst_115 = arith.constant dense<0.000000e+00> : vector<256xf32>
    %201 = vector.multi_reduction <add>, %200, %cst_115 [0] : vector<64x256xf32> to vector<256xf32>
    %202 = vector.shape_cast %201 : vector<256xf32> to vector<1x256xf32>
    %203 = arith.mulf %200, %200 : vector<64x256xf32>
    %cst_116 = arith.constant dense<0.000000e+00> : vector<256xf32>
    %204 = vector.multi_reduction <add>, %203, %cst_116 [0] : vector<64x256xf32> to vector<256xf32>
    %205 = vector.shape_cast %204 : vector<256xf32> to vector<1x256xf32>
    %206 = tpu.concatenate %202, %205 in 0 : vector<1x256xf32>, vector<1x256xf32> -> vector<2x256xf32>
    %c0_117 = arith.constant 0 : index
    %c0_118 = arith.constant 0 : index
    %207 = vector.load %arg12[%c0_117, %c0_118] : memref<256x8xf32, #tpu.memory_space<vmem>>, vector<256x8xf32>
    %cst_119 = arith.constant dense<0.000000e+00> : vector<2x8xf32>
    %208 = tpu.matmul %206, %207, %cst_119 {dimension_numbers = #tpu.dot_dimension_numbers<[1], [0], [0], [1], [0, 0, 1, 1], [], []>} : vector<2x256xf32>, vector<256x8xf32>, vector<2x8xf32> -> vector<2x8xf32>
    %cst_120 = arith.constant 4.8828125E-4 : f32
    %209 = vector.broadcast %cst_120 : f32 to vector<2x8xf32>
    %210 = arith.mulf %208, %209 : vector<2x8xf32>
    %211 = vector.extract_strided_slice %210 {offsets = [0, 0], sizes = [1, 8], strides = [1, 1]} : vector<2x8xf32> to vector<1x8xf32>
    %212 = vector.extract_strided_slice %210 {offsets = [1, 0], sizes = [1, 8], strides = [1, 1]} : vector<2x8xf32> to vector<1x8xf32>
    %213 = arith.mulf %211, %211 : vector<1x8xf32>
    %214 = arith.subf %212, %213 : vector<1x8xf32>
    %cst_121 = arith.constant 0.000000e+00 : f32
    %215 = vector.broadcast %cst_121 : f32 to vector<1x8xf32>
    %216 = arith.maximumf %214, %215 : vector<1x8xf32>
    %c0_122 = arith.constant 0 : index
    %c0_123 = arith.constant 0 : index
    %217 = vector.load %arg20[%c0_122, %c0_123] : memref<2x8xf32, #tpu.memory_space<vmem>>, vector<2x8xf32>
    %218 = vector.extract_strided_slice %217 {offsets = [0, 0], sizes = [1, 8], strides = [1, 1]} : vector<2x8xf32> to vector<1x8xf32>
    %cst_124 = arith.constant 9.99999974E-6 : f32
    %219 = vector.broadcast %cst_124 : f32 to vector<1x8xf32>
    %220 = arith.addf %216, %219 : vector<1x8xf32>
    %221 = math.rsqrt %220 : vector<1x8xf32>
    %222 = arith.mulf %218, %221 : vector<1x8xf32>
    %223 = vector.extract_strided_slice %217 {offsets = [1, 0], sizes = [1, 8], strides = [1, 1]} : vector<2x8xf32> to vector<1x8xf32>
    %224 = arith.mulf %211, %222 : vector<1x8xf32>
    %225 = arith.subf %223, %224 : vector<1x8xf32>
    %226 = tpu.concatenate %222, %225 in 0 : vector<1x8xf32>, vector<1x8xf32> -> vector<2x8xf32>
    %c0_125 = arith.constant 0 : index
    %c0_126 = arith.constant 0 : index
    %227 = vector.load %arg16[%c0_125, %c0_126] : memref<8x256xf32, #tpu.memory_space<vmem>>, vector<8x256xf32>
    %cst_127 = arith.constant dense<0.000000e+00> : vector<2x256xf32>
    %228 = tpu.matmul %226, %227, %cst_127 {dimension_numbers = #tpu.dot_dimension_numbers<[1], [0], [0], [1], [0, 0, 1, 1], [], []>} : vector<2x8xf32>, vector<8x256xf32>, vector<2x256xf32> -> vector<2x256xf32>
    %229 = vector.extract_strided_slice %228 {offsets = [0, 0], sizes = [1, 256], strides = [1, 1]} : vector<2x256xf32> to vector<1x256xf32>
    %230 = vector.broadcast %229 : vector<1x256xf32> to vector<64x256xf32>
    %231 = arith.mulf %200, %230 : vector<64x256xf32>
    %232 = vector.extract_strided_slice %228 {offsets = [1, 0], sizes = [1, 256], strides = [1, 1]} : vector<2x256xf32> to vector<1x256xf32>
    %233 = vector.broadcast %232 : vector<1x256xf32> to vector<64x256xf32>
    %234 = arith.addf %231, %233 : vector<64x256xf32>
    %cst_128 = arith.constant 0.000000e+00 : f32
    %235 = vector.broadcast %cst_128 : f32 to vector<64x256xf32>
    %236 = arith.maximumf %234, %235 : vector<64x256xf32>
    %237 = arith.truncf %236 : vector<64x256xf32> to vector<64x256xbf16>
    %c0_129 = arith.constant 0 : index
    %c0_130 = arith.constant 0 : index
    %238 = vector.load %arg21[%c0_129, %c0_130] : memref<256x128xbf16, #tpu.memory_space<vmem>>, vector<256x128xbf16>
    %cst_131 = arith.constant dense<0.000000e+00> : vector<64x128xf32>
    %239 = tpu.matmul %237, %238, %cst_131 {dimension_numbers = #tpu.dot_dimension_numbers<[1], [0], [0], [1], [0, 0, 1, 1], [], []>} : vector<64x256xbf16>, vector<256x128xbf16>, vector<64x128xf32> -> vector<64x128xf32>
    %240 = math.tanh %239 : vector<64x128xf32>
    %c0_132 = arith.constant 0 : index
    %c0_133 = arith.constant 0 : index
    %241 = vector.load %arg22[%c0_132, %c0_133] : memref<64x128xf32, #tpu.memory_space<vmem>>, vector<64x128xf32>
    tpu.vector_store %arg22[%c0_132, %c0_133], %240 {strides = array<i32>} : memref<64x128xf32, #tpu.memory_space<vmem>>, vector<64x128xf32>,
    return
  }
}

</mosaic_0001>

<llo_original>
// kernel: generator_forward.1
$region0: #{generator_forward.1}
  #allocation0 [shape = 'u32[]', space=smem, size = 0x4, offset = 0x4, fixed_abs, tag = 'smem constant byte address 0x4 - core index']
  #allocation1 [shape = 'u32[144,128]{1,0:T(1,128)}', space=vmem, size = 0x12000, scoped, tag = 'internal scratch']
  %s0 = inlined_call_operand.vmem [shape: f32[2,16], index: 0, kind: input, shape index: {}]
  %s1 = inlined_call_operand.vmem [shape: bf16[16,1024], index: 1, kind: input, shape index: {}]
  %s2 = inlined_call_operand.vmem [shape: bf16[256,1024], index: 2, kind: input, shape index: {}]
  %s3 = inlined_call_operand.hbm [shape: bf16[256,1024], index: 3, kind: input, shape index: {}]
  %s4 = inlined_call_operand.hbm [shape: bf16[256,1024], index: 4, kind: input, shape index: {}]
  %s5 = inlined_call_operand.vmem [shape: bf16[4,8,2], index: 5, kind: input, shape index: {}]
  %s6 = inlined_call_operand.vmem [shape: bf16[4,16,8], index: 6, kind: input, shape index: {}]
  %s7 = inlined_call_operand.vmem [shape: bf16[4,32,16], index: 7, kind: input, shape index: {}]
  %s8 = inlined_call_operand.vmem [shape: bf16[4,64,32], index: 8, kind: input, shape index: {}]
  %s9 = inlined_call_operand.vmem [shape: f32[256,64], index: 9, kind: input, shape index: {}]
  %s10 = inlined_call_operand.vmem [shape: f32[256,32], index: 10, kind: input, shape index: {}]
  %s11 = inlined_call_operand.vmem [shape: f32[256,16], index: 11, kind: input, shape index: {}]
  %s12 = inlined_call_operand.vmem [shape: f32[256,8], index: 12, kind: input, shape index: {}]
  %s13 = inlined_call_operand.vmem [shape: f32[64,256], index: 13, kind: input, shape index: {}]
  %s14 = inlined_call_operand.vmem [shape: f32[32,256], index: 14, kind: input, shape index: {}]
  %s15 = inlined_call_operand.hbm [shape: f32[16,256], index: 15, kind: input, shape index: {}]
  %s16 = inlined_call_operand.hbm [shape: f32[8,256], index: 16, kind: input, shape index: {}]
  %s17 = inlined_call_operand.hbm [shape: f32[2,64], index: 17, kind: input, shape index: {}]
  %s18 = inlined_call_operand.hbm [shape: f32[2,32], index: 18, kind: input, shape index: {}]
  %s19 = inlined_call_operand.hbm [shape: f32[2,16], index: 19, kind: input, shape index: {}]
  %s20 = inlined_call_operand.hbm [shape: f32[2,8], index: 20, kind: input, shape index: {}]
  %s21 = inlined_call_operand.vmem [shape: bf16[256,128], index: 21, kind: input, shape index: {}]
  %s22 = inlined_call_operand.vmem [shape: f32[64,128], index: 22, kind: output, shape index: {}]
  %s23 = sld [smem:[#allocation0]]
  $region130: #{generator_forward.1} parent=0
    _
  %s25 = ssub.s32 1, %s23
  %s26 = scalar_select 0, %s25, %s23
  $region1: #{generator_forward.1} parent=0
    #allocation2 [shape = 'u8[524288]{0}', space=vmem, size = 0x80000, scoped, tag = 'input window, operand 3, single buffered']
    #allocation3 [shape = 's32[1]{0}', space=sflag, size = 0x4, scoped, tag = 'scoped memory for generator_forward.1']
    #allocation4 [shape = 'u8[524288]{0}', space=vmem, size = 0x80000, scoped, tag = 'input window, operand 4, single buffered']
    #allocation5 [shape = 's32[1]{0}', space=sflag, size = 0x4, scoped, tag = 'scoped memory for generator_forward.1']
    #allocation6 [shape = 'u8[16384]{0}', space=vmem, size = 0x4000, scoped, tag = 'input window, operand 15, single buffered']
    #allocation7 [shape = 'u8[8192]{0}', space=vmem, size = 0x2000, scoped, tag = 'input window, operand 16, single buffered']
    #allocation8 [shape = 's32[1]{0}', space=sflag, size = 0x4, scoped, tag = 'scoped memory for generator_forward.1']
    #allocation9 [shape = 'u8[1024]{0}', space=vmem, size = 0x400, scoped, tag = 'input window, operand 17, single buffered']
    #allocation10 [shape = 'u8[1024]{0}', space=vmem, size = 0x400, scoped, tag = 'input window, operand 18, single buffered']
    #allocation11 [shape = 's32[1]{0}', space=sflag, size = 0x4, scoped, tag = 'scoped memory for generator_forward.1']
    #allocation12 [shape = 'u8[1024]{0}', space=vmem, size = 0x400, scoped, tag = 'input window, operand 19, single buffered']
    #allocation13 [shape = 'u8[1024]{0}', space=vmem, size = 0x400, scoped, tag = 'input window, operand 20, single buffered']
    #allocation14 [shape = 's32[1]{0}', space=sflag, size = 0x4, scoped, tag = 'scoped memory for generator_forward.1']
    %27 = vsyncpa [#allocation3], 0
    %28 = vsyncpa [#allocation5], 0
    %29 = vsyncpa [#allocation8], 0
    %30 = vsyncpa [#allocation11], 0
    %31 = vsyncpa [#allocation14], 0
    // Predicated region
    $region2: #{generator_forward.1} parent=1 // pred_check
      _
    $region3: #{generator_forward.1} parent=1 // pred_check_branch
      %33 = sbr.rel (0) target = $region5
    $region4: #{generator_forward.1} parent=1 // pred_region
      _
    $region5: #{generator_forward.1} parent=1 // pred_fallthru
      _
    // Predicated region
    $region6: #{generator_forward.1} parent=1 // pred_check
      _
    $region7: #{generator_forward.1} parent=1 // pred_check_branch
      %35 = sbr.rel (0) target = $region9
    $region8: #{generator_forward.1} parent=1 // pred_region
      _
    $region9: #{generator_forward.1} parent=1 // pred_fallthru
      _
    // Predicated region
    $region10: #{generator_forward.1} parent=1 // pred_check
      _
    $region11: #{generator_forward.1} parent=1 // pred_check_branch
      %37 = sbr.rel (0) target = $region13
    $region12: #{generator_forward.1} parent=1 // pred_region
      _
    $region13: #{generator_forward.1} parent=1 // pred_fallthru
      _
    // Predicated region
    $region14: #{generator_forward.1} parent=1 // pred_check
      _
    $region15: #{generator_forward.1} parent=1 // pred_check_branch
      %39 = sbr.rel (0) target = $region17
    $region16: #{generator_forward.1} parent=1 // pred_region
      %s41 = ssub.s32 16384, 16384
      %42 = vsyncadd [#allocation3], %s41
      %s43 = sshll.u32 [#allocation2], 4
      %s44 = int_to_ptr.vmem [resolvable:$true] %s43
      %49 = dma.hbm_to_vmem [thread:$0]  %s3, 16384, %s44, [#allocation3], 512, 512, 32
    $region17: #{generator_forward.1} parent=1 // pred_fallthru
      _
    // Predicated region
    $region18: #{generator_forward.1} parent=1 // pred_check
      _
    $region19: #{generator_forward.1} parent=1 // pred_check_branch
      %51 = sbr.rel (0) target = $region21
    $region20: #{generator_forward.1} parent=1 // pred_region
      %s53 = ssub.s32 16384, 16384
      %54 = vsyncadd [#allocation5], %s53
      %s55 = sshll.u32 [#allocation4], 4
      %s56 = int_to_ptr.vmem [resolvable:$true] %s55
      %61 = dma.hbm_to_vmem [thread:$0]  %s4, 16384, %s56, [#allocation5], 512, 512, 32
    $region21: #{generator_forward.1} parent=1 // pred_fallthru
      _
    // Predicated region
    $region22: #{generator_forward.1} parent=1 // pred_check
      _
    $region23: #{generator_forward.1} parent=1 // pred_check_branch
      %63 = sbr.rel (0) target = $region25
    $region24: #{generator_forward.1} parent=1 // pred_region
      _
    $region25: #{generator_forward.1} parent=1 // pred_fallthru
      _
    // Predicated region
    $region26: #{generator_forward.1} parent=1 // pred_check
      _
    $region27: #{generator_forward.1} parent=1 // pred_check_branch
      %65 = sbr.rel (0) target = $region29
    $region28: #{generator_forward.1} parent=1 // pred_region
      _
    $region29: #{generator_forward.1} parent=1 // pred_fallthru
      _
    // Predicated region
    $region30: #{generator_forward.1} parent=1 // pred_check
      _
    $region31: #{generator_forward.1} parent=1 // pred_check_branch
      %67 = sbr.rel (0) target = $region33
    $region32: #{generator_forward.1} parent=1 // pred_region
      _
    $region33: #{generator_forward.1} parent=1 // pred_fallthru
      _
    // Predicated region
    $region34: #{generator_forward.1} parent=1 // pred_check
      _
    $region35: #{generator_forward.1} parent=1 // pred_check_branch
      %69 = sbr.rel (0) target = $region37
    $region36: #{generator_forward.1} parent=1 // pred_region
      _
    $region37: #{generator_forward.1} parent=1 // pred_fallthru
      _
    // Predicated region
    $region38: #{generator_forward.1} parent=1 // pred_check
      _
    $region39: #{generator_forward.1} parent=1 // pred_check_branch
      %71 = sbr.rel (0) target = $region41
    $region40: #{generator_forward.1} parent=1 // pred_region
      _
    $region41: #{generator_forward.1} parent=1 // pred_fallthru
      _
    // Predicated region
    $region42: #{generator_forward.1} parent=1 // pred_check
      _
    $region43: #{generator_forward.1} parent=1 // pred_check_branch
      %73 = sbr.rel (0) target = $region45
    $region44: #{generator_forward.1} parent=1 // pred_region
      _
    $region45: #{generator_forward.1} parent=1 // pred_fallthru
      _
    // Predicated region
    $region46: #{generator_forward.1} parent=1 // pred_check
      _
    $region47: #{generator_forward.1} parent=1 // pred_check_branch
      %75 = sbr.rel (0) target = $region49
    $region48: #{generator_forward.1} parent=1 // pred_region
      _
    $region49: #{generator_forward.1} parent=1 // pred_fallthru
      _
    // Predicated region
    $region50: #{generator_forward.1} parent=1 // pred_check
      _
    $region51: #{generator_forward.1} parent=1 // pred_check_branch
      %77 = sbr.rel (0) target = $region53
    $region52: #{generator_forward.1} parent=1 // pred_region
      _
    $region53: #{generator_forward.1} parent=1 // pred_fallthru
      _
    // Predicated region
    $region54: #{generator_forward.1} parent=1 // pred_check
      _
    $region55: #{generator_forward.1} parent=1 // pred_check_branch
      %79 = sbr.rel (0) target = $region57
    $region56: #{generator_forward.1} parent=1 // pred_region
      _
    $region57: #{generator_forward.1} parent=1 // pred_fallthru
      _
    // Predicated region
    $region58: #{generator_forward.1} parent=1 // pred_check
      _
    $region59: #{generator_forward.1} parent=1 // pred_check_branch
      %81 = sbr.rel (0) target = $region61
    $region60: #{generator_forward.1} parent=1 // pred_region
      _
    $region61: #{generator_forward.1} parent=1 // pred_fallthru
      _
    // Predicated region
    $region62: #{generator_forward.1} parent=1 // pred_check
      _
    $region63: #{generator_forward.1} parent=1 // pred_check_branch
      %83 = sbr.rel (0) target = $region65
    $region64: #{generator_forward.1} parent=1 // pred_region
      %s85 = ssub.s32 512, 512
      %86 = vsyncadd [#allocation5], %s85
      %s87 = sshll.u32 [#allocation6], 4
      %s88 = int_to_ptr.vmem [resolvable:$true] %s87
      %93 = dma.hbm_to_vmem [thread:$0]  %s15, 512, %s88, [#allocation5], 256, 256, 16
    $region65: #{generator_forward.1} parent=1 // pred_fallthru
      _
    // Predicated region
    $region66: #{generator_forward.1} parent=1 // pred_check
      _
    $region67: #{generator_forward.1} parent=1 // pred_check_branch
      %95 = sbr.rel (0) target = $region69
    $region68: #{generator_forward.1} parent=1 // pred_region
      %s97 = ssub.s32 256, 256
      %98 = vsyncadd [#allocation8], %s97
      %s100 = sshll.u32 [#allocation7], 4
      %s101 = int_to_ptr.vmem [resolvable:$true] %s100
      %103 = dma.hbm_to_vmem [thread:$0]  %s16, 256, %s101, [#allocation8]
    $region69: #{generator_forward.1} parent=1 // pred_fallthru
      _
    // Predicated region
    $region70: #{generator_forward.1} parent=1 // pred_check
      _
    $region71: #{generator_forward.1} parent=1 // pred_check_branch
      %105 = sbr.rel (0) target = $region73
    $region72: #{generator_forward.1} parent=1 // pred_region
      %s107 = ssub.s32 32, 32
      %108 = vsyncadd [#allocation8], %s107
      %s110 = sshll.u32 [#allocation9], 4
      %s111 = int_to_ptr.vmem [resolvable:$true] %s110
      %113 = dma.hbm_to_vmem [thread:$0]  %s17, 32, %s111, [#allocation8]
    $region73: #{generator_forward.1} parent=1 // pred_fallthru
      _
    // Predicated region
    $region74: #{generator_forward.1} parent=1 // pred_check
      _
    $region75: #{generator_forward.1} parent=1 // pred_check_branch
      %115 = sbr.rel (0) target = $region77
    $region76: #{generator_forward.1} parent=1 // pred_region
      %s117 = ssub.s32 32, 32
      %118 = vsyncadd [#allocation11], %s117
      %s120 = sshll.u32 [#allocation10], 4
      %s121 = int_to_ptr.vmem [resolvable:$true] %s120
      %123 = dma.hbm_to_vmem [thread:$0]  %s18, 32, %s121, [#allocation11]
    $region77: #{generator_forward.1} parent=1 // pred_fallthru
      _
    // Predicated region
    $region78: #{generator_forward.1} parent=1 // pred_check
      _
    $region79: #{generator_forward.1} parent=1 // pred_check_branch
      %125 = sbr.rel (0) target = $region81
    $region80: #{generator_forward.1} parent=1 // pred_region
      %s127 = ssub.s32 32, 32
      %128 = vsyncadd [#allocation11], %s127
      %s130 = sshll.u32 [#allocation12], 4
      %s131 = int_to_ptr.vmem [resolvable:$true] %s130
      %133 = dma.hbm_to_vmem [thread:$0]  %s19, 32, %s131, [#allocation11]
    $region81: #{generator_forward.1} parent=1 // pred_fallthru
      _
    // Predicated region
    $region82: #{generator_forward.1} parent=1 // pred_check
      _
    $region83: #{generator_forward.1} parent=1 // pred_check_branch
      %135 = sbr.rel (0) target = $region85
    $region84: #{generator_forward.1} parent=1 // pred_region
      %s137 = ssub.s32 32, 32
      %138 = vsyncadd [#allocation14], %s137
      %s140 = sshll.u32 [#allocation13], 4
      %s141 = int_to_ptr.vmem [resolvable:$true] %s140
      %143 = dma.hbm_to_vmem [thread:$0]  %s20, 32, %s141, [#allocation14]
    $region85: #{generator_forward.1} parent=1 // pred_fallthru
      _
    // Predicated region
    $region86: #{generator_forward.1} parent=1 // pred_check
      _
    $region87: #{generator_forward.1} parent=1 // pred_check_branch
      %145 = sbr.rel (0) target = $region89
    $region88: #{generator_forward.1} parent=1 // pred_region
      _
    $region89: #{generator_forward.1} parent=1 // pred_fallthru
      _
    // Predicated region
    $region90: #{generator_forward.1} parent=1 // pred_check
      _
    $region91: #{generator_forward.1} parent=1 // pred_check_branch
      %147 = sbr.rel (0) target = $region93
    $region92: #{generator_forward.1} parent=1 // pred_region
      %148 = dma.done [#allocation3], 16384
    $region93: #{generator_forward.1} parent=1 // pred_fallthru
      _
    // Predicated region
    $region94: #{generator_forward.1} parent=1 // pred_check
      _
    $region95: #{generator_forward.1} parent=1 // pred_check_branch
      %150 = sbr.rel (0) target = $region97
    $region96: #{generator_forward.1} parent=1 // pred_region
      %151 = dma.done [#allocation5], 16384
    $region97: #{generator_forward.1} parent=1 // pred_fallthru
      _
    // Predicated region
    $region98: #{generator_forward.1} parent=1 // pred_check
      _
    $region99: #{generator_forward.1} parent=1 // pred_check_branch
      %153 = sbr.rel (0) target = $region101
    $region100: #{generator_forward.1} parent=1 // pred_region
      %154 = dma.done [#allocation5], 512
    $region101: #{generator_forward.1} parent=1 // pred_fallthru
      _
    // Predicated region
    $region102: #{generator_forward.1} parent=1 // pred_check
      _
    $region103: #{generator_forward.1} parent=1 // pred_check_branch
      %156 = sbr.rel (0) target = $region105
    $region104: #{generator_forward.1} parent=1 // pred_region
      %157 = dma.done [#allocation8], 256
    $region105: #{generator_forward.1} parent=1 // pred_fallthru
      _
    // Predicated region
    $region106: #{generator_forward.1} parent=1 // pred_check
      _
    $region107: #{generator_forward.1} parent=1 // pred_check_branch
      %159 = sbr.rel (0) target = $region109
    $region108: #{generator_forward.1} parent=1 // pred_region
      %160 = dma.done [#allocation8], 32
    $region109: #{generator_forward.1} parent=1 // pred_fallthru
      _
    // Predicated region
    $region110: #{generator_forward.1} parent=1 // pred_check
      _
    $region111: #{generator_forward.1} parent=1 // pred_check_branch
      %162 = sbr.rel (0) target = $region113
    $region112: #{generator_forward.1} parent=1 // pred_region
      %163 = dma.done [#allocation11], 32
    $region113: #{generator_forward.1} parent=1 // pred_fallthru
      _
    // Predicated region
    $region114: #{generator_forward.1} parent=1 // pred_check
      _
    $region115: #{generator_forward.1} parent=1 // pred_check_branch
      %165 = sbr.rel (0) target = $region117
    $region116: #{generator_forward.1} parent=1 // pred_region
      %166 = dma.done [#allocation11], 32
    $region117: #{generator_forward.1} parent=1 // pred_fallthru
      _
    // Predicated region
    $region118: #{generator_forward.1} parent=1 // pred_check
      _
    $region119: #{generator_forward.1} parent=1 // pred_check_branch
      %168 = sbr.rel (0) target = $region121
    $region120: #{generator_forward.1} parent=1 // pred_region
      %169 = dma.done [#allocation14], 32
    $region121: #{generator_forward.1} parent=1 // pred_fallthru
      _
    %v171 = vld [vmem:[%s0] sm:$0x3]
    %v172 = vpack.c.bf16 %v171, %v171
    %v173 = vld [vmem:[%s1] sm:$0xff]
    %v174 = vld [vmem:[%s1 + $0x8] sm:$0xff]
    %v175 = vld [vmem:[%s1 + $0x10] sm:$0xff]
    %v176 = vld [vmem:[%s1 + $0x18] sm:$0xff]
    %v177 = vld [vmem:[%s1 + $0x20] sm:$0xff]
    %v178 = vld [vmem:[%s1 + $0x28] sm:$0xff]
    %v179 = vld [vmem:[%s1 + $0x30] sm:$0xff]
    %v180 = vld [vmem:[%s1 + $0x38] sm:$0xff]
    %v189 = vunpack.c.l.b16 %v173
    %v190 = vunpack.c.h.b16 %v173
    %v191 = vunpack.c.l.b16 %v174
    %v192 = vunpack.c.h.b16 %v174
    %v193 = vunpack.c.l.b16 %v175
    %v194 = vunpack.c.h.b16 %v175
    %v195 = vunpack.c.l.b16 %v176
    %v196 = vunpack.c.h.b16 %v176
    %v197 = vunpack.c.l.b16 %v177
    %v198 = vunpack.c.h.b16 %v177
    %v199 = vunpack.c.l.b16 %v178
    %v200 = vunpack.c.h.b16 %v178
    %v201 = vunpack.c.l.b16 %v179
    %v202 = vunpack.c.h.b16 %v179
    %v203 = vunpack.c.l.b16 %v180
    %v204 = vunpack.c.h.b16 %v180
    %v205 = vpack.c.b16 %v197, %v189
    %v206 = vpack.c.b16 %v198, %v190
    %v207 = vpack.c.b16 %v199, %v191
    %v208 = vpack.c.b16 %v200, %v192
    %v209 = vpack.c.b16 %v201, %v193
    %v210 = vpack.c.b16 %v202, %v194
    %v211 = vpack.c.b16 %v203, %v195
    %v212 = vpack.c.b16 %v204, %v196
    %vm221 = vcmask 130048
    %v223 = vsel %vm221, %v172, 0
    %225 = vmatprep.subr.bf16.mxu0 %v206
    %226 = vmatpush1.bf16.msra.mxu0 %v205
    %227 = vmatprep.subr.bf16.mxu0 0
    %228 = vmatpush1.bf16.msra.mxu0 0
    %229 = vmatprep.subr.bf16.mxu0 0
    %230 = vmatpush1.bf16.msra.mxu0 0
    %231 = vmatprep.subr.bf16.mxu0 0
    %232 = vmatpush1.bf16.msra.mxu0 0
    %233 = vmatprep.subr.bf16.mxu0 0
    %234 = vmatpush1.bf16.msra.mxu0 0
    %235 = vmatprep.subr.bf16.mxu0 0
    %236 = vmatpush1.bf16.msra.mxu0 0
    %237 = vmatprep.subr.bf16.mxu0 0
    %238 = vmatpush1.bf16.msra.mxu0 0
    %239 = vmatprep.subr.bf16.mxu0 0
    %240 = vmatpush1.bf16.msra.mxu0 0
    %241 = vmatprep.subr.bf16.mxu0 0
    %242 = vmatpush1.bf16.msra.mxu0 0
    %243 = vmatprep.subr.bf16.mxu0 0
    %244 = vmatpush1.bf16.msra.mxu0 0
    %245 = vmatprep.subr.bf16.mxu0 0
    %246 = vmatpush1.bf16.msra.mxu0 0
    %247 = vmatprep.subr.bf16.mxu0 0
    %248 = vmatpush1.bf16.msra.mxu0 0
    %249 = vmatprep.subr.bf16.mxu0 0
    %250 = vmatpush1.bf16.msra.mxu0 0
    %251 = vmatprep.subr.bf16.mxu0 0
    %252 = vmatpush1.bf16.msra.mxu0 0
    %253 = vmatprep.subr.bf16.mxu0 0
    %254 = vmatpush1.bf16.msra.mxu0 0
    %255 = vmatprep.subr.bf16.mxu0 0
    %256 = vmatpush1.bf16.msra.mxu0 0
    %257 = vmatprep.mubr.bf16.mxu0 0
    %258 = vmatmul.mubr.bf16.gmra.mrb[0].mxu0 %v223
    %v259 = vpop.f32.mrb[0].mxu0
    %v260 = vadd.f32 0.0, %v259
    %v261 = vpop.f32.mrb[0].mxu0
    %v262 = vadd.f32 0.0, %v261
    %v263 = vpop.f32.mrb[0].mxu0
    %v264 = vpop.f32.mrb[0].mxu0
    %265 = vdwg.mxu0
    %266 = vmatprep.subr.bf16.mxu0 %v208
    %267 = vmatpush1.bf16.msra.mxu0 %v207
    %268 = vmatprep.subr.bf16.mxu0 0
    %269 = vmatpush1.bf16.msra.mxu0 0
    %270 = vmatprep.subr.bf16.mxu0 0
    %271 = vmatpush1.bf16.msra.mxu0 0
    %272 = vmatprep.subr.bf16.mxu0 0
    %273 = vmatpush1.bf16.msra.mxu0 0
    %274 = vmatprep.subr.bf16.mxu0 0
    %275 = vmatpush1.bf16.msra.mxu0 0
    %276 = vmatprep.subr.bf16.mxu0 0
    %277 = vmatpush1.bf16.msra.mxu0 0
    %278 = vmatprep.subr.bf16.mxu0 0
    %279 = vmatpush1.bf16.msra.mxu0 0
    %280 = vmatprep.subr.bf16.mxu0 0
    %281 = vmatpush1.bf16.msra.mxu0 0
    %282 = vmatprep.subr.bf16.mxu0 0
    %283 = vmatpush1.bf16.msra.mxu0 0
    %284 = vmatprep.subr.bf16.mxu0 0
    %285 = vmatpush1.bf16.msra.mxu0 0
    %286 = vmatprep.subr.bf16.mxu0 0
    %287 = vmatpush1.bf16.msra.mxu0 0
    %288 = vmatprep.subr.bf16.mxu0 0
    %289 = vmatpush1.bf16.msra.mxu0 0
    %290 = vmatprep.subr.bf16.mxu0 0
    %291 = vmatpush1.bf16.msra.mxu0 0
    %292 = vmatprep.subr.bf16.mxu0 0
    %293 = vmatpush1.bf16.msra.mxu0 0
    %294 = vmatprep.subr.bf16.mxu0 0
    %295 = vmatpush1.bf16.msra.mxu0 0
    %296 = vmatprep.subr.bf16.mxu0 0
    %297 = vmatpush1.bf16.msra.mxu0 0
    %298 = vmatprep.mubr.bf16.mxu0 0
    %299 = vmatmul.mubr.bf16.gmra.mrb[0].mxu0 %v223
    %v300 = vpop.f32.mrb[0].mxu0
    %v301 = vadd.f32 0.0, %v300
    %v302 = vpop.f32.mrb[0].mxu0
    %v303 = vadd.f32 0.0, %v302
    %v304 = vpop.f32.mrb[0].mxu0
    %v305 = vpop.f32.mrb[0].mxu0
    %306 = vdwg.mxu0
    %307 = vmatprep.subr.bf16.mxu0 %v210
    %308 = vmatpush1.bf16.msra.mxu0 %v209
    %309 = vmatprep.subr.bf16.mxu0 0
    %310 = vmatpush1.bf16.msra.mxu0 0
    %311 = vmatprep.subr.bf16.mxu0 0
    %312 = vmatpush1.bf16.msra.mxu0 0
    %313 = vmatprep.subr.bf16.mxu0 0
    %314 = vmatpush1.bf16.msra.mxu0 0
    %315 = vmatprep.subr.bf16.mxu0 0
    %316 = vmatpush1.bf16.msra.mxu0 0
    %317 = vmatprep.subr.bf16.mxu0 0
    %318 = vmatpush1.bf16.msra.mxu0 0
    %319 = vmatprep.subr.bf16.mxu0 0
    %320 = vmatpush1.bf16.msra.mxu0 0
    %321 = vmatprep.subr.bf16.mxu0 0
    %322 = vmatpush1.bf16.msra.mxu0 0
    %323 = vmatprep.subr.bf16.mxu0 0
    %324 = vmatpush1.bf16.msra.mxu0 0
    %325 = vmatprep.subr.bf16.mxu0 0
    %326 = vmatpush1.bf16.msra.mxu0 0
    %327 = vmatprep.subr.bf16.mxu0 0
    %328 = vmatpush1.bf16.msra.mxu0 0
    %329 = vmatprep.subr.bf16.mxu0 0
    %330 = vmatpush1.bf16.msra.mxu0 0
    %331 = vmatprep.subr.bf16.mxu0 0
    %332 = vmatpush1.bf16.msra.mxu0 0
    %333 = vmatprep.subr.bf16.mxu0 0
    %334 = vmatpush1.bf16.msra.mxu0 0
    %335 = vmatprep.subr.bf16.mxu0 0
    %336 = vmatpush1.bf16.msra.mxu0 0
    %337 = vmatprep.subr.bf16.mxu0 0
    %338 = vmatpush1.bf16.msra.mxu0 0
    %339 = vmatprep.mubr.bf16.mxu0 0
    %340 = vmatmul.mubr.bf16.gmra.mrb[0].mxu0 %v223
    %v341 = vpop.f32.mrb[0].mxu0
    %v342 = vadd.f32 0.0, %v341
    %v343 = vpop.f32.mrb[0].mxu0
    %v344 = vadd.f32 0.0, %v343
    %v345 = vpop.f32.mrb[0].mxu0
    %v346 = vpop.f32.mrb[0].mxu0
    %347 = vdwg.mxu0
    %348 = vmatprep.subr.bf16.mxu0 %v212
    %349 = vmatpush1.bf16.msra.mxu0 %v211
    %350 = vmatprep.subr.bf16.mxu0 0
    %351 = vmatpush1.bf16.msra.mxu0 0
    %352 = vmatprep.subr.bf16.mxu0 0
    %353 = vmatpush1.bf16.msra.mxu0 0
    %354 = vmatprep.subr.bf16.mxu0 0
    %355 = vmatpush1.bf16.msra.mxu0 0
    %356 = vmatprep.subr.bf16.mxu0 0
    %357 = vmatpush1.bf16.msra.mxu0 0
    %358 = vmatprep.subr.bf16.mxu0 0
    %359 = vmatpush1.bf16.msra.mxu0 0
    %360 = vmatprep.subr.bf16.mxu0 0
    %361 = vmatpush1.bf16.msra.mxu0 0
    %362 = vmatprep.subr.bf16.mxu0 0
    %363 = vmatpush1.bf16.msra.mxu0 0
    %364 = vmatprep.subr.bf16.mxu0 0
    %365 = vmatpush1.bf16.msra.mxu0 0
    %366 = vmatprep.subr.bf16.mxu0 0
    %367 = vmatpush1.bf16.msra.mxu0 0
    %368 = vmatprep.subr.bf16.mxu0 0
    %369 = vmatpush1.bf16.msra.mxu0 0
    %370 = vmatprep.subr.bf16.mxu0 0
    %371 = vmatpush1.bf16.msra.mxu0 0
    %372 = vmatprep.subr.bf16.mxu0 0
    %373 = vmatpush1.bf16.msra.mxu0 0
    %374 = vmatprep.subr.bf16.mxu0 0
    %375 = vmatpush1.bf16.msra.mxu0 0
    %376 = vmatprep.subr.bf16.mxu0 0
    %377 = vmatpush1.bf16.msra.mxu0 0
    %378 = vmatprep.subr.bf16.mxu0 0
    %379 = vmatpush1.bf16.msra.mxu0 0
    %380 = vmatprep.mubr.bf16.mxu0 0
    %381 = vmatmul.mubr.bf16.gmra.mrb[0].mxu0 %v223
    %v382 = vpop.f32.mrb[0].mxu0
    %v383 = vadd.f32 0.0, %v382
    %v384 = vpop.f32.mrb[0].mxu0
    %v385 = vadd.f32 0.0, %v384
    %v386 = vpop.f32.mrb[0].mxu0
    %v387 = vpop.f32.mrb[0].mxu0
    %388 = vdwg.mxu0
    %v389 = vpack.c.bf16 %v260, %v260
    %v390 = vpack.c.bf16 %v262, %v262
    %v391 = vpack.c.bf16 %v301, %v301
    %v392 = vpack.c.bf16 %v303, %v303
    %v393 = vpack.c.bf16 %v342, %v342
    %v394 = vpack.c.bf16 %v344, %v344
    %v395 = vpack.c.bf16 %v383, %v383
    %v396 = vpack.c.bf16 %v385, %v385
    %v397 = vld [vmem:[%s5] sm:$0xf]
    %s398 = scalar_lea.vmem %s5, 4
    %v399 = vld [vmem:[%s398] sm:$0xf]
    %vm400 = vcmask 15360
    %v402 = vsel %vm400, %v399, 0
    %vm404 = vcmask 1040384
    %v406 = vsel %vm404, %v391, 0
    %v409 = vsel %vm404, %v392, 0
    %411 = vmatprep.subr.bf16.mxu0 %v409
    %412 = vmatpush1.bf16.msra.mxu0 %v406
    %413 = vmatprep.subr.bf16.mxu0 0
    %414 = vmatpush1.bf16.msra.mxu0 0
    %415 = vmatprep.subr.bf16.mxu0 0
    %416 = vmatpush1.bf16.msra.mxu0 0
    %417 = vmatprep.subr.bf16.mxu0 0
    %418 = vmatpush1.bf16.msra.mxu0 0
    %419 = vmatprep.subr.bf16.mxu0 0
    %420 = vmatpush1.bf16.msra.mxu0 0
    %421 = vmatprep.subr.bf16.mxu0 0
    %422 = vmatpush1.bf16.msra.mxu0 0
    %423 = vmatprep.subr.bf16.mxu0 0
    %424 = vmatpush1.bf16.msra.mxu0 0
    %425 = vmatprep.subr.bf16.mxu0 0
    %426 = vmatpush1.bf16.msra.mxu0 0
    %427 = vmatprep.subr.bf16.mxu0 0
    %428 = vmatpush1.bf16.msra.mxu0 0
    %429 = vmatprep.subr.bf16.mxu0 0
    %430 = vmatpush1.bf16.msra.mxu0 0
    %431 = vmatprep.subr.bf16.mxu0 0
    %432 = vmatpush1.bf16.msra.mxu0 0
    %433 = vmatprep.subr.bf16.mxu0 0
    %434 = vmatpush1.bf16.msra.mxu0 0
    %435 = vmatprep.subr.bf16.mxu0 0
    %436 = vmatpush1.bf16.msra.mxu0 0
    %437 = vmatprep.subr.bf16.mxu0 0
    %438 = vmatpush1.bf16.msra.mxu0 0
    %439 = vmatprep.subr.bf16.mxu0 0
    %440 = vmatpush1.bf16.msra.mxu0 0
    %441 = vmatprep.subr.bf16.mxu0 0
    %442 = vmatpush1.bf16.msra.mxu0 0
    %443 = vmatprep.mubr.bf16.mxu0 0
    %444 = vmatmul.mubr.bf16.gmra.mrb[0].mxu0 %v402
    %v445 = vpop.f32.mrb[0].mxu0
    %v446 = vadd.f32 0.0, %v445
    %v447 = vpop.f32.mrb[0].mxu0
    %v448 = vadd.f32 0.0, %v447
    %v449 = vpop.f32.mrb[0].mxu0
    %v450 = vpop.f32.mrb[0].mxu0
    %451 = vdwg.mxu0
    %v453 = vsel %vm400, %v397, 0
    %v456 = vsel %vm404, %v389, 0
    %v459 = vsel %vm404, %v390, 0
    %461 = vmatprep.subr.bf16.mxu0 %v459
    %462 = vmatpush1.bf16.msra.mxu0 %v456
    %463 = vmatprep.subr.bf16.mxu0 0
    %464 = vmatpush1.bf16.msra.mxu0 0
    %465 = vmatprep.subr.bf16.mxu0 0
    %466 = vmatpush1.bf16.msra.mxu0 0
    %467 = vmatprep.subr.bf16.mxu0 0
    %468 = vmatpush1.bf16.msra.mxu0 0
    %469 = vmatprep.subr.bf16.mxu0 0
    %470 = vmatpush1.bf16.msra.mxu0 0
    %471 = vmatprep.subr.bf16.mxu0 0
    %472 = vmatpush1.bf16.msra.mxu0 0
    %473 = vmatprep.subr.bf16.mxu0 0
    %474 = vmatpush1.bf16.msra.mxu0 0
    %475 = vmatprep.subr.bf16.mxu0 0
    %476 = vmatpush1.bf16.msra.mxu0 0
    %477 = vmatprep.subr.bf16.mxu0 0
    %478 = vmatpush1.bf16.msra.mxu0 0
    %479 = vmatprep.subr.bf16.mxu0 0
    %480 = vmatpush1.bf16.msra.mxu0 0
    %481 = vmatprep.subr.bf16.mxu0 0
    %482 = vmatpush1.bf16.msra.mxu0 0
    %483 = vmatprep.subr.bf16.mxu0 0
    %484 = vmatpush1.bf16.msra.mxu0 0
    %485 = vmatprep.subr.bf16.mxu0 0
    %486 = vmatpush1.bf16.msra.mxu0 0
    %487 = vmatprep.subr.bf16.mxu0 0
    %488 = vmatpush1.bf16.msra.mxu0 0
    %489 = vmatprep.subr.bf16.mxu0 0
    %490 = vmatpush1.bf16.msra.mxu0 0
    %491 = vmatprep.subr.bf16.mxu0 0
    %492 = vmatpush1.bf16.msra.mxu0 0
    %493 = vmatprep.mubr.bf16.mxu0 0
    %494 = vmatmul.mubr.bf16.gmra.mrb[0].mxu0 %v453
    %v495 = vpop.f32.mrb[0].mxu0
    %v496 = vadd.f32 %v446, %v495
    %v497 = vpop.f32.mrb[0].mxu0
    %v498 = vadd.f32 %v448, %v497
    %v499 = vpop.f32.mrb[0].mxu0
    %v500 = vpop.f32.mrb[0].mxu0
    %501 = vdwg.mxu0
    %s502 = scalar_lea.vmem %s5, 8
    %v503 = vld [vmem:[%s502] sm:$0xf]
    %v505 = vsel %vm400, %v503, 0
    %v508 = vsel %vm404, %v393, 0
    %v511 = vsel %vm404, %v394, 0
    %513 = vmatprep.subr.bf16.mxu0 %v511
    %514 = vmatpush1.bf16.msra.mxu0 %v508
    %515 = vmatprep.subr.bf16.mxu0 0
    %516 = vmatpush1.bf16.msra.mxu0 0
    %517 = vmatprep.subr.bf16.mxu0 0
    %518 = vmatpush1.bf16.msra.mxu0 0
    %519 = vmatprep.subr.bf16.mxu0 0
    %520 = vmatpush1.bf16.msra.mxu0 0
    %521 = vmatprep.subr.bf16.mxu0 0
    %522 = vmatpush1.bf16.msra.mxu0 0
    %523 = vmatprep.subr.bf16.mxu0 0
    %524 = vmatpush1.bf16.msra.mxu0 0
    %525 = vmatprep.subr.bf16.mxu0 0
    %526 = vmatpush1.bf16.msra.mxu0 0
    %527 = vmatprep.subr.bf16.mxu0 0
    %528 = vmatpush1.bf16.msra.mxu0 0
    %529 = vmatprep.subr.bf16.mxu0 0
    %530 = vmatpush1.bf16.msra.mxu0 0
    %531 = vmatprep.subr.bf16.mxu0 0
    %532 = vmatpush1.bf16.msra.mxu0 0
    %533 = vmatprep.subr.bf16.mxu0 0
    %534 = vmatpush1.bf16.msra.mxu0 0
    %535 = vmatprep.subr.bf16.mxu0 0
    %536 = vmatpush1.bf16.msra.mxu0 0
    %537 = vmatprep.subr.bf16.mxu0 0
    %538 = vmatpush1.bf16.msra.mxu0 0
    %539 = vmatprep.subr.bf16.mxu0 0
    %540 = vmatpush1.bf16.msra.mxu0 0
    %541 = vmatprep.subr.bf16.mxu0 0
    %542 = vmatpush1.bf16.msra.mxu0 0
    %543 = vmatprep.subr.bf16.mxu0 0
    %544 = vmatpush1.bf16.msra.mxu0 0
    %545 = vmatprep.mubr.bf16.mxu0 0
    %546 = vmatmul.mubr.bf16.gmra.mrb[0].mxu0 %v505
    %v547 = vpop.f32.mrb[0].mxu0
    %v548 = vadd.f32 0.0, %v547
    %v549 = vpop.f32.mrb[0].mxu0
    %v550 = vadd.f32 0.0, %v549
    %v551 = vpop.f32.mrb[0].mxu0
    %v552 = vpop.f32.mrb[0].mxu0
    %553 = vdwg.mxu0
    %v554 = vadd.f32 %v496, %v548
    %v555 = vadd.f32 %v498, %v550
    %s556 = scalar_lea.vmem %s5, 12
    %v557 = vld [vmem:[%s556] sm:$0xf]
    %v559 = vsel %vm400, %v557, 0
    %v562 = vsel %vm404, %v395, 0
    %v565 = vsel %vm404, %v396, 0
    %567 = vmatprep.subr.bf16.mxu0 %v565
    %568 = vmatpush1.bf16.msra.mxu0 %v562
    %569 = vmatprep.subr.bf16.mxu0 0
    %570 = vmatpush1.bf16.msra.mxu0 0
    %571 = vmatprep.subr.bf16.mxu0 0
    %572 = vmatpush1.bf16.msra.mxu0 0
    %573 = vmatprep.subr.bf16.mxu0 0
    %574 = vmatpush1.bf16.msra.mxu0 0
    %575 = vmatprep.subr.bf16.mxu0 0
    %576 = vmatpush1.bf16.msra.mxu0 0
    %577 = vmatprep.subr.bf16.mxu0 0
    %578 = vmatpush1.bf16.msra.mxu0 0
    %579 = vmatprep.subr.bf16.mxu0 0
    %580 = vmatpush1.bf16.msra.mxu0 0
    %581 = vmatprep.subr.bf16.mxu0 0
    %582 = vmatpush1.bf16.msra.mxu0 0
    %583 = vmatprep.subr.bf16.mxu0 0
    %584 = vmatpush1.bf16.msra.mxu0 0
    %585 = vmatprep.subr.bf16.mxu0 0
    %586 = vmatpush1.bf16.msra.mxu0 0
    %587 = vmatprep.subr.bf16.mxu0 0
    %588 = vmatpush1.bf16.msra.mxu0 0
    %589 = vmatprep.subr.bf16.mxu0 0
    %590 = vmatpush1.bf16.msra.mxu0 0
    %591 = vmatprep.subr.bf16.mxu0 0
    %592 = vmatpush1.bf16.msra.mxu0 0
    %593 = vmatprep.subr.bf16.mxu0 0
    %594 = vmatpush1.bf16.msra.mxu0 0
    %595 = vmatprep.subr.bf16.mxu0 0
    %596 = vmatpush1.bf16.msra.mxu0 0
    %597 = vmatprep.subr.bf16.mxu0 0
    %598 = vmatpush1.bf16.msra.mxu0 0
    %599 = vmatprep.mubr.bf16.mxu0 0
    %600 = vmatmul.mubr.bf16.gmra.mrb[0].mxu0 %v559
    %v601 = vpop.f32.mrb[0].mxu0
    %v602 = vadd.f32 0.0, %v601
    %v603 = vpop.f32.mrb[0].mxu0
    %v604 = vadd.f32 0.0, %v603
    %v605 = vpop.f32.mrb[0].mxu0
    %v606 = vpop.f32.mrb[0].mxu0
    %607 = vdwg.mxu0
    %v608 = vadd.f32 %v554, %v602
    %v609 = vadd.f32 %v555, %v604
    %v610 = vrot.slane %v608, 4
    %v611 = vadd.f32 %v608, %v610
    %v612 = vrot.slane %v611, 2
    %v613 = vadd.f32 %v611, %v612
    %v614 = vrot.slane %v613, 1
    %v615 = vadd.f32 %v613, %v614
    %v616 = vrot.slane %v609, 4
    %v617 = vadd.f32 %v609, %v616
    %v618 = vrot.slane %v617, 2
    %v619 = vadd.f32 %v617, %v618
    %v620 = vrot.slane %v619, 1
    %v621 = vadd.f32 %v619, %v620
    %v622 = vmul.f32 %v608, %v608
    %v623 = vmul.f32 %v609, %v609
    %v624 = vrot.slane %v622, 4
    %v625 = vadd.f32 %v622, %v624
    %v626 = vrot.slane %v625, 2
    %v627 = vadd.f32 %v625, %v626
    %v628 = vrot.slane %v627, 1
    %v629 = vadd.f32 %v627, %v628
    %v630 = vrot.slane %v623, 4
    %v631 = vadd.f32 %v623, %v630
    %v632 = vrot.slane %v631, 2
    %v633 = vadd.f32 %v631, %v632
    %v634 = vrot.slane %v633, 1
    %v635 = vadd.f32 %v633, %v634
    %v636 = vsel %vm404, %v615, %v629
    %v637 = vsel %vm404, %v621, %v635
    %v638 = vld [vmem:[%s9] sm:$0xff]
    %v639 = vld [vmem:[%s9 + $0x8] sm:$0xff]
    %v640 = vld [vmem:[%s9 + $0x10] sm:$0xff]
    %v641 = vld [vmem:[%s9 + $0x18] sm:$0xff]
    %v642 = vld [vmem:[%s9 + $0x20] sm:$0xff]
    %v643 = vld [vmem:[%s9 + $0x28] sm:$0xff]
    %v644 = vld [vmem:[%s9 + $0x30] sm:$0xff]
    %v645 = vld [vmem:[%s9 + $0x38] sm:$0xff]
    %v646 = vld [vmem:[%s9 + $0x40] sm:$0xff]
    %v647 = vld [vmem:[%s9 + $0x48] sm:$0xff]
    %v648 = vld [vmem:[%s9 + $0x50] sm:$0xff]
    %v649 = vld [vmem:[%s9 + $0x58] sm:$0xff]
    %v650 = vld [vmem:[%s9 + $0x60] sm:$0xff]
    %v651 = vld [vmem:[%s9 + $0x68] sm:$0xff]
    %v652 = vld [vmem:[%s9 + $0x70] sm:$0xff]
    %v653 = vld [vmem:[%s9 + $0x78] sm:$0xff]
    %v654 = vld [vmem:[%s9 + $0x80] sm:$0xff]
    %v655 = vld [vmem:[%s9 + $0x88] sm:$0xff]
    %v656 = vld [vmem:[%s9 + $0x90] sm:$0xff]
    %v657 = vld [vmem:[%s9 + $0x98] sm:$0xff]
    %v658 = vld [vmem:[%s9 + $0xa0] sm:$0xff]
    %v659 = vld [vmem:[%s9 + $0xa8] sm:$0xff]
    %v660 = vld [vmem:[%s9 + $0xb0] sm:$0xff]
    %v661 = vld [vmem:[%s9 + $0xb8] sm:$0xff]
    %v662 = vld [vmem:[%s9 + $0xc0] sm:$0xff]
    %v663 = vld [vmem:[%s9 + $0xc8] sm:$0xff]
    %v664 = vld [vmem:[%s9 + $0xd0] sm:$0xff]
    %v665 = vld [vmem:[%s9 + $0xd8] sm:$0xff]
    %v666 = vld [vmem:[%s9 + $0xe0] sm:$0xff]
    %v667 = vld [vmem:[%s9 + $0xe8] sm:$0xff]
    %v668 = vld [vmem:[%s9 + $0xf0] sm:$0xff]
    %v669 = vld [vmem:[%s9 + $0xf8] sm:$0xff]
    %670 = vmatprep.subr.mxu0 0.0
    %671 = vmatpush1.msra.mxu0 %v638
    %672 = vmatprep.subr.mxu0 0.0
    %673 = vmatpush1.msra.mxu0 %v639
    %674 = vmatprep.subr.mxu0 0.0
    %675 = vmatpush1.msra.mxu0 %v640
    %676 = vmatprep.subr.mxu0 0.0
    %677 = vmatpush1.msra.mxu0 %v641
    %678 = vmatprep.subr.mxu0 0.0
    %679 = vmatpush1.msra.mxu0 %v642
    %680 = vmatprep.subr.mxu0 0.0
    %681 = vmatpush1.msra.mxu0 %v643
    %682 = vmatprep.subr.mxu0 0.0
    %683 = vmatpush1.msra.mxu0 %v644
    %684 = vmatprep.subr.mxu0 0.0
    %685 = vmatpush1.msra.mxu0 %v645
    %686 = vmatprep.subr.mxu0 0.0
    %687 = vmatpush1.msra.mxu0 %v646
    %688 = vmatprep.subr.mxu0 0.0
    %689 = vmatpush1.msra.mxu0 %v647
    %690 = vmatprep.subr.mxu0 0.0
    %691 = vmatpush1.msra.mxu0 %v648
    %692 = vmatprep.subr.mxu0 0.0
    %693 = vmatpush1.msra.mxu0 %v649
    %694 = vmatprep.subr.mxu0 0.0
    %695 = vmatpush1.msra.mxu0 %v650
    %696 = vmatprep.subr.mxu0 0.0
    %697 = vmatpush1.msra.mxu0 %v651
    %698 = vmatprep.subr.mxu0 0.0
    %699 = vmatpush1.msra.mxu0 %v652
    %700 = vmatprep.subr.mxu0 0.0
    %701 = vmatpush1.msra.mxu0 %v653
    %702 = vmatprep.subr.mxu0 0.0
    %703 = vmatpush1.msra.mxu0 %v654
    %704 = vmatprep.subr.mxu0 0.0
    %705 = vmatpush1.msra.mxu0 %v655
    %706 = vmatprep.subr.mxu0 0.0
    %707 = vmatpush1.msra.mxu0 %v656
    %708 = vmatprep.subr.mxu0 0.0
    %709 = vmatpush1.msra.mxu0 %v657
    %710 = vmatprep.subr.mxu0 0.0
    %711 = vmatpush1.msra.mxu0 %v658
    %712 = vmatprep.subr.mxu0 0.0
    %713 = vmatpush1.msra.mxu0 %v659
    %714 = vmatprep.subr.mxu0 0.0
    %715 = vmatpush1.msra.mxu0 %v660
    %716 = vmatprep.subr.mxu0 0.0
    %717 = vmatpush1.msra.mxu0 %v661
    %718 = vmatprep.subr.mxu0 0.0
    %719 = vmatpush1.msra.mxu0 %v662
    %720 = vmatprep.subr.mxu0 0.0
    %721 = vmatpush1.msra.mxu0 %v663
    %722 = vmatprep.subr.mxu0 0.0
    %723 = vmatpush1.msra.mxu0 %v664
    %724 = vmatprep.subr.mxu0 0.0
    %725 = vmatpush1.msra.mxu0 %v665
    %726 = vmatprep.subr.mxu0 0.0
    %727 = vmatpush1.msra.mxu0 %v666
    %728 = vmatprep.subr.mxu0 0.0
    %729 = vmatpush1.msra.mxu0 %v667
    %730 = vmatprep.subr.mxu0 0.0
    %731 = vmatpush1.msra.mxu0 %v668
    %732 = vmatprep.subr.mxu0 0.0
    %733 = vmatpush1.msra.mxu0 %v669
    %734 = vmatprep.mubr.f32.mxu0 %v637
    %735 = vmatmul.mubr.f32.gmra.mrb[0].mxu0 %v636
    %v736 = vpop.f32.mrb[0].mxu0
    %v737 = vadd.f32 0.0, %v736
    %v738 = vpop.f32.mrb[0].mxu0
    %739 = vdwg.mxu0
    %v740 = vmul.f32 %v737, 0.03125
    %v741 = vmul.f32 %v740, %v740
    %v743 = vrot.slane %v741, 7
    %v745 = vsub.f32 %v740, %v743
    %v746 = vmax.f32 %v745, 0.0
    %v747 = vld [vmem:[#allocation9] sm:$0x3]
    %v748 = vadd.f32 %v746, 1e-05
    %v749 = vrsqrt.pop %v748
    %v751 = vrot.slane %v749, 1
    %v753 = vmul.f32 %v747, %v751
    %v754 = vmul.f32 %v740, %v753
    %v756 = vrot.slane %v754, 7
    %v758 = vsub.f32 %v747, %v756
    %v759 = vsel %vm404, %v753, %v758
    %v760 = vld [vmem:[%s13] sm:$0xff]
    %v761 = vld [vmem:[%s13 + $0x8] sm:$0xff]
    %v762 = vld [vmem:[%s13 + $0x10] sm:$0xff]
    %v763 = vld [vmem:[%s13 + $0x18] sm:$0xff]
    %v764 = vld [vmem:[%s13 + $0x20] sm:$0xff]
    %v765 = vld [vmem:[%s13 + $0x28] sm:$0xff]
    %v766 = vld [vmem:[%s13 + $0x30] sm:$0xff]
    %v767 = vld [vmem:[%s13 + $0x38] sm:$0xff]
    %v768 = vld [vmem:[%s13 + $0x40] sm:$0xff]
    %v769 = vld [vmem:[%s13 + $0x48] sm:$0xff]
    %v770 = vld [vmem:[%s13 + $0x50] sm:$0xff]
    %v771 = vld [vmem:[%s13 + $0x58] sm:$0xff]
    %v772 = vld [vmem:[%s13 + $0x60] sm:$0xff]
    %v773 = vld [vmem:[%s13 + $0x68] sm:$0xff]
    %v774 = vld [vmem:[%s13 + $0x70] sm:$0xff]
    %v775 = vld [vmem:[%s13 + $0x78] sm:$0xff]
    %vm776 = vcmask 523264
    %v778 = vsel %vm776, %v759, 0
    %780 = vmatprep.subr.mxu0 %v761
    %781 = vmatpush1.msra.mxu0 %v760
    %782 = vmatprep.subr.mxu0 %v763
    %783 = vmatpush1.msra.mxu0 %v762
    %784 = vmatprep.subr.mxu0 %v765
    %785 = vmatpush1.msra.mxu0 %v764
    %786 = vmatprep.subr.mxu0 %v767
    %787 = vmatpush1.msra.mxu0 %v766
    %788 = vmatprep.subr.mxu0 %v769
    %789 = vmatpush1.msra.mxu0 %v768
    %790 = vmatprep.subr.mxu0 %v771
    %791 = vmatpush1.msra.mxu0 %v770
    %792 = vmatprep.subr.mxu0 %v773
    %793 = vmatpush1.msra.mxu0 %v772
    %794 = vmatprep.subr.mxu0 %v775
    %795 = vmatpush1.msra.mxu0 %v774
    %796 = vmatprep.subr.mxu0 0.0
    %797 = vmatpush1.msra.mxu0 0.0
    %798 = vmatprep.subr.mxu0 0.0
    %799 = vmatpush1.msra.mxu0 0.0
    %800 = vmatprep.subr.mxu0 0.0
    %801 = vmatpush1.msra.mxu0 0.0
    %802 = vmatprep.subr.mxu0 0.0
    %803 = vmatpush1.msra.mxu0 0.0
    %804 = vmatprep.subr.mxu0 0.0
    %805 = vmatpush1.msra.mxu0 0.0
    %806 = vmatprep.subr.mxu0 0.0
    %807 = vmatpush1.msra.mxu0 0.0
    %808 = vmatprep.subr.mxu0 0.0
    %809 = vmatpush1.msra.mxu0 0.0
    %810 = vmatprep.subr.mxu0 0.0
    %811 = vmatpush1.msra.mxu0 0.0
    %812 = vmatprep.subr.mxu0 0.0
    %813 = vmatpush1.msra.mxu0 0.0
    %814 = vmatprep.subr.mxu0 0.0
    %815 = vmatpush1.msra.mxu0 0.0
    %816 = vmatprep.subr.mxu0 0.0
    %817 = vmatpush1.msra.mxu0 0.0
    %818 = vmatprep.subr.mxu0 0.0
    %819 = vmatpush1.msra.mxu0 0.0
    %820 = vmatprep.subr.mxu0 0.0
    %821 = vmatpush1.msra.mxu0 0.0
    %822 = vmatprep.subr.mxu0 0.0
    %823 = vmatpush1.msra.mxu0 0.0
    %824 = vmatprep.subr.mxu0 0.0
    %825 = vmatpush1.msra.mxu0 0.0
    %826 = vmatprep.subr.mxu0 0.0
    %827 = vmatpush1.msra.mxu0 0.0
    %828 = vmatprep.subr.mxu0 0.0
    %829 = vmatpush1.msra.mxu0 0.0
    %830 = vmatprep.subr.mxu0 0.0
    %831 = vmatpush1.msra.mxu0 0.0
    %832 = vmatprep.subr.mxu0 0.0
    %833 = vmatpush1.msra.mxu0 0.0
    %834 = vmatprep.subr.mxu0 0.0
    %835 = vmatpush1.msra.mxu0 0.0
    %836 = vmatprep.subr.mxu0 0.0
    %837 = vmatpush1.msra.mxu0 0.0
    %838 = vmatprep.subr.mxu0 0.0
    %839 = vmatpush1.msra.mxu0 0.0
    %840 = vmatprep.subr.mxu0 0.0
    %841 = vmatpush1.msra.mxu0 0.0
    %842 = vmatprep.subr.mxu0 0.0
    %843 = vmatpush1.msra.mxu0 0.0
    %844 = vmatprep.mubr.f32.mxu0 0.0
    %845 = vmatmul.mubr.f32.gmra.mrb[0].mxu0 %v778
    %v846 = vpop.f32.mrb[0].mxu0
    %v847 = vadd.f32 0.0, %v846
    %v848 = vpop.f32.mrb[0].mxu0
    %v849 = vadd.f32 0.0, %v848
    %850 = vdwg.mxu0
    %v851 = vlaneseq
    %v852 = vshrl.u32 %v851, 7
    %v853 = vsub.s32 0, %v852
    %v854 = vrot.slane %v847, %v853
    %v855 = vlaneseq
    %v856 = vshrl.u32 %v855, 7
    %v857 = vsub.s32 0, %v856
    %v858 = vrot.slane %v849, %v857
    %v859 = vmul.f32 %v608, %v854
    %v860 = vmul.f32 %v609, %v858
    %v861 = vlaneseq
    %v862 = vshrl.u32 %v861, 7
    %v863 = vsub.s32 1, %v862
    %v864 = vrot.slane %v847, %v863
    %v865 = vlaneseq
    %v866 = vshrl.u32 %v865, 7
    %v867 = vsub.s32 1, %v866
    %v868 = vrot.slane %v849, %v867
    %v869 = vadd.f32 %v859, %v864
    %v870 = vadd.f32 %v860, %v868
    %v871 = vmax.f32 %v869, 0.0
    %v872 = vmax.f32 %v870, 0.0
    %v873 = vpack.c.bf16 %v871, %v871
    %v874 = vpack.c.bf16 %v872, %v872
    %v875 = vld [vmem:[%s2] sm:$0xff]
    %v876 = vld [vmem:[%s2 + $0x8] sm:$0xff]
    %v877 = vld [vmem:[%s2 + $0x10] sm:$0xff]
    %v878 = vld [vmem:[%s2 + $0x18] sm:$0xff]
    %v879 = vld [vmem:[%s2 + $0x20] sm:$0xff]
    %v880 = vld [vmem:[%s2 + $0x28] sm:$0xff]
    %v881 = vld [vmem:[%s2 + $0x30] sm:$0xff]
    %v882 = vld [vmem:[%s2 + $0x38] sm:$0xff]
    %v883 = vld [vmem:[%s2 + $0x40] sm:$0xff]
    %v884 = vld [vmem:[%s2 + $0x48] sm:$0xff]
    %v885 = vld [vmem:[%s2 + $0x50] sm:$0xff]
    %v886 = vld [vmem:[%s2 + $0x58] sm:$0xff]
    %v887 = vld [vmem:[%s2 + $0x60] sm:$0xff]
    %v888 = vld [vmem:[%s2 + $0x68] sm:$0xff]
    %v889 = vld [vmem:[%s2 + $0x70] sm:$0xff]
    %v890 = vld [vmem:[%s2 + $0x78] sm:$0xff]
    %v891 = vld [vmem:[%s2 + $0x80] sm:$0xff]
    %v892 = vld [vmem:[%s2 + $0x88] sm:$0xff]
    %v893 = vld [vmem:[%s2 + $0x90] sm:$0xff]
    %v894 = vld [vmem:[%s2 + $0x98] sm:$0xff]
    %v895 = vld [vmem:[%s2 + $0xa0] sm:$0xff]
    %v896 = vld [vmem:[%s2 + $0xa8] sm:$0xff]
    %v897 = vld [vmem:[%s2 + $0xb0] sm:$0xff]
    %v898 = vld [vmem:[%s2 + $0xb8] sm:$0xff]
    %v899 = vld [vmem:[%s2 + $0xc0] sm:$0xff]
    %v900 = vld [vmem:[%s2 + $0xc8] sm:$0xff]
    %v901 = vld [vmem:[%s2 + $0xd0] sm:$0xff]
    %v902 = vld [vmem:[%s2 + $0xd8] sm:$0xff]
    %v903 = vld [vmem:[%s2 + $0xe0] sm:$0xff]
    %v904 = vld [vmem:[%s2 + $0xe8] sm:$0xff]
    %v905 = vld [vmem:[%s2 + $0xf0] sm:$0xff]
    %v906 = vld [vmem:[%s2 + $0xf8] sm:$0xff]
    %v907 = vld [vmem:[%s2 + $0x100] sm:$0xff]
    %v908 = vld [vmem:[%s2 + $0x108] sm:$0xff]
    %v909 = vld [vmem:[%s2 + $0x110] sm:$0xff]
    %v910 = vld [vmem:[%s2 + $0x118] sm:$0xff]
    %v911 = vld [vmem:[%s2 + $0x120] sm:$0xff]
    %v912 = vld [vmem:[%s2 + $0x128] sm:$0xff]
    %v913 = vld [vmem:[%s2 + $0x130] sm:$0xff]
    %v914 = vld [vmem:[%s2 + $0x138] sm:$0xff]
    %v915 = vld [vmem:[%s2 + $0x140] sm:$0xff]
    %v916 = vld [vmem:[%s2 + $0x148] sm:$0xff]
    %v917 = vld [vmem:[%s2 + $0x150] sm:$0xff]
    %v918 = vld [vmem:[%s2 + $0x158] sm:$0xff]
    %v919 = vld [vmem:[%s2 + $0x160] sm:$0xff]
    %v920 = vld [vmem:[%s2 + $0x168] sm:$0xff]
    %v921 = vld [vmem:[%s2 + $0x170] sm:$0xff]
    %v922 = vld [vmem:[%s2 + $0x178] sm:$0xff]
    %v923 = vld [vmem:[%s2 + $0x180] sm:$0xff]
    %v924 = vld [vmem:[%s2 + $0x188] sm:$0xff]
    %v925 = vld [vmem:[%s2 + $0x190] sm:$0xff]
    %v926 = vld [vmem:[%s2 + $0x198] sm:$0xff]
    %v927 = vld [vmem:[%s2 + $0x1a0] sm:$0xff]
    %v928 = vld [vmem:[%s2 + $0x1a8] sm:$0xff]
    %v929 = vld [vmem:[%s2 + $0x1b0] sm:$0xff]
    %v930 = vld [vmem:[%s2 + $0x1b8] sm:$0xff]
    %v931 = vld [vmem:[%s2 + $0x1c0] sm:$0xff]
    %v932 = vld [vmem:[%s2 + $0x1c8] sm:$0xff]
    %v933 = vld [vmem:[%s2 + $0x1d0] sm:$0xff]
    %v934 = vld [vmem:[%s2 + $0x1d8] sm:$0xff]
    %v935 = vld [vmem:[%s2 + $0x1e0] sm:$0xff]
    %v936 = vld [vmem:[%s2 + $0x1e8] sm:$0xff]
    %v937 = vld [vmem:[%s2 + $0x1f0] sm:$0xff]
    %v938 = vld [vmem:[%s2 + $0x1f8] sm:$0xff]
    %v939 = vld [vmem:[%s2 + $0x200] sm:$0xff]
    %v940 = vld [vmem:[%s2 + $0x208] sm:$0xff]
    %v941 = vld [vmem:[%s2 + $0x210] sm:$0xff]
    %v942 = vld [vmem:[%s2 + $0x218] sm:$0xff]
    %v943 = vld [vmem:[%s2 + $0x220] sm:$0xff]
    %v944 = vld [vmem:[%s2 + $0x228] sm:$0xff]
    %v945 = vld [vmem:[%s2 + $0x230] sm:$0xff]
    %v946 = vld [vmem:[%s2 + $0x238] sm:$0xff]
    %v947 = vld [vmem:[%s2 + $0x240] sm:$0xff]
    %v948 = vld [vmem:[%s2 + $0x248] sm:$0xff]
    %v949 = vld [vmem:[%s2 + $0x250] sm:$0xff]
    %v950 = vld [vmem:[%s2 + $0x258] sm:$0xff]
    %v951 = vld [vmem:[%s2 + $0x260] sm:$0xff]
    %v952 = vld [vmem:[%s2 + $0x268] sm:$0xff]
    %v953 = vld [vmem:[%s2 + $0x270] sm:$0xff]
    %v954 = vld [vmem:[%s2 + $0x278] sm:$0xff]
    %v955 = vld [vmem:[%s2 + $0x280] sm:$0xff]
    %v956 = vld [vmem:[%s2 + $0x288] sm:$0xff]
    %v957 = vld [vmem:[%s2 + $0x290] sm:$0xff]
    %v958 = vld [vmem:[%s2 + $0x298] sm:$0xff]
    %v959 = vld [vmem:[%s2 + $0x2a0] sm:$0xff]
    %v960 = vld [vmem:[%s2 + $0x2a8] sm:$0xff]
    %v961 = vld [vmem:[%s2 + $0x2b0] sm:$0xff]
    %v962 = vld [vmem:[%s2 + $0x2b8] sm:$0xff]
    %v963 = vld [vmem:[%s2 + $0x2c0] sm:$0xff]
    %v964 = vld [vmem:[%s2 + $0x2c8] sm:$0xff]
    %v965 = vld [vmem:[%s2 + $0x2d0] sm:$0xff]
    %v966 = vld [vmem:[%s2 + $0x2d8] sm:$0xff]
    %v967 = vld [vmem:[%s2 + $0x2e0] sm:$0xff]
    %v968 = vld [vmem:[%s2 + $0x2e8] sm:$0xff]
    %v969 = vld [vmem:[%s2 + $0x2f0] sm:$0xff]
    %v970 = vld [vmem:[%s2 + $0x2f8] sm:$0xff]
    %v971 = vld [vmem:[%s2 + $0x300] sm:$0xff]
    %v972 = vld [vmem:[%s2 + $0x308] sm:$0xff]
    %v973 = vld [vmem:[%s2 + $0x310] sm:$0xff]
    %v974 = vld [vmem:[%s2 + $0x318] sm:$0xff]
    %v975 = vld [vmem:[%s2 + $0x320] sm:$0xff]
    %v976 = vld [vmem:[%s2 + $0x328] sm:$0xff]
    %v977 = vld [vmem:[%s2 + $0x330] sm:$0xff]
    %v978 = vld [vmem:[%s2 + $0x338] sm:$0xff]
    %v979 = vld [vmem:[%s2 + $0x340] sm:$0xff]
    %v980 = vld [vmem:[%s2 + $0x348] sm:$0xff]
    %v981 = vld [vmem:[%s2 + $0x350] sm:$0xff]
    %v982 = vld [vmem:[%s2 + $0x358] sm:$0xff]
    %v983 = vld [vmem:[%s2 + $0x360] sm:$0xff]
    %v984 = vld [vmem:[%s2 + $0x368] sm:$0xff]
    %v985 = vld [vmem:[%s2 + $0x370] sm:$0xff]
    %v986 = vld [vmem:[%s2 + $0x378] sm:$0xff]
    %v987 = vld [vmem:[%s2 + $0x380] sm:$0xff]
    %v988 = vld [vmem:[%s2 + $0x388] sm:$0xff]
    %v989 = vld [vmem:[%s2 + $0x390] sm:$0xff]
    %v990 = vld [vmem:[%s2 + $0x398] sm:$0xff]
    %v991 = vld [vmem:[%s2 + $0x3a0] sm:$0xff]
    %v992 = vld [vmem:[%s2 + $0x3a8] sm:$0xff]
    %v993 = vld [vmem:[%s2 + $0x3b0] sm:$0xff]
    %v994 = vld [vmem:[%s2 + $0x3b8] sm:$0xff]
    %v995 = vld [vmem:[%s2 + $0x3c0] sm:$0xff]
    %v996 = vld [vmem:[%s2 + $0x3c8] sm:$0xff]
    %v997 = vld [vmem:[%s2 + $0x3d0] sm:$0xff]
    %v998 = vld [vmem:[%s2 + $0x3d8] sm:$0xff]
    %v999 = vld [vmem:[%s2 + $0x3e0] sm:$0xff]
    %v1000 = vld [vmem:[%s2 + $0x3e8] sm:$0xff]
    %v1001 = vld [vmem:[%s2 + $0x3f0] sm:$0xff]
    %v1002 = vld [vmem:[%s2 + $0x3f8] sm:$0xff]
    %v1131 = vunpack.c.l.b16 %v875
    %v1132 = vunpack.c.h.b16 %v875
    %v1133 = vunpack.c.l.b16 %v876
    %v1134 = vunpack.c.h.b16 %v876
    %v1135 = vunpack.c.l.b16 %v877
    %v1136 = vunpack.c.h.b16 %v877
    %v1137 = vunpack.c.l.b16 %v878
    %v1138 = vunpack.c.h.b16 %v878
    %v1139 = vunpack.c.l.b16 %v879
    %v1140 = vunpack.c.h.b16 %v879
    %v1141 = vunpack.c.l.b16 %v880
    %v1142 = vunpack.c.h.b16 %v880
    %v1143 = vunpack.c.l.b16 %v881
    %v1144 = vunpack.c.h.b16 %v881
    %v1145 = vunpack.c.l.b16 %v882
    %v1146 = vunpack.c.h.b16 %v882
    %v1147 = vunpack.c.l.b16 %v883
    %v1148 = vunpack.c.h.b16 %v883
    %v1149 = vunpack.c.l.b16 %v884
    %v1150 = vunpack.c.h.b16 %v884
    %v1151 = vunpack.c.l.b16 %v885
    %v1152 = vunpack.c.h.b16 %v885
    %v1153 = vunpack.c.l.b16 %v886
    %v1154 = vunpack.c.h.b16 %v886
    %v1155 = vunpack.c.l.b16 %v887
    %v1156 = vunpack.c.h.b16 %v887
    %v1157 = vunpack.c.l.b16 %v888
    %v1158 = vunpack.c.h.b16 %v888
    %v1159 = vunpack.c.l.b16 %v889
    %v1160 = vunpack.c.h.b16 %v889
    %v1161 = vunpack.c.l.b16 %v890
    %v1162 = vunpack.c.h.b16 %v890
    %v1163 = vunpack.c.l.b16 %v891
    %v1164 = vunpack.c.h.b16 %v891
    %v1165 = vunpack.c.l.b16 %v892
    %v1166 = vunpack.c.h.b16 %v892
    %v1167 = vunpack.c.l.b16 %v893
    %v1168 = vunpack.c.h.b16 %v893
    %v1169 = vunpack.c.l.b16 %v894
    %v1170 = vunpack.c.h.b16 %v894
    %v1171 = vunpack.c.l.b16 %v895
    %v1172 = vunpack.c.h.b16 %v895
    %v1173 = vunpack.c.l.b16 %v896
    %v1174 = vunpack.c.h.b16 %v896
    %v1175 = vunpack.c.l.b16 %v897
    %v1176 = vunpack.c.h.b16 %v897
    %v1177 = vunpack.c.l.b16 %v898
    %v1178 = vunpack.c.h.b16 %v898
    %v1179 = vunpack.c.l.b16 %v899
    %v1180 = vunpack.c.h.b16 %v899
    %v1181 = vunpack.c.l.b16 %v900
    %v1182 = vunpack.c.h.b16 %v900
    %v1183 = vunpack.c.l.b16 %v901
    %v1184 = vunpack.c.h.b16 %v901
    %v1185 = vunpack.c.l.b16 %v902
    %v1186 = vunpack.c.h.b16 %v902
    %v1187 = vunpack.c.l.b16 %v903
    %v1188 = vunpack.c.h.b16 %v903
    %v1189 = vunpack.c.l.b16 %v904
    %v1190 = vunpack.c.h.b16 %v904
    %v1191 = vunpack.c.l.b16 %v905
    %v1192 = vunpack.c.h.b16 %v905
    %v1193 = vunpack.c.l.b16 %v906
    %v1194 = vunpack.c.h.b16 %v906
    %v1195 = vunpack.c.l.b16 %v907
    %v1196 = vunpack.c.h.b16 %v907
    %v1197 = vunpack.c.l.b16 %v908
    %v1198 = vunpack.c.h.b16 %v908
    %v1199 = vunpack.c.l.b16 %v909
    %v1200 = vunpack.c.h.b16 %v909
    %v1201 = vunpack.c.l.b16 %v910
    %v1202 = vunpack.c.h.b16 %v910
    %v1203 = vunpack.c.l.b16 %v911
    %v1204 = vunpack.c.h.b16 %v911
    %v1205 = vunpack.c.l.b16 %v912
    %v1206 = vunpack.c.h.b16 %v912
    %v1207 = vunpack.c.l.b16 %v913
    %v1208 = vunpack.c.h.b16 %v913
    %v1209 = vunpack.c.l.b16 %v914
    %v1210 = vunpack.c.h.b16 %v914
    %v1211 = vunpack.c.l.b16 %v915
    %v1212 = vunpack.c.h.b16 %v915
    %v1213 = vunpack.c.l.b16 %v916
    %v1214 = vunpack.c.h.b16 %v916
    %v1215 = vunpack.c.l.b16 %v917
    %v1216 = vunpack.c.h.b16 %v917
    %v1217 = vunpack.c.l.b16 %v918
    %v1218 = vunpack.c.h.b16 %v918
    %v1219 = vunpack.c.l.b16 %v919
    %v1220 = vunpack.c.h.b16 %v919
    %v1221 = vunpack.c.l.b16 %v920
    %v1222 = vunpack.c.h.b16 %v920
    %v1223 = vunpack.c.l.b16 %v921
    %v1224 = vunpack.c.h.b16 %v921
    %v1225 = vunpack.c.l.b16 %v922
    %v1226 = vunpack.c.h.b16 %v922
    %v1227 = vunpack.c.l.b16 %v923
    %v1228 = vunpack.c.h.b16 %v923
    %v1229 = vunpack.c.l.b16 %v924
    %v1230 = vunpack.c.h.b16 %v924
    %v1231 = vunpack.c.l.b16 %v925
    %v1232 = vunpack.c.h.b16 %v925
    %v1233 = vunpack.c.l.b16 %v926
    %v1234 = vunpack.c.h.b16 %v926
    %v1235 = vunpack.c.l.b16 %v927
    %v1236 = vunpack.c.h.b16 %v927
    %v1237 = vunpack.c.l.b16 %v928
    %v1238 = vunpack.c.h.b16 %v928
    %v1239 = vunpack.c.l.b16 %v929
    %v1240 = vunpack.c.h.b16 %v929
    %v1241 = vunpack.c.l.b16 %v930
    %v1242 = vunpack.c.h.b16 %v930
    %v1243 = vunpack.c.l.b16 %v931
    %v1244 = vunpack.c.h.b16 %v931
    %v1245 = vunpack.c.l.b16 %v932
    %v1246 = vunpack.c.h.b16 %v932
    %v1247 = vunpack.c.l.b16 %v933
    %v1248 = vunpack.c.h.b16 %v933
    %v1249 = vunpack.c.l.b16 %v934
    %v1250 = vunpack.c.h.b16 %v934
    %v1251 = vunpack.c.l.b16 %v935
    %v1252 = vunpack.c.h.b16 %v935
    %v1253 = vunpack.c.l.b16 %v936
    %v1254 = vunpack.c.h.b16 %v936
    %v1255 = vunpack.c.l.b16 %v937
    %v1256 = vunpack.c.h.b16 %v937
    %v1257 = vunpack.c.l.b16 %v938
    %v1258 = vunpack.c.h.b16 %v938
    %v1259 = vunpack.c.l.b16 %v939
    %v1260 = vunpack.c.h.b16 %v939
    %v1261 = vunpack.c.l.b16 %v940
    %v1262 = vunpack.c.h.b16 %v940
    %v1263 = vunpack.c.l.b16 %v941
    %v1264 = vunpack.c.h.b16 %v941
    %v1265 = vunpack.c.l.b16 %v942
    %v1266 = vunpack.c.h.b16 %v942
    %v1267 = vunpack.c.l.b16 %v943
    %v1268 = vunpack.c.h.b16 %v943
    %v1269 = vunpack.c.l.b16 %v944
    %v1270 = vunpack.c.h.b16 %v944
    %v1271 = vunpack.c.l.b16 %v945
    %v1272 = vunpack.c.h.b16 %v945
    %v1273 = vunpack.c.l.b16 %v946
    %v1274 = vunpack.c.h.b16 %v946
    %v1275 = vunpack.c.l.b16 %v947
    %v1276 = vunpack.c.h.b16 %v947
    %v1277 = vunpack.c.l.b16 %v948
    %v1278 = vunpack.c.h.b16 %v948
    %v1279 = vunpack.c.l.b16 %v949
    %v1280 = vunpack.c.h.b16 %v949
    %v1281 = vunpack.c.l.b16 %v950
    %v1282 = vunpack.c.h.b16 %v950
    %v1283 = vunpack.c.l.b16 %v951
    %v1284 = vunpack.c.h.b16 %v951
    %v1285 = vunpack.c.l.b16 %v952
    %v1286 = vunpack.c.h.b16 %v952
    %v1287 = vunpack.c.l.b16 %v953
    %v1288 = vunpack.c.h.b16 %v953
    %v1289 = vunpack.c.l.b16 %v954
    %v1290 = vunpack.c.h.b16 %v954
    %v1291 = vunpack.c.l.b16 %v955
    %v1292 = vunpack.c.h.b16 %v955
    %v1293 = vunpack.c.l.b16 %v956
    %v1294 = vunpack.c.h.b16 %v956
    %v1295 = vunpack.c.l.b16 %v957
    %v1296 = vunpack.c.h.b16 %v957
    %v1297 = vunpack.c.l.b16 %v958
    %v1298 = vunpack.c.h.b16 %v958
    %v1299 = vunpack.c.l.b16 %v959
    %v1300 = vunpack.c.h.b16 %v959
    %v1301 = vunpack.c.l.b16 %v960
    %v1302 = vunpack.c.h.b16 %v960
    %v1303 = vunpack.c.l.b16 %v961
    %v1304 = vunpack.c.h.b16 %v961
    %v1305 = vunpack.c.l.b16 %v962
    %v1306 = vunpack.c.h.b16 %v962
    %v1307 = vunpack.c.l.b16 %v963
    %v1308 = vunpack.c.h.b16 %v963
    %v1309 = vunpack.c.l.b16 %v964
    %v1310 = vunpack.c.h.b16 %v964
    %v1311 = vunpack.c.l.b16 %v965
    %v1312 = vunpack.c.h.b16 %v965
    %v1313 = vunpack.c.l.b16 %v966
    %v1314 = vunpack.c.h.b16 %v966
    %v1315 = vunpack.c.l.b16 %v967
    %v1316 = vunpack.c.h.b16 %v967
    %v1317 = vunpack.c.l.b16 %v968
    %v1318 = vunpack.c.h.b16 %v968
    %v1319 = vunpack.c.l.b16 %v969
    %v1320 = vunpack.c.h.b16 %v969
    %v1321 = vunpack.c.l.b16 %v970
    %v1322 = vunpack.c.h.b16 %v970
    %v1323 = vunpack.c.l.b16 %v971
    %v1324 = vunpack.c.h.b16 %v971
    %v1325 = vunpack.c.l.b16 %v972
    %v1326 = vunpack.c.h.b16 %v972
    %v1327 = vunpack.c.l.b16 %v973
    %v1328 = vunpack.c.h.b16 %v973
    %v1329 = vunpack.c.l.b16 %v974
    %v1330 = vunpack.c.h.b16 %v974
    %v1331 = vunpack.c.l.b16 %v975
    %v1332 = vunpack.c.h.b16 %v975
    %v1333 = vunpack.c.l.b16 %v976
    %v1334 = vunpack.c.h.b16 %v976
    %v1335 = vunpack.c.l.b16 %v977
    %v1336 = vunpack.c.h.b16 %v977
    %v1337 = vunpack.c.l.b16 %v978
    %v1338 = vunpack.c.h.b16 %v978
    %v1339 = vunpack.c.l.b16 %v979
    %v1340 = vunpack.c.h.b16 %v979
    %v1341 = vunpack.c.l.b16 %v980
    %v1342 = vunpack.c.h.b16 %v980
    %v1343 = vunpack.c.l.b16 %v981
    %v1344 = vunpack.c.h.b16 %v981
    %v1345 = vunpack.c.l.b16 %v982
    %v1346 = vunpack.c.h.b16 %v982
    %v1347 = vunpack.c.l.b16 %v983
    %v1348 = vunpack.c.h.b16 %v983
    %v1349 = vunpack.c.l.b16 %v984
    %v1350 = vunpack.c.h.b16 %v984
    %v1351 = vunpack.c.l.b16 %v985
    %v1352 = vunpack.c.h.b16 %v985
    %v1353 = vunpack.c.l.b16 %v986
    %v1354 = vunpack.c.h.b16 %v986
    %v1355 = vunpack.c.l.b16 %v987
    %v1356 = vunpack.c.h.b16 %v987
    %v1357 = vunpack.c.l.b16 %v988
    %v1358 = vunpack.c.h.b16 %v988
    %v1359 = vunpack.c.l.b16 %v989
    %v1360 = vunpack.c.h.b16 %v989
    %v1361 = vunpack.c.l.b16 %v990
    %v1362 = vunpack.c.h.b16 %v990
    %v1363 = vunpack.c.l.b16 %v991
    %v1364 = vunpack.c.h.b16 %v991
    %v1365 = vunpack.c.l.b16 %v992
    %v1366 = vunpack.c.h.b16 %v992
    %v1367 = vunpack.c.l.b16 %v993
    %v1368 = vunpack.c.h.b16 %v993
    %v1369 = vunpack.c.l.b16 %v994
    %v1370 = vunpack.c.h.b16 %v994
    %v1371 = vunpack.c.l.b16 %v995
    %v1372 = vunpack.c.h.b16 %v995
    %v1373 = vunpack.c.l.b16 %v996
    %v1374 = vunpack.c.h.b16 %v996
    %v1375 = vunpack.c.l.b16 %v997
    %v1376 = vunpack.c.h.b16 %v997
    %v1377 = vunpack.c.l.b16 %v998
    %v1378 = vunpack.c.h.b16 %v998
    %v1379 = vunpack.c.l.b16 %v999
    %v1380 = vunpack.c.h.b16 %v999
    %v1381 = vunpack.c.l.b16 %v1000
    %v1382 = vunpack.c.h.b16 %v1000
    %v1383 = vunpack.c.l.b16 %v1001
    %v1384 = vunpack.c.h.b16 %v1001
    %v1385 = vunpack.c.l.b16 %v1002
    %v1386 = vunpack.c.h.b16 %v1002
    %v1387 = vpack.c.b16 %v1139, %v1131
    %v1388 = vpack.c.b16 %v1140, %v1132
    %v1389 = vpack.c.b16 %v1141, %v1133
    %v1390 = vpack.c.b16 %v1142, %v1134
    %v1391 = vpack.c.b16 %v1143, %v1135
    %v1392 = vpack.c.b16 %v1144, %v1136
    %v1393 = vpack.c.b16 %v1145, %v1137
    %v1394 = vpack.c.b16 %v1146, %v1138
    %v1395 = vpack.c.b16 %v1155, %v1147
    %v1396 = vpack.c.b16 %v1156, %v1148
    %v1397 = vpack.c.b16 %v1157, %v1149
    %v1398 = vpack.c.b16 %v1158, %v1150
    %v1399 = vpack.c.b16 %v1159, %v1151
    %v1400 = vpack.c.b16 %v1160, %v1152
    %v1401 = vpack.c.b16 %v1161, %v1153
    %v1402 = vpack.c.b16 %v1162, %v1154
    %v1403 = vpack.c.b16 %v1171, %v1163
    %v1404 = vpack.c.b16 %v1172, %v1164
    %v1405 = vpack.c.b16 %v1173, %v1165
    %v1406 = vpack.c.b16 %v1174, %v1166
    %v1407 = vpack.c.b16 %v1175, %v1167
    %v1408 = vpack.c.b16 %v1176, %v1168
    %v1409 = vpack.c.b16 %v1177, %v1169
    %v1410 = vpack.c.b16 %v1178, %v1170
    %v1411 = vpack.c.b16 %v1187, %v1179
    %v1412 = vpack.c.b16 %v1188, %v1180
    %v1413 = vpack.c.b16 %v1189, %v1181
    %v1414 = vpack.c.b16 %v1190, %v1182
    %v1415 = vpack.c.b16 %v1191, %v1183
    %v1416 = vpack.c.b16 %v1192, %v1184
    %v1417 = vpack.c.b16 %v1193, %v1185
    %v1418 = vpack.c.b16 %v1194, %v1186
    %v1419 = vpack.c.b16 %v1203, %v1195
    %v1420 = vpack.c.b16 %v1204, %v1196
    %v1421 = vpack.c.b16 %v1205, %v1197
    %v1422 = vpack.c.b16 %v1206, %v1198
    %v1423 = vpack.c.b16 %v1207, %v1199
    %v1424 = vpack.c.b16 %v1208, %v1200
    %v1425 = vpack.c.b16 %v1209, %v1201
    %v1426 = vpack.c.b16 %v1210, %v1202
    %v1427 = vpack.c.b16 %v1219, %v1211
    %v1428 = vpack.c.b16 %v1220, %v1212
    %v1429 = vpack.c.b16 %v1221, %v1213
    %v1430 = vpack.c.b16 %v1222, %v1214
    %v1431 = vpack.c.b16 %v1223, %v1215
    %v1432 = vpack.c.b16 %v1224, %v1216
    %v1433 = vpack.c.b16 %v1225, %v1217
    %v1434 = vpack.c.b16 %v1226, %v1218
    %v1435 = vpack.c.b16 %v1235, %v1227
    %v1436 = vpack.c.b16 %v1236, %v1228
    %v1437 = vpack.c.b16 %v1237, %v1229
    %v1438 = vpack.c.b16 %v1238, %v1230
    %v1439 = vpack.c.b16 %v1239, %v1231
    %v1440 = vpack.c.b16 %v1240, %v1232
    %v1441 = vpack.c.b16 %v1241, %v1233
    %v1442 = vpack.c.b16 %v1242, %v1234
    %v1443 = vpack.c.b16 %v1251, %v1243
    %v1444 = vpack.c.b16 %v1252, %v1244
    %v1445 = vpack.c.b16 %v1253, %v1245
    %v1446 = vpack.c.b16 %v1254, %v1246
    %v1447 = vpack.c.b16 %v1255, %v1247
    %v1448 = vpack.c.b16 %v1256, %v1248
    %v1449 = vpack.c.b16 %v1257, %v1249
    %v1450 = vpack.c.b16 %v1258, %v1250
    %v1451 = vpack.c.b16 %v1267, %v1259
    %v1452 = vpack.c.b16 %v1268, %v1260
    %v1453 = vpack.c.b16 %v1269, %v1261
    %v1454 = vpack.c.b16 %v1270, %v1262
    %v1455 = vpack.c.b16 %v1271, %v1263
    %v1456 = vpack.c.b16 %v1272, %v1264
    %v1457 = vpack.c.b16 %v1273, %v1265
    %v1458 = vpack.c.b16 %v1274, %v1266
    %v1459 = vpack.c.b16 %v1283, %v1275
    %v1460 = vpack.c.b16 %v1284, %v1276
    %v1461 = vpack.c.b16 %v1285, %v1277
    %v1462 = vpack.c.b16 %v1286, %v1278
    %v1463 = vpack.c.b16 %v1287, %v1279
    %v1464 = vpack.c.b16 %v1288, %v1280
    %v1465 = vpack.c.b16 %v1289, %v1281
    %v1466 = vpack.c.b16 %v1290, %v1282
    %v1467 = vpack.c.b16 %v1299, %v1291
    %v1468 = vpack.c.b16 %v1300, %v1292
    %v1469 = vpack.c.b16 %v1301, %v1293
    %v1470 = vpack.c.b16 %v1302, %v1294
    %v1471 = vpack.c.b16 %v1303, %v1295
    %v1472 = vpack.c.b16 %v1304, %v1296
    %v1473 = vpack.c.b16 %v1305, %v1297
    %v1474 = vpack.c.b16 %v1306, %v1298
    %v1475 = vpack.c.b16 %v1315, %v1307
    %v1476 = vpack.c.b16 %v1316, %v1308
    %v1477 = vpack.c.b16 %v1317, %v1309
    %v1478 = vpack.c.b16 %v1318, %v1310
    %v1479 = vpack.c.b16 %v1319, %v1311
    %v1480 = vpack.c.b16 %v1320, %v1312
    %v1481 = vpack.c.b16 %v1321, %v1313
    %v1482 = vpack.c.b16 %v1322, %v1314
    %v1483 = vpack.c.b16 %v1331, %v1323
    %v1484 = vpack.c.b16 %v1332, %v1324
    %v1485 = vpack.c.b16 %v1333, %v1325
    %v1486 = vpack.c.b16 %v1334, %v1326
    %v1487 = vpack.c.b16 %v1335, %v1327
    %v1488 = vpack.c.b16 %v1336, %v1328
    %v1489 = vpack.c.b16 %v1337, %v1329
    %v1490 = vpack.c.b16 %v1338, %v1330
    %v1491 = vpack.c.b16 %v1347, %v1339
    %v1492 = vpack.c.b16 %v1348, %v1340
    %v1493 = vpack.c.b16 %v1349, %v1341
    %v1494 = vpack.c.b16 %v1350, %v1342
    %v1495 = vpack.c.b16 %v1351, %v1343
    %v1496 = vpack.c.b16 %v1352, %v1344
    %v1497 = vpack.c.b16 %v1353, %v1345
    %v1498 = vpack.c.b16 %v1354, %v1346
    %v1499 = vpack.c.b16 %v1363, %v1355
    %v1500 = vpack.c.b16 %v1364, %v1356
    %v1501 = vpack.c.b16 %v1365, %v1357
    %v1502 = vpack.c.b16 %v1366, %v1358
    %v1503 = vpack.c.b16 %v1367, %v1359
    %v1504 = vpack.c.b16 %v1368, %v1360
    %v1505 = vpack.c.b16 %v1369, %v1361
    %v1506 = vpack.c.b16 %v1370, %v1362
    %v1507 = vpack.c.b16 %v1379, %v1371
    %v1508 = vpack.c.b16 %v1380, %v1372
    %v1509 = vpack.c.b16 %v1381, %v1373
    %v1510 = vpack.c.b16 %v1382, %v1374
    %v1511 = vpack.c.b16 %v1383, %v1375
    %v1512 = vpack.c.b16 %v1384, %v1376
    %v1513 = vpack.c.b16 %v1385, %v1377
    %v1514 = vpack.c.b16 %v1386, %v1378
    %1643 = vmatprep.subr.bf16.mxu0 %v1388
    %1644 = vmatpush1.bf16.msra.mxu0 %v1387
    %1645 = vmatprep.subr.bf16.mxu0 %v1396
    %1646 = vmatpush1.bf16.msra.mxu0 %v1395
    %1647 = vmatprep.subr.bf16.mxu0 %v1404
    %1648 = vmatpush1.bf16.msra.mxu0 %v1403
    %1649 = vmatprep.subr.bf16.mxu0 %v1412
    %1650 = vmatpush1.bf16.msra.mxu0 %v1411
    %1651 = vmatprep.subr.bf16.mxu0 %v1420
    %1652 = vmatpush1.bf16.msra.mxu0 %v1419
    %1653 = vmatprep.subr.bf16.mxu0 %v1428
    %1654 = vmatpush1.bf16.msra.mxu0 %v1427
    %1655 = vmatprep.subr.bf16.mxu0 %v1436
    %1656 = vmatpush1.bf16.msra.mxu0 %v1435
    %1657 = vmatprep.subr.bf16.mxu0 %v1444
    %1658 = vmatpush1.bf16.msra.mxu0 %v1443
    %1659 = vmatprep.subr.bf16.mxu0 %v1452
    %1660 = vmatpush1.bf16.msra.mxu0 %v1451
    %1661 = vmatprep.subr.bf16.mxu0 %v1460
    %1662 = vmatpush1.bf16.msra.mxu0 %v1459
    %1663 = vmatprep.subr.bf16.mxu0 %v1468
    %1664 = vmatpush1.bf16.msra.mxu0 %v1467
    %1665 = vmatprep.subr.bf16.mxu0 %v1476
    %1666 = vmatpush1.bf16.msra.mxu0 %v1475
    %1667 = vmatprep.subr.bf16.mxu0 %v1484
    %1668 = vmatpush1.bf16.msra.mxu0 %v1483
    %1669 = vmatprep.subr.bf16.mxu0 %v1492
    %1670 = vmatpush1.bf16.msra.mxu0 %v1491
    %1671 = vmatprep.subr.bf16.mxu0 %v1500
    %1672 = vmatpush1.bf16.msra.mxu0 %v1499
    %1673 = vmatprep.subr.bf16.mxu0 %v1508
    %1674 = vmatpush1.bf16.msra.mxu0 %v1507
    %1675 = vmatprep.mubr.bf16.mxu0 %v874
    %1676 = vmatmul.mubr.bf16.gmra.mrb[0].mxu0 %v873
    %v1677 = vpop.f32.mrb[0].mxu0
    %v1678 = vadd.f32 0.0, %v1677
    %v1679 = vpop.f32.mrb[0].mxu0
    %v1680 = vadd.f32 0.0, %v1679
    %v1681 = vpop.f32.mrb[0].mxu0
    %v1682 = vpop.f32.mrb[0].mxu0
    %1683 = vdwg.mxu0
    %1684 = vmatprep.subr.bf16.mxu0 %v1390
    %1685 = vmatpush1.bf16.msra.mxu0 %v1389
    %1686 = vmatprep.subr.bf16.mxu0 %v1398
    %1687 = vmatpush1.bf16.msra.mxu0 %v1397
    %1688 = vmatprep.subr.bf16.mxu0 %v1406
    %1689 = vmatpush1.bf16.msra.mxu0 %v1405
    %1690 = vmatprep.subr.bf16.mxu0 %v1414
    %1691 = vmatpush1.bf16.msra.mxu0 %v1413
    %1692 = vmatprep.subr.bf16.mxu0 %v1422
    %1693 = vmatpush1.bf16.msra.mxu0 %v1421
    %1694 = vmatprep.subr.bf16.mxu0 %v1430
    %1695 = vmatpush1.bf16.msra.mxu0 %v1429
    %1696 = vmatprep.subr.bf16.mxu0 %v1438
    %1697 = vmatpush1.bf16.msra.mxu0 %v1437
    %1698 = vmatprep.subr.bf16.mxu0 %v1446
    %1699 = vmatpush1.bf16.msra.mxu0 %v1445
    %1700 = vmatprep.subr.bf16.mxu0 %v1454
    %1701 = vmatpush1.bf16.msra.mxu0 %v1453
    %1702 = vmatprep.subr.bf16.mxu0 %v1462
    %1703 = vmatpush1.bf16.msra.mxu0 %v1461
    %1704 = vmatprep.subr.bf16.mxu0 %v1470
    %1705 = vmatpush1.bf16.msra.mxu0 %v1469
    %1706 = vmatprep.subr.bf16.mxu0 %v1478
    %1707 = vmatpush1.bf16.msra.mxu0 %v1477
    %1708 = vmatprep.subr.bf16.mxu0 %v1486
    %1709 = vmatpush1.bf16.msra.mxu0 %v1485
    %1710 = vmatprep.subr.bf16.mxu0 %v1494
    %1711 = vmatpush1.bf16.msra.mxu0 %v1493
    %1712 = vmatprep.subr.bf16.mxu0 %v1502
    %1713 = vmatpush1.bf16.msra.mxu0 %v1501
    %1714 = vmatprep.subr.bf16.mxu0 %v1510
    %1715 = vmatpush1.bf16.msra.mxu0 %v1509
    %1716 = vmatprep.mubr.bf16.mxu0 %v874
    %1717 = vmatmul.mubr.bf16.gmra.mrb[0].mxu0 %v873
    %v1718 = vpop.f32.mrb[0].mxu0
    %v1719 = vadd.f32 0.0, %v1718
    %v1720 = vpop.f32.mrb[0].mxu0
    %v1721 = vadd.f32 0.0, %v1720
    %v1722 = vpop.f32.mrb[0].mxu0
    %v1723 = vpop.f32.mrb[0].mxu0
    %1724 = vdwg.mxu0
    %1725 = vmatprep.subr.bf16.mxu0 %v1392
    %1726 = vmatpush1.bf16.msra.mxu0 %v1391
    %1727 = vmatprep.subr.bf16.mxu0 %v1400
    %1728 = vmatpush1.bf16.msra.mxu0 %v1399
    %1729 = vmatprep.subr.bf16.mxu0 %v1408
    %1730 = vmatpush1.bf16.msra.mxu0 %v1407
    %1731 = vmatprep.subr.bf16.mxu0 %v1416
    %1732 = vmatpush1.bf16.msra.mxu0 %v1415
    %1733 = vmatprep.subr.bf16.mxu0 %v1424
    %1734 = vmatpush1.bf16.msra.mxu0 %v1423
    %1735 = vmatprep.subr.bf16.mxu0 %v1432
    %1736 = vmatpush1.bf16.msra.mxu0 %v1431
    %1737 = vmatprep.subr.bf16.mxu0 %v1440
    %1738 = vmatpush1.bf16.msra.mxu0 %v1439
    %1739 = vmatprep.subr.bf16.mxu0 %v1448
    %1740 = vmatpush1.bf16.msra.mxu0 %v1447
    %1741 = vmatprep.subr.bf16.mxu0 %v1456
    %1742 = vmatpush1.bf16.msra.mxu0 %v1455
    %1743 = vmatprep.subr.bf16.mxu0 %v1464
    %1744 = vmatpush1.bf16.msra.mxu0 %v1463
    %1745 = vmatprep.subr.bf16.mxu0 %v1472
    %1746 = vmatpush1.bf16.msra.mxu0 %v1471
    %1747 = vmatprep.subr.bf16.mxu0 %v1480
    %1748 = vmatpush1.bf16.msra.mxu0 %v1479
    %1749 = vmatprep.subr.bf16.mxu0 %v1488
    %1750 = vmatpush1.bf16.msra.mxu0 %v1487
    %1751 = vmatprep.subr.bf16.mxu0 %v1496
    %1752 = vmatpush1.bf16.msra.mxu0 %v1495
    %1753 = vmatprep.subr.bf16.mxu0 %v1504
    %1754 = vmatpush1.bf16.msra.mxu0 %v1503
    %1755 = vmatprep.subr.bf16.mxu0 %v1512
    %1756 = vmatpush1.bf16.msra.mxu0 %v1511
    %1757 = vmatprep.mubr.bf16.mxu0 %v874
    %1758 = vmatmul.mubr.bf16.gmra.mrb[0].mxu0 %v873
    %v1759 = vpop.f32.mrb[0].mxu0
    %v1760 = vadd.f32 0.0, %v1759
    %v1761 = vpop.f32.mrb[0].mxu0
    %v1762 = vadd.f32 0.0, %v1761
    %v1763 = vpop.f32.mrb[0].mxu0
    %v1764 = vpop.f32.mrb[0].mxu0
    %1765 = vdwg.mxu0
    %1766 = vmatprep.subr.bf16.mxu0 %v1394
    %1767 = vmatpush1.bf16.msra.mxu0 %v1393
    %1768 = vmatprep.subr.bf16.mxu0 %v1402
    %1769 = vmatpush1.bf16.msra.mxu0 %v1401
    %1770 = vmatprep.subr.bf16.mxu0 %v1410
    %1771 = vmatpush1.bf16.msra.mxu0 %v1409
    %1772 = vmatprep.subr.bf16.mxu0 %v1418
    %1773 = vmatpush1.bf16.msra.mxu0 %v1417
    %1774 = vmatprep.subr.bf16.mxu0 %v1426
    %1775 = vmatpush1.bf16.msra.mxu0 %v1425
    %1776 = vmatprep.subr.bf16.mxu0 %v1434
    %1777 = vmatpush1.bf16.msra.mxu0 %v1433
    %1778 = vmatprep.subr.bf16.mxu0 %v1442
    %1779 = vmatpush1.bf16.msra.mxu0 %v1441
    %1780 = vmatprep.subr.bf16.mxu0 %v1450
    %1781 = vmatpush1.bf16.msra.mxu0 %v1449
    %1782 = vmatprep.subr.bf16.mxu0 %v1458
    %1783 = vmatpush1.bf16.msra.mxu0 %v1457
    %1784 = vmatprep.subr.bf16.mxu0 %v1466
    %1785 = vmatpush1.bf16.msra.mxu0 %v1465
    %1786 = vmatprep.subr.bf16.mxu0 %v1474
    %1787 = vmatpush1.bf16.msra.mxu0 %v1473
    %1788 = vmatprep.subr.bf16.mxu0 %v1482
    %1789 = vmatpush1.bf16.msra.mxu0 %v1481
    %1790 = vmatprep.subr.bf16.mxu0 %v1490
    %1791 = vmatpush1.bf16.msra.mxu0 %v1489
    %1792 = vmatprep.subr.bf16.mxu0 %v1498
    %1793 = vmatpush1.bf16.msra.mxu0 %v1497
    %1794 = vmatprep.subr.bf16.mxu0 %v1506
    %1795 = vmatpush1.bf16.msra.mxu0 %v1505
    %1796 = vmatprep.subr.bf16.mxu0 %v1514
    %1797 = vmatpush1.bf16.msra.mxu0 %v1513
    %1798 = vmatprep.mubr.bf16.mxu0 %v874
    %1799 = vmatmul.mubr.bf16.gmra.mrb[0].mxu0 %v873
    %v1800 = vpop.f32.mrb[0].mxu0
    %v1801 = vadd.f32 0.0, %v1800
    %v1802 = vpop.f32.mrb[0].mxu0
    %v1803 = vadd.f32 0.0, %v1802
    %v1804 = vpop.f32.mrb[0].mxu0
    %v1805 = vpop.f32.mrb[0].mxu0
    %1806 = vdwg.mxu0
    %v1807 = vpack.c.bf16 %v1678, %v1678
    %v1808 = vpack.c.bf16 %v1680, %v1680
    %v1809 = vpack.c.bf16 %v1719, %v1719
    %v1810 = vpack.c.bf16 %v1721, %v1721
    %v1811 = vpack.c.bf16 %v1760, %v1760
    %v1812 = vpack.c.bf16 %v1762, %v1762
    %v1813 = vpack.c.bf16 %v1801, %v1801
    %v1814 = vpack.c.bf16 %v1803, %v1803
    %v1815 = vld [vmem:[%s6] sm:$0xf]
    %v1816 = vld [vmem:[%s6 + $0x4] sm:$0xf]
    %s1817 = scalar_lea.vmem %s6, 8
    %v1818 = vld [vmem:[%s1817] sm:$0xf]
    %v1819 = vld [vmem:[%s1817 + $0x4] sm:$0xf]
    %v1822 = vunpack.c.l.b16 %v1818
    %v1823 = vunpack.c.l.b16 %v1819
    %v1824 = vpack.c.b16 %v1823, %v1822
    %vm1825 = vcmask 64512
    %v1827 = vsel %vm1825, %v1824, 0
    %vm1829 = vcmask 1043456
    %v1831 = vsel %vm1829, %v1809, 0
    %v1834 = vsel %vm1829, %v1810, 0
    %1836 = vmatprep.subr.bf16.mxu0 %v1834
    %1837 = vmatpush1.bf16.msra.mxu0 %v1831
    %1838 = vmatprep.subr.bf16.mxu0 0
    %1839 = vmatpush1.bf16.msra.mxu0 0
    %1840 = vmatprep.subr.bf16.mxu0 0
    %1841 = vmatpush1.bf16.msra.mxu0 0
    %1842 = vmatprep.subr.bf16.mxu0 0
    %1843 = vmatpush1.bf16.msra.mxu0 0
    %1844 = vmatprep.subr.bf16.mxu0 0
    %1845 = vmatpush1.bf16.msra.mxu0 0
    %1846 = vmatprep.subr.bf16.mxu0 0
    %1847 = vmatpush1.bf16.msra.mxu0 0
    %1848 = vmatprep.subr.bf16.mxu0 0
    %1849 = vmatpush1.bf16.msra.mxu0 0
    %1850 = vmatprep.subr.bf16.mxu0 0
    %1851 = vmatpush1.bf16.msra.mxu0 0
    %1852 = vmatprep.subr.bf16.mxu0 0
    %1853 = vmatpush1.bf16.msra.mxu0 0
    %1854 = vmatprep.subr.bf16.mxu0 0
    %1855 = vmatpush1.bf16.msra.mxu0 0
    %1856 = vmatprep.subr.bf16.mxu0 0
    %1857 = vmatpush1.bf16.msra.mxu0 0
    %1858 = vmatprep.subr.bf16.mxu0 0
    %1859 = vmatpush1.bf16.msra.mxu0 0
    %1860 = vmatprep.subr.bf16.mxu0 0
    %1861 = vmatpush1.bf16.msra.mxu0 0
    %1862 = vmatprep.subr.bf16.mxu0 0
    %1863 = vmatpush1.bf16.msra.mxu0 0
    %1864 = vmatprep.subr.bf16.mxu0 0
    %1865 = vmatpush1.bf16.msra.mxu0 0
    %1866 = vmatprep.subr.bf16.mxu0 0
    %1867 = vmatpush1.bf16.msra.mxu0 0
    %1868 = vmatprep.mubr.bf16.mxu0 0
    %1869 = vmatmul.mubr.bf16.gmra.mrb[0].mxu0 %v1827
    %v1870 = vpop.f32.mrb[0].mxu0
    %v1871 = vadd.f32 0.0, %v1870
    %v1872 = vpop.f32.mrb[0].mxu0
    %v1873 = vadd.f32 0.0, %v1872
    %v1874 = vpop.f32.mrb[0].mxu0
    %v1875 = vadd.f32 0.0, %v1874
    %v1876 = vpop.f32.mrb[0].mxu0
    %v1877 = vadd.f32 0.0, %v1876
    %1878 = vdwg.mxu0
    %v1881 = vunpack.c.l.b16 %v1815
    %v1882 = vunpack.c.l.b16 %v1816
    %v1883 = vpack.c.b16 %v1882, %v1881
    %v1885 = vsel %vm1825, %v1883, 0
    %v1888 = vsel %vm1829, %v1807, 0
    %v1891 = vsel %vm1829, %v1808, 0
    %1893 = vmatprep.subr.bf16.mxu0 %v1891
    %1894 = vmatpush1.bf16.msra.mxu0 %v1888
    %1895 = vmatprep.subr.bf16.mxu0 0
    %1896 = vmatpush1.bf16.msra.mxu0 0
    %1897 = vmatprep.subr.bf16.mxu0 0
    %1898 = vmatpush1.bf16.msra.mxu0 0
    %1899 = vmatprep.subr.bf16.mxu0 0
    %1900 = vmatpush1.bf16.msra.mxu0 0
    %1901 = vmatprep.subr.bf16.mxu0 0
    %1902 = vmatpush1.bf16.msra.mxu0 0
    %1903 = vmatprep.subr.bf16.mxu0 0
    %1904 = vmatpush1.bf16.msra.mxu0 0
    %1905 = vmatprep.subr.bf16.mxu0 0
    %1906 = vmatpush1.bf16.msra.mxu0 0
    %1907 = vmatprep.subr.bf16.mxu0 0
    %1908 = vmatpush1.bf16.msra.mxu0 0
    %1909 = vmatprep.subr.bf16.mxu0 0
    %1910 = vmatpush1.bf16.msra.mxu0 0
    %1911 = vmatprep.subr.bf16.mxu0 0
    %1912 = vmatpush1.bf16.msra.mxu0 0
    %1913 = vmatprep.subr.bf16.mxu0 0
    %1914 = vmatpush1.bf16.msra.mxu0 0
    %1915 = vmatprep.subr.bf16.mxu0 0
    %1916 = vmatpush1.bf16.msra.mxu0 0
    %1917 = vmatprep.subr.bf16.mxu0 0
    %1918 = vmatpush1.bf16.msra.mxu0 0
    %1919 = vmatprep.subr.bf16.mxu0 0
    %1920 = vmatpush1.bf16.msra.mxu0 0
    %1921 = vmatprep.subr.bf16.mxu0 0
    %1922 = vmatpush1.bf16.msra.mxu0 0
    %1923 = vmatprep.subr.bf16.mxu0 0
    %1924 = vmatpush1.bf16.msra.mxu0 0
    %1925 = vmatprep.mubr.bf16.mxu0 0
    %1926 = vmatmul.mubr.bf16.gmra.mrb[0].mxu0 %v1885
    %v1927 = vpop.f32.mrb[0].mxu0
    %v1928 = vadd.f32 %v1871, %v1927
    %v1929 = vpop.f32.mrb[0].mxu0
    %v1930 = vadd.f32 %v1873, %v1929
    %v1931 = vpop.f32.mrb[0].mxu0
    %v1932 = vadd.f32 %v1875, %v1931
    %v1933 = vpop.f32.mrb[0].mxu0
    %v1934 = vadd.f32 %v1877, %v1933
    %1935 = vdwg.mxu0
    %s1936 = scalar_lea.vmem %s6, 16
    %v1937 = vld [vmem:[%s1936] sm:$0xf]
    %v1938 = vld [vmem:[%s1936 + $0x4] sm:$0xf]
    %v1941 = vunpack.c.l.b16 %v1937
    %v1942 = vunpack.c.l.b16 %v1938
    %v1943 = vpack.c.b16 %v1942, %v1941
    %v1945 = vsel %vm1825, %v1943, 0
    %v1948 = vsel %vm1829, %v1811, 0
    %v1951 = vsel %vm1829, %v1812, 0
    %1953 = vmatprep.subr.bf16.mxu0 %v1951
    %1954 = vmatpush1.bf16.msra.mxu0 %v1948
    %1955 = vmatprep.subr.bf16.mxu0 0
    %1956 = vmatpush1.bf16.msra.mxu0 0
    %1957 = vmatprep.subr.bf16.mxu0 0
    %1958 = vmatpush1.bf16.msra.mxu0 0
    %1959 = vmatprep.subr.bf16.mxu0 0
    %1960 = vmatpush1.bf16.msra.mxu0 0
    %1961 = vmatprep.subr.bf16.mxu0 0
    %1962 = vmatpush1.bf16.msra.mxu0 0
    %1963 = vmatprep.subr.bf16.mxu0 0
    %1964 = vmatpush1.bf16.msra.mxu0 0
    %1965 = vmatprep.subr.bf16.mxu0 0
    %1966 = vmatpush1.bf16.msra.mxu0 0
    %1967 = vmatprep.subr.bf16.mxu0 0
    %1968 = vmatpush1.bf16.msra.mxu0 0
    %1969 = vmatprep.subr.bf16.mxu0 0
    %1970 = vmatpush1.bf16.msra.mxu0 0
    %1971 = vmatprep.subr.bf16.mxu0 0
    %1972 = vmatpush1.bf16.msra.mxu0 0
    %1973 = vmatprep.subr.bf16.mxu0 0
    %1974 = vmatpush1.bf16.msra.mxu0 0
    %1975 = vmatprep.subr.bf16.mxu0 0
    %1976 = vmatpush1.bf16.msra.mxu0 0
    %1977 = vmatprep.subr.bf16.mxu0 0
    %1978 = vmatpush1.bf16.msra.mxu0 0
    %1979 = vmatprep.subr.bf16.mxu0 0
    %1980 = vmatpush1.bf16.msra.mxu0 0
    %1981 = vmatprep.subr.bf16.mxu0 0
    %1982 = vmatpush1.bf16.msra.mxu0 0
    %1983 = vmatprep.subr.bf16.mxu0 0
    %1984 = vmatpush1.bf16.msra.mxu0 0
    %1985 = vmatprep.mubr.bf16.mxu0 0
    %1986 = vmatmul.mubr.bf16.gmra.mrb[0].mxu0 %v1945
    %v1987 = vpop.f32.mrb[0].mxu0
    %v1988 = vadd.f32 0.0, %v1987
    %v1989 = vpop.f32.mrb[0].mxu0
    %v1990 = vadd.f32 0.0, %v1989
    %v1991 = vpop.f32.mrb[0].mxu0
    %v1992 = vadd.f32 0.0, %v1991
    %v1993 = vpop.f32.mrb[0].mxu0
    %v1994 = vadd.f32 0.0, %v1993
    %1995 = vdwg.mxu0
    %v1996 = vadd.f32 %v1928, %v1988
    %v1997 = vadd.f32 %v1930, %v1990
    %v1998 = vadd.f32 %v1932, %v1992
    %v1999 = vadd.f32 %v1934, %v1994
    %s2000 = scalar_lea.vmem %s6, 24
    %v2001 = vld [vmem:[%s2000] sm:$0xf]
    %v2002 = vld [vmem:[%s2000 + $0x4] sm:$0xf]
    %v2005 = vunpack.c.l.b16 %v2001
    %v2006 = vunpack.c.l.b16 %v2002
    %v2007 = vpack.c.b16 %v2006, %v2005
    %v2009 = vsel %vm1825, %v2007, 0
    %v2012 = vsel %vm1829, %v1813, 0
    %v2015 = vsel %vm1829, %v1814, 0
    %2017 = vmatprep.subr.bf16.mxu0 %v2015
    %2018 = vmatpush1.bf16.msra.mxu0 %v2012
    %2019 = vmatprep.subr.bf16.mxu0 0
    %2020 = vmatpush1.bf16.msra.mxu0 0
    %2021 = vmatprep.subr.bf16.mxu0 0
    %2022 = vmatpush1.bf16.msra.mxu0 0
    %2023 = vmatprep.subr.bf16.mxu0 0
    %2024 = vmatpush1.bf16.msra.mxu0 0
    %2025 = vmatprep.subr.bf16.mxu0 0
    %2026 = vmatpush1.bf16.msra.mxu0 0
    %2027 = vmatprep.subr.bf16.mxu0 0
    %2028 = vmatpush1.bf16.msra.mxu0 0
    %2029 = vmatprep.subr.bf16.mxu0 0
    %2030 = vmatpush1.bf16.msra.mxu0 0
    %2031 = vmatprep.subr.bf16.mxu0 0
    %2032 = vmatpush1.bf16.msra.mxu0 0
    %2033 = vmatprep.subr.bf16.mxu0 0
    %2034 = vmatpush1.bf16.msra.mxu0 0
    %2035 = vmatprep.subr.bf16.mxu0 0
    %2036 = vmatpush1.bf16.msra.mxu0 0
    %2037 = vmatprep.subr.bf16.mxu0 0
    %2038 = vmatpush1.bf16.msra.mxu0 0
    %2039 = vmatprep.subr.bf16.mxu0 0
    %2040 = vmatpush1.bf16.msra.mxu0 0
    %2041 = vmatprep.subr.bf16.mxu0 0
    %2042 = vmatpush1.bf16.msra.mxu0 0
    %2043 = vmatprep.subr.bf16.mxu0 0
    %2044 = vmatpush1.bf16.msra.mxu0 0
    %2045 = vmatprep.subr.bf16.mxu0 0
    %2046 = vmatpush1.bf16.msra.mxu0 0
    %2047 = vmatprep.subr.bf16.mxu0 0
    %2048 = vmatpush1.bf16.msra.mxu0 0
    %2049 = vmatprep.mubr.bf16.mxu0 0
    %2050 = vmatmul.mubr.bf16.gmra.mrb[0].mxu0 %v2009
    %v2051 = vpop.f32.mrb[0].mxu0
    %v2052 = vadd.f32 0.0, %v2051
    %v2053 = vpop.f32.mrb[0].mxu0
    %v2054 = vadd.f32 0.0, %v2053
    %v2055 = vpop.f32.mrb[0].mxu0
    %v2056 = vadd.f32 0.0, %v2055
    %v2057 = vpop.f32.mrb[0].mxu0
    %v2058 = vadd.f32 0.0, %v2057
    %2059 = vdwg.mxu0
    %v2060 = vadd.f32 %v1996, %v2052
    %v2061 = vadd.f32 %v1997, %v2054
    %v2062 = vadd.f32 %v1998, %v2056
    %v2063 = vadd.f32 %v1999, %v2058
    %v2064 = vadd.f32 %v2060, %v2062
    %v2065 = vrot.slane %v2064, 4
    %v2066 = vadd.f32 %v2064, %v2065
    %v2067 = vrot.slane %v2066, 2
    %v2068 = vadd.f32 %v2066, %v2067
    %v2069 = vrot.slane %v2068, 1
    %v2070 = vadd.f32 %v2068, %v2069
    %v2071 = vadd.f32 %v2061, %v2063
    %v2072 = vrot.slane %v2071, 4
    %v2073 = vadd.f32 %v2071, %v2072
    %v2074 = vrot.slane %v2073, 2
    %v2075 = vadd.f32 %v2073, %v2074
    %v2076 = vrot.slane %v2075, 1
    %v2077 = vadd.f32 %v2075, %v2076
    %v2078 = vmul.f32 %v2060, %v2060
    %v2079 = vmul.f32 %v2061, %v2061
    %v2080 = vmul.f32 %v2062, %v2062
    %v2081 = vmul.f32 %v2063, %v2063
    %v2082 = vadd.f32 %v2078, %v2080
    %v2083 = vrot.slane %v2082, 4
    %v2084 = vadd.f32 %v2082, %v2083
    %v2085 = vrot.slane %v2084, 2
    %v2086 = vadd.f32 %v2084, %v2085
    %v2087 = vrot.slane %v2086, 1
    %v2088 = vadd.f32 %v2086, %v2087
    %v2089 = vadd.f32 %v2079, %v2081
    %v2090 = vrot.slane %v2089, 4
    %v2091 = vadd.f32 %v2089, %v2090
    %v2092 = vrot.slane %v2091, 2
    %v2093 = vadd.f32 %v2091, %v2092
    %v2094 = vrot.slane %v2093, 1
    %v2095 = vadd.f32 %v2093, %v2094
    %v2096 = vsel %vm404, %v2070, %v2088
    %v2097 = vsel %vm404, %v2077, %v2095
    %v2098 = vld [vmem:[%s10] sm:$0xff]
    %v2099 = vld [vmem:[%s10 + $0x8] sm:$0xff]
    %v2100 = vld [vmem:[%s10 + $0x10] sm:$0xff]
    %v2101 = vld [vmem:[%s10 + $0x18] sm:$0xff]
    %v2102 = vld [vmem:[%s10 + $0x20] sm:$0xff]
    %v2103 = vld [vmem:[%s10 + $0x28] sm:$0xff]
    %v2104 = vld [vmem:[%s10 + $0x30] sm:$0xff]
    %v2105 = vld [vmem:[%s10 + $0x38] sm:$0xff]
    %v2106 = vld [vmem:[%s10 + $0x40] sm:$0xff]
    %v2107 = vld [vmem:[%s10 + $0x48] sm:$0xff]
    %v2108 = vld [vmem:[%s10 + $0x50] sm:$0xff]
    %v2109 = vld [vmem:[%s10 + $0x58] sm:$0xff]
    %v2110 = vld [vmem:[%s10 + $0x60] sm:$0xff]
    %v2111 = vld [vmem:[%s10 + $0x68] sm:$0xff]
    %v2112 = vld [vmem:[%s10 + $0x70] sm:$0xff]
    %v2113 = vld [vmem:[%s10 + $0x78] sm:$0xff]
    %v2114 = vld [vmem:[%s10 + $0x80] sm:$0xff]
    %v2115 = vld [vmem:[%s10 + $0x88] sm:$0xff]
    %v2116 = vld [vmem:[%s10 + $0x90] sm:$0xff]
    %v2117 = vld [vmem:[%s10 + $0x98] sm:$0xff]
    %v2118 = vld [vmem:[%s10 + $0xa0] sm:$0xff]
    %v2119 = vld [vmem:[%s10 + $0xa8] sm:$0xff]
    %v2120 = vld [vmem:[%s10 + $0xb0] sm:$0xff]
    %v2121 = vld [vmem:[%s10 + $0xb8] sm:$0xff]
    %v2122 = vld [vmem:[%s10 + $0xc0] sm:$0xff]
    %v2123 = vld [vmem:[%s10 + $0xc8] sm:$0xff]
    %v2124 = vld [vmem:[%s10 + $0xd0] sm:$0xff]
    %v2125 = vld [vmem:[%s10 + $0xd8] sm:$0xff]
    %v2126 = vld [vmem:[%s10 + $0xe0] sm:$0xff]
    %v2127 = vld [vmem:[%s10 + $0xe8] sm:$0xff]
    %v2128 = vld [vmem:[%s10 + $0xf0] sm:$0xff]
    %v2129 = vld [vmem:[%s10 + $0xf8] sm:$0xff]
    %2130 = vmatprep.subr.mxu0 0.0
    %2131 = vmatpush1.msra.mxu0 %v2098
    %2132 = vmatprep.subr.mxu0 0.0
    %2133 = vmatpush1.msra.mxu0 %v2099
    %2134 = vmatprep.subr.mxu0 0.0
    %2135 = vmatpush1.msra.mxu0 %v2100
    %2136 = vmatprep.subr.mxu0 0.0
    %2137 = vmatpush1.msra.mxu0 %v2101
    %2138 = vmatprep.subr.mxu0 0.0
    %2139 = vmatpush1.msra.mxu0 %v2102
    %2140 = vmatprep.subr.mxu0 0.0
    %2141 = vmatpush1.msra.mxu0 %v2103
    %2142 = vmatprep.subr.mxu0 0.0
    %2143 = vmatpush1.msra.mxu0 %v2104
    %2144 = vmatprep.subr.mxu0 0.0
    %2145 = vmatpush1.msra.mxu0 %v2105
    %2146 = vmatprep.subr.mxu0 0.0
    %2147 = vmatpush1.msra.mxu0 %v2106
    %2148 = vmatprep.subr.mxu0 0.0
    %2149 = vmatpush1.msra.mxu0 %v2107
    %2150 = vmatprep.subr.mxu0 0.0
    %2151 = vmatpush1.msra.mxu0 %v2108
    %2152 = vmatprep.subr.mxu0 0.0
    %2153 = vmatpush1.msra.mxu0 %v2109
    %2154 = vmatprep.subr.mxu0 0.0
    %2155 = vmatpush1.msra.mxu0 %v2110
    %2156 = vmatprep.subr.mxu0 0.0
    %2157 = vmatpush1.msra.mxu0 %v2111
    %2158 = vmatprep.subr.mxu0 0.0
    %2159 = vmatpush1.msra.mxu0 %v2112
    %2160 = vmatprep.subr.mxu0 0.0
    %2161 = vmatpush1.msra.mxu0 %v2113
    %2162 = vmatprep.subr.mxu0 0.0
    %2163 = vmatpush1.msra.mxu0 %v2114
    %2164 = vmatprep.subr.mxu0 0.0
    %2165 = vmatpush1.msra.mxu0 %v2115
    %2166 = vmatprep.subr.mxu0 0.0
    %2167 = vmatpush1.msra.mxu0 %v2116
    %2168 = vmatprep.subr.mxu0 0.0
    %2169 = vmatpush1.msra.mxu0 %v2117
    %2170 = vmatprep.subr.mxu0 0.0
    %2171 = vmatpush1.msra.mxu0 %v2118
    %2172 = vmatprep.subr.mxu0 0.0
    %2173 = vmatpush1.msra.mxu0 %v2119
    %2174 = vmatprep.subr.mxu0 0.0
    %2175 = vmatpush1.msra.mxu0 %v2120
    %2176 = vmatprep.subr.mxu0 0.0
    %2177 = vmatpush1.msra.mxu0 %v2121
    %2178 = vmatprep.subr.mxu0 0.0
    %2179 = vmatpush1.msra.mxu0 %v2122
    %2180 = vmatprep.subr.mxu0 0.0
    %2181 = vmatpush1.msra.mxu0 %v2123
    %2182 = vmatprep.subr.mxu0 0.0
    %2183 = vmatpush1.msra.mxu0 %v2124
    %2184 = vmatprep.subr.mxu0 0.0
    %2185 = vmatpush1.msra.mxu0 %v2125
    %2186 = vmatprep.subr.mxu0 0.0
    %2187 = vmatpush1.msra.mxu0 %v2126
    %2188 = vmatprep.subr.mxu0 0.0
    %2189 = vmatpush1.msra.mxu0 %v2127
    %2190 = vmatprep.subr.mxu0 0.0
    %2191 = vmatpush1.msra.mxu0 %v2128
    %2192 = vmatprep.subr.mxu0 0.0
    %2193 = vmatpush1.msra.mxu0 %v2129
    %2194 = vmatprep.mubr.f32.mxu0 %v2097
    %2195 = vmatmul.mubr.f32.gmra.mrb[0].mxu0 %v2096
    %v2196 = vpop.f32.mrb[0].mxu0
    %v2197 = vadd.f32 0.0, %v2196
    %v2198 = vpop.f32.mrb[0].mxu0
    %2199 = vdwg.mxu0
    %v2200 = vmul.f32 %v2197, 0.0078125
    %v2201 = vmul.f32 %v2200, %v2200
    %v2203 = vrot.slane %v2201, 7
    %v2205 = vsub.f32 %v2200, %v2203
    %v2206 = vmax.f32 %v2205, 0.0
    %v2207 = vld [vmem:[#allocation10] sm:$0x3]
    %v2208 = vadd.f32 %v2206, 1e-05
    %v2209 = vrsqrt.pop %v2208
    %v2211 = vrot.slane %v2209, 1
    %v2213 = vmul.f32 %v2207, %v2211
    %v2214 = vmul.f32 %v2200, %v2213
    %v2216 = vrot.slane %v2214, 7
    %v2218 = vsub.f32 %v2207, %v2216
    %v2219 = vsel %vm404, %v2213, %v2218
    %v2220 = vld [vmem:[%s14] sm:$0xff]
    %v2221 = vld [vmem:[%s14 + $0x8] sm:$0xff]
    %v2222 = vld [vmem:[%s14 + $0x10] sm:$0xff]
    %v2223 = vld [vmem:[%s14 + $0x18] sm:$0xff]
    %v2224 = vld [vmem:[%s14 + $0x20] sm:$0xff]
    %v2225 = vld [vmem:[%s14 + $0x28] sm:$0xff]
    %v2226 = vld [vmem:[%s14 + $0x30] sm:$0xff]
    %v2227 = vld [vmem:[%s14 + $0x38] sm:$0xff]
    %vm2228 = vcmask 261120
    %v2230 = vsel %vm2228, %v2219, 0
    %2232 = vmatprep.subr.mxu0 %v2221
    %2233 = vmatpush1.msra.mxu0 %v2220
    %2234 = vmatprep.subr.mxu0 %v2223
    %2235 = vmatpush1.msra.mxu0 %v2222
    %2236 = vmatprep.subr.mxu0 %v2225
    %2237 = vmatpush1.msra.mxu0 %v2224
    %2238 = vmatprep.subr.mxu0 %v2227
    %2239 = vmatpush1.msra.mxu0 %v2226
    %2240 = vmatprep.subr.mxu0 0.0
    %2241 = vmatpush1.msra.mxu0 0.0
    %2242 = vmatprep.subr.mxu0 0.0
    %2243 = vmatpush1.msra.mxu0 0.0
    %2244 = vmatprep.subr.mxu0 0.0
    %2245 = vmatpush1.msra.mxu0 0.0
    %2246 = vmatprep.subr.mxu0 0.0
    %2247 = vmatpush1.msra.mxu0 0.0
    %2248 = vmatprep.subr.mxu0 0.0
    %2249 = vmatpush1.msra.mxu0 0.0
    %2250 = vmatprep.subr.mxu0 0.0
    %2251 = vmatpush1.msra.mxu0 0.0
    %2252 = vmatprep.subr.mxu0 0.0
    %2253 = vmatpush1.msra.mxu0 0.0
    %2254 = vmatprep.subr.mxu0 0.0
    %2255 = vmatpush1.msra.mxu0 0.0
    %2256 = vmatprep.subr.mxu0 0.0
    %2257 = vmatpush1.msra.mxu0 0.0
    %2258 = vmatprep.subr.mxu0 0.0
    %2259 = vmatpush1.msra.mxu0 0.0
    %2260 = vmatprep.subr.mxu0 0.0
    %2261 = vmatpush1.msra.mxu0 0.0
    %2262 = vmatprep.subr.mxu0 0.0
    %2263 = vmatpush1.msra.mxu0 0.0
    %2264 = vmatprep.subr.mxu0 0.0
    %2265 = vmatpush1.msra.mxu0 0.0
    %2266 = vmatprep.subr.mxu0 0.0
    %2267 = vmatpush1.msra.mxu0 0.0
    %2268 = vmatprep.subr.mxu0 0.0
    %2269 = vmatpush1.msra.mxu0 0.0
    %2270 = vmatprep.subr.mxu0 0.0
    %2271 = vmatpush1.msra.mxu0 0.0
    %2272 = vmatprep.subr.mxu0 0.0
    %2273 = vmatpush1.msra.mxu0 0.0
    %2274 = vmatprep.subr.mxu0 0.0
    %2275 = vmatpush1.msra.mxu0 0.0
    %2276 = vmatprep.subr.mxu0 0.0
    %2277 = vmatpush1.msra.mxu0 0.0
    %2278 = vmatprep.subr.mxu0 0.0
    %2279 = vmatpush1.msra.mxu0 0.0
    %2280 = vmatprep.subr.mxu0 0.0
    %2281 = vmatpush1.msra.mxu0 0.0
    %2282 = vmatprep.subr.mxu0 0.0
    %2283 = vmatpush1.msra.mxu0 0.0
    %2284 = vmatprep.subr.mxu0 0.0
    %2285 = vmatpush1.msra.mxu0 0.0
    %2286 = vmatprep.subr.mxu0 0.0
    %2287 = vmatpush1.msra.mxu0 0.0
    %2288 = vmatprep.subr.mxu0 0.0
    %2289 = vmatpush1.msra.mxu0 0.0
    %2290 = vmatprep.subr.mxu0 0.0
    %2291 = vmatpush1.msra.mxu0 0.0
    %2292 = vmatprep.subr.mxu0 0.0
    %2293 = vmatpush1.msra.mxu0 0.0
    %2294 = vmatprep.subr.mxu0 0.0
    %2295 = vmatpush1.msra.mxu0 0.0
    %2296 = vmatprep.mubr.f32.mxu0 0.0
    %2297 = vmatmul.mubr.f32.gmra.mrb[0].mxu0 %v2230
    %v2298 = vpop.f32.mrb[0].mxu0
    %v2299 = vadd.f32 0.0, %v2298
    %v2300 = vpop.f32.mrb[0].mxu0
    %v2301 = vadd.f32 0.0, %v2300
    %2302 = vdwg.mxu0
    %v2303 = vlaneseq
    %v2304 = vshrl.u32 %v2303, 7
    %v2305 = vsub.s32 0, %v2304
    %v2306 = vrot.slane %v2299, %v2305
    %v2307 = vlaneseq
    %v2308 = vshrl.u32 %v2307, 7
    %v2309 = vsub.s32 0, %v2308
    %v2310 = vrot.slane %v2301, %v2309
    %v2311 = vmul.f32 %v2060, %v2306
    %v2312 = vmul.f32 %v2061, %v2310
    %v2313 = vmul.f32 %v2062, %v2306
    %v2314 = vmul.f32 %v2063, %v2310
    %v2315 = vlaneseq
    %v2316 = vshrl.u32 %v2315, 7
    %v2317 = vsub.s32 1, %v2316
    %v2318 = vrot.slane %v2299, %v2317
    %v2319 = vlaneseq
    %v2320 = vshrl.u32 %v2319, 7
    %v2321 = vsub.s32 1, %v2320
    %v2322 = vrot.slane %v2301, %v2321
    %v2323 = vadd.f32 %v2311, %v2318
    %v2324 = vadd.f32 %v2312, %v2322
    %v2325 = vadd.f32 %v2313, %v2318
    %v2326 = vadd.f32 %v2314, %v2322
    %v2327 = vmax.f32 %v2323, 0.0
    %v2328 = vmax.f32 %v2324, 0.0
    %v2329 = vmax.f32 %v2325, 0.0
    %v2330 = vmax.f32 %v2326, 0.0
    %v2331 = vpack.c.bf16 %v2329, %v2327
    %v2332 = vpack.c.bf16 %v2330, %v2328
    %v2333 = vld [vmem:[#allocation2] sm:$0xff]
    %v2334 = vld [vmem:[#allocation2 + $0x8] sm:$0xff]
    %v2335 = vld [vmem:[#allocation2 + $0x10] sm:$0xff]
    %v2336 = vld [vmem:[#allocation2 + $0x18] sm:$0xff]
    %v2337 = vld [vmem:[#allocation2 + $0x20] sm:$0xff]
    %v2338 = vld [vmem:[#allocation2 + $0x28] sm:$0xff]
    %v2339 = vld [vmem:[#allocation2 + $0x30] sm:$0xff]
    %v2340 = vld [vmem:[#allocation2 + $0x38] sm:$0xff]
    %v2341 = vld [vmem:[#allocation2 + $0x40] sm:$0xff]
    %v2342 = vld [vmem:[#allocation2 + $0x48] sm:$0xff]
    %v2343 = vld [vmem:[#allocation2 + $0x50] sm:$0xff]
    %v2344 = vld [vmem:[#allocation2 + $0x58] sm:$0xff]
    %v2345 = vld [vmem:[#allocation2 + $0x60] sm:$0xff]
    %v2346 = vld [vmem:[#allocation2 + $0x68] sm:$0xff]
    %v2347 = vld [vmem:[#allocation2 + $0x70] sm:$0xff]
    %v2348 = vld [vmem:[#allocation2 + $0x78] sm:$0xff]
    %v2349 = vld [vmem:[#allocation2 + $0x80] sm:$0xff]
    %v2350 = vld [vmem:[#allocation2 + $0x88] sm:$0xff]
    %v2351 = vld [vmem:[#allocation2 + $0x90] sm:$0xff]
    %v2352 = vld [vmem:[#allocation2 + $0x98] sm:$0xff]
    %v2353 = vld [vmem:[#allocation2 + $0xa0] sm:$0xff]
    %v2354 = vld [vmem:[#allocation2 + $0xa8] sm:$0xff]
    %v2355 = vld [vmem:[#allocation2 + $0xb0] sm:$0xff]
    %v2356 = vld [vmem:[#allocation2 + $0xb8] sm:$0xff]
    %v2357 = vld [vmem:[#allocation2 + $0xc0] sm:$0xff]
    %v2358 = vld [vmem:[#allocation2 + $0xc8] sm:$0xff]
    %v2359 = vld [vmem:[#allocation2 + $0xd0] sm:$0xff]
    %v2360 = vld [vmem:[#allocation2 + $0xd8] sm:$0xff]
    %v2361 = vld [vmem:[#allocation2 + $0xe0] sm:$0xff]
    %v2362 = vld [vmem:[#allocation2 + $0xe8] sm:$0xff]
    %v2363 = vld [vmem:[#allocation2 + $0xf0] sm:$0xff]
    %v2364 = vld [vmem:[#allocation2 + $0xf8] sm:$0xff]
    %v2365 = vld [vmem:[#allocation2 + $0x100] sm:$0xff]
    %v2366 = vld [vmem:[#allocation2 + $0x108] sm:$0xff]
    %v2367 = vld [vmem:[#allocation2 + $0x110] sm:$0xff]
    %v2368 = vld [vmem:[#allocation2 + $0x118] sm:$0xff]
    %v2369 = vld [vmem:[#allocation2 + $0x120] sm:$0xff]
    %v2370 = vld [vmem:[#allocation2 + $0x128] sm:$0xff]
    %v2371 = vld [vmem:[#allocation2 + $0x130] sm:$0xff]
    %v2372 = vld [vmem:[#allocation2 + $0x138] sm:$0xff]
    %v2373 = vld [vmem:[#allocation2 + $0x140] sm:$0xff]
    %v2374 = vld [vmem:[#allocation2 + $0x148] sm:$0xff]
    %v2375 = vld [vmem:[#allocation2 + $0x150] sm:$0xff]
    %v2376 = vld [vmem:[#allocation2 + $0x158] sm:$0xff]
    %v2377 = vld [vmem:[#allocation2 + $0x160] sm:$0xff]
    %v2378 = vld [vmem:[#allocation2 + $0x168] sm:$0xff]
    %v2379 = vld [vmem:[#allocation2 + $0x170] sm:$0xff]
    %v2380 = vld [vmem:[#allocation2 + $0x178] sm:$0xff]
    %v2381 = vld [vmem:[#allocation2 + $0x180] sm:$0xff]
    %v2382 = vld [vmem:[#allocation2 + $0x188] sm:$0xff]
    %v2383 = vld [vmem:[#allocation2 + $0x190] sm:$0xff]
    %v2384 = vld [vmem:[#allocation2 + $0x198] sm:$0xff]
    %v2385 = vld [vmem:[#allocation2 + $0x1a0] sm:$0xff]
    %v2386 = vld [vmem:[#allocation2 + $0x1a8] sm:$0xff]
    %v2387 = vld [vmem:[#allocation2 + $0x1b0] sm:$0xff]
    %v2388 = vld [vmem:[#allocation2 + $0x1b8] sm:$0xff]
    %v2389 = vld [vmem:[#allocation2 + $0x1c0] sm:$0xff]
    %v2390 = vld [vmem:[#allocation2 + $0x1c8] sm:$0xff]
    %v2391 = vld [vmem:[#allocation2 + $0x1d0] sm:$0xff]
    %v2392 = vld [vmem:[#allocation2 + $0x1d8] sm:$0xff]
    %v2393 = vld [vmem:[#allocation2 + $0x1e0] sm:$0xff]
    %v2394 = vld [vmem:[#allocation2 + $0x1e8] sm:$0xff]
    %v2395 = vld [vmem:[#allocation2 + $0x1f0] sm:$0xff]
    %v2396 = vld [vmem:[#allocation2 + $0x1f8] sm:$0xff]
    %v2397 = vld [vmem:[#allocation2 + $0x200] sm:$0xff]
    %v2398 = vld [vmem:[#allocation2 + $0x208] sm:$0xff]
    %v2399 = vld [vmem:[#allocation2 + $0x210] sm:$0xff]
    %v2400 = vld [vmem:[#allocation2 + $0x218] sm:$0xff]
    %v2401 = vld [vmem:[#allocation2 + $0x220] sm:$0xff]
    %v2402 = vld [vmem:[#allocation2 + $0x228] sm:$0xff]
    %v2403 = vld [vmem:[#allocation2 + $0x230] sm:$0xff]
    %v2404 = vld [vmem:[#allocation2 + $0x238] sm:$0xff]
    %v2405 = vld [vmem:[#allocation2 + $0x240] sm:$0xff]
    %v2406 = vld [vmem:[#allocation2 + $0x248] sm:$0xff]
    %v2407 = vld [vmem:[#allocation2 + $0x250] sm:$0xff]
    %v2408 = vld [vmem:[#allocation2 + $0x258] sm:$0xff]
    %v2409 = vld [vmem:[#allocation2 + $0x260] sm:$0xff]
    %v2410 = vld [vmem:[#allocation2 + $0x268] sm:$0xff]
    %v2411 = vld [vmem:[#allocation2 + $0x270] sm:$0xff]
    %v2412 = vld [vmem:[#allocation2 + $0x278] sm:$0xff]
    %v2413 = vld [vmem:[#allocation2 + $0x280] sm:$0xff]
    %v2414 = vld [vmem:[#allocation2 + $0x288] sm:$0xff]
    %v2415 = vld [vmem:[#allocation2 + $0x290] sm:$0xff]
    %v2416 = vld [vmem:[#allocation2 + $0x298] sm:$0xff]
    %v2417 = vld [vmem:[#allocation2 + $0x2a0] sm:$0xff]
    %v2418 = vld [vmem:[#allocation2 + $0x2a8] sm:$0xff]
    %v2419 = vld [vmem:[#allocation2 + $0x2b0] sm:$0xff]
    %v2420 = vld [vmem:[#allocation2 + $0x2b8] sm:$0xff]
    %v2421 = vld [vmem:[#allocation2 + $0x2c0] sm:$0xff]
    %v2422 = vld [vmem:[#allocation2 + $0x2c8] sm:$0xff]
    %v2423 = vld [vmem:[#allocation2 + $0x2d0] sm:$0xff]
    %v2424 = vld [vmem:[#allocation2 + $0x2d8] sm:$0xff]
    %v2425 = vld [vmem:[#allocation2 + $0x2e0] sm:$0xff]
    %v2426 = vld [vmem:[#allocation2 + $0x2e8] sm:$0xff]
    %v2427 = vld [vmem:[#allocation2 + $0x2f0] sm:$0xff]
    %v2428 = vld [vmem:[#allocation2 + $0x2f8] sm:$0xff]
    %v2429 = vld [vmem:[#allocation2 + $0x300] sm:$0xff]
    %v2430 = vld [vmem:[#allocation2 + $0x308] sm:$0xff]
    %v2431 = vld [vmem:[#allocation2 + $0x310] sm:$0xff]
    %v2432 = vld [vmem:[#allocation2 + $0x318] sm:$0xff]
    %v2433 = vld [vmem:[#allocation2 + $0x320] sm:$0xff]
    %v2434 = vld [vmem:[#allocation2 + $0x328] sm:$0xff]
    %v2435 = vld [vmem:[#allocation2 + $0x330] sm:$0xff]
    %v2436 = vld [vmem:[#allocation2 + $0x338] sm:$0xff]
    %v2437 = vld [vmem:[#allocation2 + $0x340] sm:$0xff]
    %v2438 = vld [vmem:[#allocation2 + $0x348] sm:$0xff]
    %v2439 = vld [vmem:[#allocation2 + $0x350] sm:$0xff]
    %v2440 = vld [vmem:[#allocation2 + $0x358] sm:$0xff]
    %v2441 = vld [vmem:[#allocation2 + $0x360] sm:$0xff]
    %v2442 = vld [vmem:[#allocation2 + $0x368] sm:$0xff]
    %v2443 = vld [vmem:[#allocation2 + $0x370] sm:$0xff]
    %v2444 = vld [vmem:[#allocation2 + $0x378] sm:$0xff]
    %v2445 = vld [vmem:[#allocation2 + $0x380] sm:$0xff]
    %v2446 = vld [vmem:[#allocation2 + $0x388] sm:$0xff]
    %v2447 = vld [vmem:[#allocation2 + $0x390] sm:$0xff]
    %v2448 = vld [vmem:[#allocation2 + $0x398] sm:$0xff]
    %v2449 = vld [vmem:[#allocation2 + $0x3a0] sm:$0xff]
    %v2450 = vld [vmem:[#allocation2 + $0x3a8] sm:$0xff]
    %v2451 = vld [vmem:[#allocation2 + $0x3b0] sm:$0xff]
    %v2452 = vld [vmem:[#allocation2 + $0x3b8] sm:$0xff]
    %v2453 = vld [vmem:[#allocation2 + $0x3c0] sm:$0xff]
    %v2454 = vld [vmem:[#allocation2 + $0x3c8] sm:$0xff]
    %v2455 = vld [vmem:[#allocation2 + $0x3d0] sm:$0xff]
    %v2456 = vld [vmem:[#allocation2 + $0x3d8] sm:$0xff]
    %v2457 = vld [vmem:[#allocation2 + $0x3e0] sm:$0xff]
    %v2458 = vld [vmem:[#allocation2 + $0x3e8] sm:$0xff]
    %v2459 = vld [vmem:[#allocation2 + $0x3f0] sm:$0xff]
    %v2460 = vld [vmem:[#allocation2 + $0x3f8] sm:$0xff]
    %v2589 = vunpack.c.l.b16 %v2333
    %v2590 = vunpack.c.h.b16 %v2333
    %v2591 = vunpack.c.l.b16 %v2334
    %v2592 = vunpack.c.h.b16 %v2334
    %v2593 = vunpack.c.l.b16 %v2335
    %v2594 = vunpack.c.h.b16 %v2335
    %v2595 = vunpack.c.l.b16 %v2336
    %v2596 = vunpack.c.h.b16 %v2336
    %v2597 = vunpack.c.l.b16 %v2337
    %v2598 = vunpack.c.h.b16 %v2337
    %v2599 = vunpack.c.l.b16 %v2338
    %v2600 = vunpack.c.h.b16 %v2338
    %v2601 = vunpack.c.l.b16 %v2339
    %v2602 = vunpack.c.h.b16 %v2339
    %v2603 = vunpack.c.l.b16 %v2340
    %v2604 = vunpack.c.h.b16 %v2340
    %v2605 = vunpack.c.l.b16 %v2341
    %v2606 = vunpack.c.h.b16 %v2341
    %v2607 = vunpack.c.l.b16 %v2342
    %v2608 = vunpack.c.h.b16 %v2342
    %v2609 = vunpack.c.l.b16 %v2343
    %v2610 = vunpack.c.h.b16 %v2343
    %v2611 = vunpack.c.l.b16 %v2344
    %v2612 = vunpack.c.h.b16 %v2344
    %v2613 = vunpack.c.l.b16 %v2345
    %v2614 = vunpack.c.h.b16 %v2345
    %v2615 = vunpack.c.l.b16 %v2346
    %v2616 = vunpack.c.h.b16 %v2346
    %v2617 = vunpack.c.l.b16 %v2347
    %v2618 = vunpack.c.h.b16 %v2347
    %v2619 = vunpack.c.l.b16 %v2348
    %v2620 = vunpack.c.h.b16 %v2348
    %v2621 = vunpack.c.l.b16 %v2349
    %v2622 = vunpack.c.h.b16 %v2349
    %v2623 = vunpack.c.l.b16 %v2350
    %v2624 = vunpack.c.h.b16 %v2350
    %v2625 = vunpack.c.l.b16 %v2351
    %v2626 = vunpack.c.h.b16 %v2351
    %v2627 = vunpack.c.l.b16 %v2352
    %v2628 = vunpack.c.h.b16 %v2352
    %v2629 = vunpack.c.l.b16 %v2353
    %v2630 = vunpack.c.h.b16 %v2353
    %v2631 = vunpack.c.l.b16 %v2354
    %v2632 = vunpack.c.h.b16 %v2354
    %v2633 = vunpack.c.l.b16 %v2355
    %v2634 = vunpack.c.h.b16 %v2355
    %v2635 = vunpack.c.l.b16 %v2356
    %v2636 = vunpack.c.h.b16 %v2356
    %v2637 = vunpack.c.l.b16 %v2357
    %v2638 = vunpack.c.h.b16 %v2357
    %v2639 = vunpack.c.l.b16 %v2358
    %v2640 = vunpack.c.h.b16 %v2358
    %v2641 = vunpack.c.l.b16 %v2359
    %v2642 = vunpack.c.h.b16 %v2359
    %v2643 = vunpack.c.l.b16 %v2360
    %v2644 = vunpack.c.h.b16 %v2360
    %v2645 = vunpack.c.l.b16 %v2361
    %v2646 = vunpack.c.h.b16 %v2361
    %v2647 = vunpack.c.l.b16 %v2362
    %v2648 = vunpack.c.h.b16 %v2362
    %v2649 = vunpack.c.l.b16 %v2363
    %v2650 = vunpack.c.h.b16 %v2363
    %v2651 = vunpack.c.l.b16 %v2364
    %v2652 = vunpack.c.h.b16 %v2364
    %v2653 = vunpack.c.l.b16 %v2365
    %v2654 = vunpack.c.h.b16 %v2365
    %v2655 = vunpack.c.l.b16 %v2366
    %v2656 = vunpack.c.h.b16 %v2366
    %v2657 = vunpack.c.l.b16 %v2367
    %v2658 = vunpack.c.h.b16 %v2367
    %v2659 = vunpack.c.l.b16 %v2368
    %v2660 = vunpack.c.h.b16 %v2368
    %v2661 = vunpack.c.l.b16 %v2369
    %v2662 = vunpack.c.h.b16 %v2369
    %v2663 = vunpack.c.l.b16 %v2370
    %v2664 = vunpack.c.h.b16 %v2370
    %v2665 = vunpack.c.l.b16 %v2371
    %v2666 = vunpack.c.h.b16 %v2371
    %v2667 = vunpack.c.l.b16 %v2372
    %v2668 = vunpack.c.h.b16 %v2372
    %v2669 = vunpack.c.l.b16 %v2373
    %v2670 = vunpack.c.h.b16 %v2373
    %v2671 = vunpack.c.l.b16 %v2374
    %v2672 = vunpack.c.h.b16 %v2374
    %v2673 = vunpack.c.l.b16 %v2375
    %v2674 = vunpack.c.h.b16 %v2375
    %v2675 = vunpack.c.l.b16 %v2376
    %v2676 = vunpack.c.h.b16 %v2376
    %v2677 = vunpack.c.l.b16 %v2377
    %v2678 = vunpack.c.h.b16 %v2377
    %v2679 = vunpack.c.l.b16 %v2378
    %v2680 = vunpack.c.h.b16 %v2378
    %v2681 = vunpack.c.l.b16 %v2379
    %v2682 = vunpack.c.h.b16 %v2379
    %v2683 = vunpack.c.l.b16 %v2380
    %v2684 = vunpack.c.h.b16 %v2380
    %v2685 = vunpack.c.l.b16 %v2381
    %v2686 = vunpack.c.h.b16 %v2381
    %v2687 = vunpack.c.l.b16 %v2382
    %v2688 = vunpack.c.h.b16 %v2382
    %v2689 = vunpack.c.l.b16 %v2383
    %v2690 = vunpack.c.h.b16 %v2383
    %v2691 = vunpack.c.l.b16 %v2384
    %v2692 = vunpack.c.h.b16 %v2384
    %v2693 = vunpack.c.l.b16 %v2385
    %v2694 = vunpack.c.h.b16 %v2385
    %v2695 = vunpack.c.l.b16 %v2386
    %v2696 = vunpack.c.h.b16 %v2386
    %v2697 = vunpack.c.l.b16 %v2387
    %v2698 = vunpack.c.h.b16 %v2387
    %v2699 = vunpack.c.l.b16 %v2388
    %v2700 = vunpack.c.h.b16 %v2388
    %v2701 = vunpack.c.l.b16 %v2389
    %v2702 = vunpack.c.h.b16 %v2389
    %v2703 = vunpack.c.l.b16 %v2390
    %v2704 = vunpack.c.h.b16 %v2390
    %v2705 = vunpack.c.l.b16 %v2391
    %v2706 = vunpack.c.h.b16 %v2391
    %v2707 = vunpack.c.l.b16 %v2392
    %v2708 = vunpack.c.h.b16 %v2392
    %v2709 = vunpack.c.l.b16 %v2393
    %v2710 = vunpack.c.h.b16 %v2393
    %v2711 = vunpack.c.l.b16 %v2394
    %v2712 = vunpack.c.h.b16 %v2394
    %v2713 = vunpack.c.l.b16 %v2395
    %v2714 = vunpack.c.h.b16 %v2395
    %v2715 = vunpack.c.l.b16 %v2396
    %v2716 = vunpack.c.h.b16 %v2396
    %v2717 = vunpack.c.l.b16 %v2397
    %v2718 = vunpack.c.h.b16 %v2397
    %v2719 = vunpack.c.l.b16 %v2398
    %v2720 = vunpack.c.h.b16 %v2398
    %v2721 = vunpack.c.l.b16 %v2399
    %v2722 = vunpack.c.h.b16 %v2399
    %v2723 = vunpack.c.l.b16 %v2400
    %v2724 = vunpack.c.h.b16 %v2400
    %v2725 = vunpack.c.l.b16 %v2401
    %v2726 = vunpack.c.h.b16 %v2401
    %v2727 = vunpack.c.l.b16 %v2402
    %v2728 = vunpack.c.h.b16 %v2402
    %v2729 = vunpack.c.l.b16 %v2403
    %v2730 = vunpack.c.h.b16 %v2403
    %v2731 = vunpack.c.l.b16 %v2404
    %v2732 = vunpack.c.h.b16 %v2404
    %v2733 = vunpack.c.l.b16 %v2405
    %v2734 = vunpack.c.h.b16 %v2405
    %v2735 = vunpack.c.l.b16 %v2406
    %v2736 = vunpack.c.h.b16 %v2406
    %v2737 = vunpack.c.l.b16 %v2407
    %v2738 = vunpack.c.h.b16 %v2407
    %v2739 = vunpack.c.l.b16 %v2408
    %v2740 = vunpack.c.h.b16 %v2408
    %v2741 = vunpack.c.l.b16 %v2409
    %v2742 = vunpack.c.h.b16 %v2409
    %v2743 = vunpack.c.l.b16 %v2410
    %v2744 = vunpack.c.h.b16 %v2410
    %v2745 = vunpack.c.l.b16 %v2411
    %v2746 = vunpack.c.h.b16 %v2411
    %v2747 = vunpack.c.l.b16 %v2412
    %v2748 = vunpack.c.h.b16 %v2412
    %v2749 = vunpack.c.l.b16 %v2413
    %v2750 = vunpack.c.h.b16 %v2413
    %v2751 = vunpack.c.l.b16 %v2414
    %v2752 = vunpack.c.h.b16 %v2414
    %v2753 = vunpack.c.l.b16 %v2415
    %v2754 = vunpack.c.h.b16 %v2415
    %v2755 = vunpack.c.l.b16 %v2416
    %v2756 = vunpack.c.h.b16 %v2416
    %v2757 = vunpack.c.l.b16 %v2417
    %v2758 = vunpack.c.h.b16 %v2417
    %v2759 = vunpack.c.l.b16 %v2418
    %v2760 = vunpack.c.h.b16 %v2418
    %v2761 = vunpack.c.l.b16 %v2419
    %v2762 = vunpack.c.h.b16 %v2419
    %v2763 = vunpack.c.l.b16 %v2420
    %v2764 = vunpack.c.h.b16 %v2420
    %v2765 = vunpack.c.l.b16 %v2421
    %v2766 = vunpack.c.h.b16 %v2421
    %v2767 = vunpack.c.l.b16 %v2422
    %v2768 = vunpack.c.h.b16 %v2422
    %v2769 = vunpack.c.l.b16 %v2423
    %v2770 = vunpack.c.h.b16 %v2423
    %v2771 = vunpack.c.l.b16 %v2424
    %v2772 = vunpack.c.h.b16 %v2424
    %v2773 = vunpack.c.l.b16 %v2425
    %v2774 = vunpack.c.h.b16 %v2425
    %v2775 = vunpack.c.l.b16 %v2426
    %v2776 = vunpack.c.h.b16 %v2426
    %v2777 = vunpack.c.l.b16 %v2427
    %v2778 = vunpack.c.h.b16 %v2427
    %v2779 = vunpack.c.l.b16 %v2428
    %v2780 = vunpack.c.h.b16 %v2428
    %v2781 = vunpack.c.l.b16 %v2429
    %v2782 = vunpack.c.h.b16 %v2429
    %v2783 = vunpack.c.l.b16 %v2430
    %v2784 = vunpack.c.h.b16 %v2430
    %v2785 = vunpack.c.l.b16 %v2431
    %v2786 = vunpack.c.h.b16 %v2431
    %v2787 = vunpack.c.l.b16 %v2432
    %v2788 = vunpack.c.h.b16 %v2432
    %v2789 = vunpack.c.l.b16 %v2433
    %v2790 = vunpack.c.h.b16 %v2433
    %v2791 = vunpack.c.l.b16 %v2434
    %v2792 = vunpack.c.h.b16 %v2434
    %v2793 = vunpack.c.l.b16 %v2435
    %v2794 = vunpack.c.h.b16 %v2435
    %v2795 = vunpack.c.l.b16 %v2436
    %v2796 = vunpack.c.h.b16 %v2436
    %v2797 = vunpack.c.l.b16 %v2437
    %v2798 = vunpack.c.h.b16 %v2437
    %v2799 = vunpack.c.l.b16 %v2438
    %v2800 = vunpack.c.h.b16 %v2438
    %v2801 = vunpack.c.l.b16 %v2439
    %v2802 = vunpack.c.h.b16 %v2439
    %v2803 = vunpack.c.l.b16 %v2440
    %v2804 = vunpack.c.h.b16 %v2440
    %v2805 = vunpack.c.l.b16 %v2441
    %v2806 = vunpack.c.h.b16 %v2441
    %v2807 = vunpack.c.l.b16 %v2442
    %v2808 = vunpack.c.h.b16 %v2442
    %v2809 = vunpack.c.l.b16 %v2443
    %v2810 = vunpack.c.h.b16 %v2443
    %v2811 = vunpack.c.l.b16 %v2444
    %v2812 = vunpack.c.h.b16 %v2444
    %v2813 = vunpack.c.l.b16 %v2445
    %v2814 = vunpack.c.h.b16 %v2445
    %v2815 = vunpack.c.l.b16 %v2446
    %v2816 = vunpack.c.h.b16 %v2446
    %v2817 = vunpack.c.l.b16 %v2447
    %v2818 = vunpack.c.h.b16 %v2447
    %v2819 = vunpack.c.l.b16 %v2448
    %v2820 = vunpack.c.h.b16 %v2448
    %v2821 = vunpack.c.l.b16 %v2449
    %v2822 = vunpack.c.h.b16 %v2449
    %v2823 = vunpack.c.l.b16 %v2450
    %v2824 = vunpack.c.h.b16 %v2450
    %v2825 = vunpack.c.l.b16 %v2451
    %v2826 = vunpack.c.h.b16 %v2451
    %v2827 = vunpack.c.l.b16 %v2452
    %v2828 = vunpack.c.h.b16 %v2452
    %v2829 = vunpack.c.l.b16 %v2453
    %v2830 = vunpack.c.h.b16 %v2453
    %v2831 = vunpack.c.l.b16 %v2454
    %v2832 = vunpack.c.h.b16 %v2454
    %v2833 = vunpack.c.l.b16 %v2455
    %v2834 = vunpack.c.h.b16 %v2455
    %v2835 = vunpack.c.l.b16 %v2456
    %v2836 = vunpack.c.h.b16 %v2456
    %v2837 = vunpack.c.l.b16 %v2457
    %v2838 = vunpack.c.h.b16 %v2457
    %v2839 = vunpack.c.l.b16 %v2458
    %v2840 = vunpack.c.h.b16 %v2458
    %v2841 = vunpack.c.l.b16 %v2459
    %v2842 = vunpack.c.h.b16 %v2459
    %v2843 = vunpack.c.l.b16 %v2460
    %v2844 = vunpack.c.h.b16 %v2460
    %v2845 = vpack.c.b16 %v2597, %v2589
    %v2846 = vpack.c.b16 %v2598, %v2590
    %v2847 = vpack.c.b16 %v2599, %v2591
    %v2848 = vpack.c.b16 %v2600, %v2592
    %v2849 = vpack.c.b16 %v2601, %v2593
    %v2850 = vpack.c.b16 %v2602, %v2594
    %v2851 = vpack.c.b16 %v2603, %v2595
    %v2852 = vpack.c.b16 %v2604, %v2596
    %v2853 = vpack.c.b16 %v2613, %v2605
    %v2854 = vpack.c.b16 %v2614, %v2606
    %v2855 = vpack.c.b16 %v2615, %v2607
    %v2856 = vpack.c.b16 %v2616, %v2608
    %v2857 = vpack.c.b16 %v2617, %v2609
    %v2858 = vpack.c.b16 %v2618, %v2610
    %v2859 = vpack.c.b16 %v2619, %v2611
    %v2860 = vpack.c.b16 %v2620, %v2612
    %v2861 = vpack.c.b16 %v2629, %v2621
    %v2862 = vpack.c.b16 %v2630, %v2622
    %v2863 = vpack.c.b16 %v2631, %v2623
    %v2864 = vpack.c.b16 %v2632, %v2624
    %v2865 = vpack.c.b16 %v2633, %v2625
    %v2866 = vpack.c.b16 %v2634, %v2626
    %v2867 = vpack.c.b16 %v2635, %v2627
    %v2868 = vpack.c.b16 %v2636, %v2628
    %v2869 = vpack.c.b16 %v2645, %v2637
    %v2870 = vpack.c.b16 %v2646, %v2638
    %v2871 = vpack.c.b16 %v2647, %v2639
    %v2872 = vpack.c.b16 %v2648, %v2640
    %v2873 = vpack.c.b16 %v2649, %v2641
    %v2874 = vpack.c.b16 %v2650, %v2642
    %v2875 = vpack.c.b16 %v2651, %v2643
    %v2876 = vpack.c.b16 %v2652, %v2644
    %v2877 = vpack.c.b16 %v2661, %v2653
    %v2878 = vpack.c.b16 %v2662, %v2654
    %v2879 = vpack.c.b16 %v2663, %v2655
    %v2880 = vpack.c.b16 %v2664, %v2656
    %v2881 = vpack.c.b16 %v2665, %v2657
    %v2882 = vpack.c.b16 %v2666, %v2658
    %v2883 = vpack.c.b16 %v2667, %v2659
    %v2884 = vpack.c.b16 %v2668, %v2660
    %v2885 = vpack.c.b16 %v2677, %v2669
    %v2886 = vpack.c.b16 %v2678, %v2670
    %v2887 = vpack.c.b16 %v2679, %v2671
    %v2888 = vpack.c.b16 %v2680, %v2672
    %v2889 = vpack.c.b16 %v2681, %v2673
    %v2890 = vpack.c.b16 %v2682, %v2674
    %v2891 = vpack.c.b16 %v2683, %v2675
    %v2892 = vpack.c.b16 %v2684, %v2676
    %v2893 = vpack.c.b16 %v2693, %v2685
    %v2894 = vpack.c.b16 %v2694, %v2686
    %v2895 = vpack.c.b16 %v2695, %v2687
    %v2896 = vpack.c.b16 %v2696, %v2688
    %v2897 = vpack.c.b16 %v2697, %v2689
    %v2898 = vpack.c.b16 %v2698, %v2690
    %v2899 = vpack.c.b16 %v2699, %v2691
    %v2900 = vpack.c.b16 %v2700, %v2692
    %v2901 = vpack.c.b16 %v2709, %v2701
    %v2902 = vpack.c.b16 %v2710, %v2702
    %v2903 = vpack.c.b16 %v2711, %v2703
    %v2904 = vpack.c.b16 %v2712, %v2704
    %v2905 = vpack.c.b16 %v2713, %v2705
    %v2906 = vpack.c.b16 %v2714, %v2706
    %v2907 = vpack.c.b16 %v2715, %v2707
    %v2908 = vpack.c.b16 %v2716, %v2708
    %v2909 = vpack.c.b16 %v2725, %v2717
    %v2910 = vpack.c.b16 %v2726, %v2718
    %v2911 = vpack.c.b16 %v2727, %v2719
    %v2912 = vpack.c.b16 %v2728, %v2720
    %v2913 = vpack.c.b16 %v2729, %v2721
    %v2914 = vpack.c.b16 %v2730, %v2722
    %v2915 = vpack.c.b16 %v2731, %v2723
    %v2916 = vpack.c.b16 %v2732, %v2724
    %v2917 = vpack.c.b16 %v2741, %v2733
    %v2918 = vpack.c.b16 %v2742, %v2734
    %v2919 = vpack.c.b16 %v2743, %v2735
    %v2920 = vpack.c.b16 %v2744, %v2736
    %v2921 = vpack.c.b16 %v2745, %v2737
    %v2922 = vpack.c.b16 %v2746, %v2738
    %v2923 = vpack.c.b16 %v2747, %v2739
    %v2924 = vpack.c.b16 %v2748, %v2740
    %v2925 = vpack.c.b16 %v2757, %v2749
    %v2926 = vpack.c.b16 %v2758, %v2750
    %v2927 = vpack.c.b16 %v2759, %v2751
    %v2928 = vpack.c.b16 %v2760, %v2752
    %v2929 = vpack.c.b16 %v2761, %v2753
    %v2930 = vpack.c.b16 %v2762, %v2754
    %v2931 = vpack.c.b16 %v2763, %v2755
    %v2932 = vpack.c.b16 %v2764, %v2756
    %v2933 = vpack.c.b16 %v2773, %v2765
    %v2934 = vpack.c.b16 %v2774, %v2766
    %v2935 = vpack.c.b16 %v2775, %v2767
    %v2936 = vpack.c.b16 %v2776, %v2768
    %v2937 = vpack.c.b16 %v2777, %v2769
    %v2938 = vpack.c.b16 %v2778, %v2770
    %v2939 = vpack.c.b16 %v2779, %v2771
    %v2940 = vpack.c.b16 %v2780, %v2772
    %v2941 = vpack.c.b16 %v2789, %v2781
    %v2942 = vpack.c.b16 %v2790, %v2782
    %v2943 = vpack.c.b16 %v2791, %v2783
    %v2944 = vpack.c.b16 %v2792, %v2784
    %v2945 = vpack.c.b16 %v2793, %v2785
    %v2946 = vpack.c.b16 %v2794, %v2786
    %v2947 = vpack.c.b16 %v2795, %v2787
    %v2948 = vpack.c.b16 %v2796, %v2788
    %v2949 = vpack.c.b16 %v2805, %v2797
    %v2950 = vpack.c.b16 %v2806, %v2798
    %v2951 = vpack.c.b16 %v2807, %v2799
    %v2952 = vpack.c.b16 %v2808, %v2800
    %v2953 = vpack.c.b16 %v2809, %v2801
    %v2954 = vpack.c.b16 %v2810, %v2802
    %v2955 = vpack.c.b16 %v2811, %v2803
    %v2956 = vpack.c.b16 %v2812, %v2804
    %v2957 = vpack.c.b16 %v2821, %v2813
    %v2958 = vpack.c.b16 %v2822, %v2814
    %v2959 = vpack.c.b16 %v2823, %v2815
    %v2960 = vpack.c.b16 %v2824, %v2816
    %v2961 = vpack.c.b16 %v2825, %v2817
    %v2962 = vpack.c.b16 %v2826, %v2818
    %v2963 = vpack.c.b16 %v2827, %v2819
    %v2964 = vpack.c.b16 %v2828, %v2820
    %v2965 = vpack.c.b16 %v2837, %v2829
    %v2966 = vpack.c.b16 %v2838, %v2830
    %v2967 = vpack.c.b16 %v2839, %v2831
    %v2968 = vpack.c.b16 %v2840, %v2832
    %v2969 = vpack.c.b16 %v2841, %v2833
    %v2970 = vpack.c.b16 %v2842, %v2834
    %v2971 = vpack.c.b16 %v2843, %v2835
    %v2972 = vpack.c.b16 %v2844, %v2836
    %3101 = vmatprep.subr.bf16.mxu0 %v2846
    %3102 = vmatpush1.bf16.msra.mxu0 %v2845
    %3103 = vmatprep.subr.bf16.mxu0 %v2854
    %3104 = vmatpush1.bf16.msra.mxu0 %v2853
    %3105 = vmatprep.subr.bf16.mxu0 %v2862
    %3106 = vmatpush1.bf16.msra.mxu0 %v2861
    %3107 = vmatprep.subr.bf16.mxu0 %v2870
    %3108 = vmatpush1.bf16.msra.mxu0 %v2869
    %3109 = vmatprep.subr.bf16.mxu0 %v2878
    %3110 = vmatpush1.bf16.msra.mxu0 %v2877
    %3111 = vmatprep.subr.bf16.mxu0 %v2886
    %3112 = vmatpush1.bf16.msra.mxu0 %v2885
    %3113 = vmatprep.subr.bf16.mxu0 %v2894
    %3114 = vmatpush1.bf16.msra.mxu0 %v2893
    %3115 = vmatprep.subr.bf16.mxu0 %v2902
    %3116 = vmatpush1.bf16.msra.mxu0 %v2901
    %3117 = vmatprep.subr.bf16.mxu0 %v2910
    %3118 = vmatpush1.bf16.msra.mxu0 %v2909
    %3119 = vmatprep.subr.bf16.mxu0 %v2918
    %3120 = vmatpush1.bf16.msra.mxu0 %v2917
    %3121 = vmatprep.subr.bf16.mxu0 %v2926
    %3122 = vmatpush1.bf16.msra.mxu0 %v2925
    %3123 = vmatprep.subr.bf16.mxu0 %v2934
    %3124 = vmatpush1.bf16.msra.mxu0 %v2933
    %3125 = vmatprep.subr.bf16.mxu0 %v2942
    %3126 = vmatpush1.bf16.msra.mxu0 %v2941
    %3127 = vmatprep.subr.bf16.mxu0 %v2950
    %3128 = vmatpush1.bf16.msra.mxu0 %v2949
    %3129 = vmatprep.subr.bf16.mxu0 %v2958
    %3130 = vmatpush1.bf16.msra.mxu0 %v2957
    %3131 = vmatprep.subr.bf16.mxu0 %v2966
    %3132 = vmatpush1.bf16.msra.mxu0 %v2965
    %3133 = vmatprep.mubr.bf16.mxu0 %v2332
    %3134 = vmatmul.mubr.bf16.gmra.mrb[0].mxu0 %v2331
    %v3135 = vpop.f32.mrb[0].mxu0
    %v3136 = vadd.f32 0.0, %v3135
    %v3137 = vpop.f32.mrb[0].mxu0
    %v3138 = vadd.f32 0.0, %v3137
    %v3139 = vpop.f32.mrb[0].mxu0
    %v3140 = vadd.f32 0.0, %v3139
    %v3141 = vpop.f32.mrb[0].mxu0
    %v3142 = vadd.f32 0.0, %v3141
    %3143 = vdwg.mxu0
    %3144 = vmatprep.subr.bf16.mxu0 %v2848
    %3145 = vmatpush1.bf16.msra.mxu0 %v2847
    %3146 = vmatprep.subr.bf16.mxu0 %v2856
    %3147 = vmatpush1.bf16.msra.mxu0 %v2855
    %3148 = vmatprep.subr.bf16.mxu0 %v2864
    %3149 = vmatpush1.bf16.msra.mxu0 %v2863
    %3150 = vmatprep.subr.bf16.mxu0 %v2872
    %3151 = vmatpush1.bf16.msra.mxu0 %v2871
    %3152 = vmatprep.subr.bf16.mxu0 %v2880
    %3153 = vmatpush1.bf16.msra.mxu0 %v2879
    %3154 = vmatprep.subr.bf16.mxu0 %v2888
    %3155 = vmatpush1.bf16.msra.mxu0 %v2887
    %3156 = vmatprep.subr.bf16.mxu0 %v2896
    %3157 = vmatpush1.bf16.msra.mxu0 %v2895
    %3158 = vmatprep.subr.bf16.mxu0 %v2904
    %3159 = vmatpush1.bf16.msra.mxu0 %v2903
    %3160 = vmatprep.subr.bf16.mxu0 %v2912
    %3161 = vmatpush1.bf16.msra.mxu0 %v2911
    %3162 = vmatprep.subr.bf16.mxu0 %v2920
    %3163 = vmatpush1.bf16.msra.mxu0 %v2919
    %3164 = vmatprep.subr.bf16.mxu0 %v2928
    %3165 = vmatpush1.bf16.msra.mxu0 %v2927
    %3166 = vmatprep.subr.bf16.mxu0 %v2936
    %3167 = vmatpush1.bf16.msra.mxu0 %v2935
    %3168 = vmatprep.subr.bf16.mxu0 %v2944
    %3169 = vmatpush1.bf16.msra.mxu0 %v2943
    %3170 = vmatprep.subr.bf16.mxu0 %v2952
    %3171 = vmatpush1.bf16.msra.mxu0 %v2951
    %3172 = vmatprep.subr.bf16.mxu0 %v2960
    %3173 = vmatpush1.bf16.msra.mxu0 %v2959
    %3174 = vmatprep.subr.bf16.mxu0 %v2968
    %3175 = vmatpush1.bf16.msra.mxu0 %v2967
    %3176 = vmatprep.mubr.bf16.mxu0 %v2332
    %3177 = vmatmul.mubr.bf16.gmra.mrb[0].mxu0 %v2331
    %v3178 = vpop.f32.mrb[0].mxu0
    %v3179 = vadd.f32 0.0, %v3178
    %v3180 = vpop.f32.mrb[0].mxu0
    %v3181 = vadd.f32 0.0, %v3180
    %v3182 = vpop.f32.mrb[0].mxu0
    %v3183 = vadd.f32 0.0, %v3182
    %v3184 = vpop.f32.mrb[0].mxu0
    %v3185 = vadd.f32 0.0, %v3184
    %3186 = vdwg.mxu0
    %3187 = vmatprep.subr.bf16.mxu0 %v2850
    %3188 = vmatpush1.bf16.msra.mxu0 %v2849
    %3189 = vmatprep.subr.bf16.mxu0 %v2858
    %3190 = vmatpush1.bf16.msra.mxu0 %v2857
    %3191 = vmatprep.subr.bf16.mxu0 %v2866
    %3192 = vmatpush1.bf16.msra.mxu0 %v2865
    %3193 = vmatprep.subr.bf16.mxu0 %v2874
    %3194 = vmatpush1.bf16.msra.mxu0 %v2873
    %3195 = vmatprep.subr.bf16.mxu0 %v2882
    %3196 = vmatpush1.bf16.msra.mxu0 %v2881
    %3197 = vmatprep.subr.bf16.mxu0 %v2890
    %3198 = vmatpush1.bf16.msra.mxu0 %v2889
    %3199 = vmatprep.subr.bf16.mxu0 %v2898
    %3200 = vmatpush1.bf16.msra.mxu0 %v2897
    %3201 = vmatprep.subr.bf16.mxu0 %v2906
    %3202 = vmatpush1.bf16.msra.mxu0 %v2905
    %3203 = vmatprep.subr.bf16.mxu0 %v2914
    %3204 = vmatpush1.bf16.msra.mxu0 %v2913
    %3205 = vmatprep.subr.bf16.mxu0 %v2922
    %3206 = vmatpush1.bf16.msra.mxu0 %v2921
    %3207 = vmatprep.subr.bf16.mxu0 %v2930
    %3208 = vmatpush1.bf16.msra.mxu0 %v2929
    %3209 = vmatprep.subr.bf16.mxu0 %v2938
    %3210 = vmatpush1.bf16.msra.mxu0 %v2937
    %3211 = vmatprep.subr.bf16.mxu0 %v2946
    %3212 = vmatpush1.bf16.msra.mxu0 %v2945
    %3213 = vmatprep.subr.bf16.mxu0 %v2954
    %3214 = vmatpush1.bf16.msra.mxu0 %v2953
    %3215 = vmatprep.subr.bf16.mxu0 %v2962
    %3216 = vmatpush1.bf16.msra.mxu0 %v2961
    %3217 = vmatprep.subr.bf16.mxu0 %v2970
    %3218 = vmatpush1.bf16.msra.mxu0 %v2969
    %3219 = vmatprep.mubr.bf16.mxu0 %v2332
    %3220 = vmatmul.mubr.bf16.gmra.mrb[0].mxu0 %v2331
    %v3221 = vpop.f32.mrb[0].mxu0
    %v3222 = vadd.f32 0.0, %v3221
    %v3223 = vpop.f32.mrb[0].mxu0
    %v3224 = vadd.f32 0.0, %v3223
    %v3225 = vpop.f32.mrb[0].mxu0
    %v3226 = vadd.f32 0.0, %v3225
    %v3227 = vpop.f32.mrb[0].mxu0
    %v3228 = vadd.f32 0.0, %v3227
    %3229 = vdwg.mxu0
    %3230 = vmatprep.subr.bf16.mxu0 %v2852
    %3231 = vmatpush1.bf16.msra.mxu0 %v2851
    %3232 = vmatprep.subr.bf16.mxu0 %v2860
    %3233 = vmatpush1.bf16.msra.mxu0 %v2859
    %3234 = vmatprep.subr.bf16.mxu0 %v2868
    %3235 = vmatpush1.bf16.msra.mxu0 %v2867
    %3236 = vmatprep.subr.bf16.mxu0 %v2876
    %3237 = vmatpush1.bf16.msra.mxu0 %v2875
    %3238 = vmatprep.subr.bf16.mxu0 %v2884
    %3239 = vmatpush1.bf16.msra.mxu0 %v2883
    %3240 = vmatprep.subr.bf16.mxu0 %v2892
    %3241 = vmatpush1.bf16.msra.mxu0 %v2891
    %3242 = vmatprep.subr.bf16.mxu0 %v2900
    %3243 = vmatpush1.bf16.msra.mxu0 %v2899
    %3244 = vmatprep.subr.bf16.mxu0 %v2908
    %3245 = vmatpush1.bf16.msra.mxu0 %v2907
    %3246 = vmatprep.subr.bf16.mxu0 %v2916
    %3247 = vmatpush1.bf16.msra.mxu0 %v2915
    %3248 = vmatprep.subr.bf16.mxu0 %v2924
    %3249 = vmatpush1.bf16.msra.mxu0 %v2923
    %3250 = vmatprep.subr.bf16.mxu0 %v2932
    %3251 = vmatpush1.bf16.msra.mxu0 %v2931
    %3252 = vmatprep.subr.bf16.mxu0 %v2940
    %3253 = vmatpush1.bf16.msra.mxu0 %v2939
    %3254 = vmatprep.subr.bf16.mxu0 %v2948
    %3255 = vmatpush1.bf16.msra.mxu0 %v2947
    %3256 = vmatprep.subr.bf16.mxu0 %v2956
    %3257 = vmatpush1.bf16.msra.mxu0 %v2955
    %3258 = vmatprep.subr.bf16.mxu0 %v2964
    %3259 = vmatpush1.bf16.msra.mxu0 %v2963
    %3260 = vmatprep.subr.bf16.mxu0 %v2972
    %3261 = vmatpush1.bf16.msra.mxu0 %v2971
    %3262 = vmatprep.mubr.bf16.mxu0 %v2332
    %3263 = vmatmul.mubr.bf16.gmra.mrb[0].mxu0 %v2331
    %v3264 = vpop.f32.mrb[0].mxu0
    %v3265 = vadd.f32 0.0, %v3264
    %v3266 = vpop.f32.mrb[0].mxu0
    %v3267 = vadd.f32 0.0, %v3266
    %v3268 = vpop.f32.mrb[0].mxu0
    %v3269 = vadd.f32 0.0, %v3268
    %v3270 = vpop.f32.mrb[0].mxu0
    %v3271 = vadd.f32 0.0, %v3270
    %3272 = vdwg.mxu0
    %v3273 = vpack.c.bf16 %v3140, %v3136
    %v3274 = vpack.c.bf16 %v3142, %v3138
    %v3275 = vpack.c.bf16 %v3183, %v3179
    %v3276 = vpack.c.bf16 %v3185, %v3181
    %v3277 = vpack.c.bf16 %v3226, %v3222
    %v3278 = vpack.c.bf16 %v3228, %v3224
    %v3279 = vpack.c.bf16 %v3269, %v3265
    %v3280 = vpack.c.bf16 %v3271, %v3267
    %v3281 = vld [vmem:[%s7] sm:$0xf]
    %v3282 = vld [vmem:[%s7 + $0x4] sm:$0xf]
    %v3283 = vld [vmem:[%s7 + $0x8] sm:$0xf]
    %v3284 = vld [vmem:[%s7 + $0xc] sm:$0xf]
    %s3285 = scalar_lea.vmem %s7, 16
    %v3286 = vld [vmem:[%s3285] sm:$0xf]
    %v3287 = vld [vmem:[%s3285 + $0x4] sm:$0xf]
    %v3288 = vld [vmem:[%s3285 + $0x8] sm:$0xf]
    %v3289 = vld [vmem:[%s3285 + $0xc] sm:$0xf]
    %v3294 = vunpack.c.l.b16 %v3286
    %v3295 = vunpack.c.l.b16 %v3287
    %v3296 = vunpack.c.l.b16 %v3288
    %v3297 = vunpack.c.l.b16 %v3289
    %v3298 = vpack.c.b16 %v3295, %v3294
    %v3299 = vpack.c.b16 %v3297, %v3296
    %v3301 = vsel %vm221, %v3298, 0
    %v3304 = vsel %vm221, %v3299, 0
    %3306 = vmatprep.subr.bf16.mxu0 %v3276
    %3307 = vmatpush1.bf16.msra.mxu0 %v3275
    %3308 = vmatprep.subr.bf16.mxu0 0
    %3309 = vmatpush1.bf16.msra.mxu0 0
    %3310 = vmatprep.subr.bf16.mxu0 0
    %3311 = vmatpush1.bf16.msra.mxu0 0
    %3312 = vmatprep.subr.bf16.mxu0 0
    %3313 = vmatpush1.bf16.msra.mxu0 0
    %3314 = vmatprep.subr.bf16.mxu0 0
    %3315 = vmatpush1.bf16.msra.mxu0 0
    %3316 = vmatprep.subr.bf16.mxu0 0
    %3317 = vmatpush1.bf16.msra.mxu0 0
    %3318 = vmatprep.subr.bf16.mxu0 0
    %3319 = vmatpush1.bf16.msra.mxu0 0
    %3320 = vmatprep.subr.bf16.mxu0 0
    %3321 = vmatpush1.bf16.msra.mxu0 0
    %3322 = vmatprep.subr.bf16.mxu0 0
    %3323 = vmatpush1.bf16.msra.mxu0 0
    %3324 = vmatprep.subr.bf16.mxu0 0
    %3325 = vmatpush1.bf16.msra.mxu0 0
    %3326 = vmatprep.subr.bf16.mxu0 0
    %3327 = vmatpush1.bf16.msra.mxu0 0
    %3328 = vmatprep.subr.bf16.mxu0 0
    %3329 = vmatpush1.bf16.msra.mxu0 0
    %3330 = vmatprep.subr.bf16.mxu0 0
    %3331 = vmatpush1.bf16.msra.mxu0 0
    %3332 = vmatprep.subr.bf16.mxu0 0
    %3333 = vmatpush1.bf16.msra.mxu0 0
    %3334 = vmatprep.subr.bf16.mxu0 0
    %3335 = vmatpush1.bf16.msra.mxu0 0
    %3336 = vmatprep.subr.bf16.mxu0 0
    %3337 = vmatpush1.bf16.msra.mxu0 0
    %3338 = vmatprep.mubr.bf16.mxu0 0
    %3339 = vmatmul.mubr.bf16.gmra.mrb[0].mxu0 %v3301
    %v3340 = vpop.f32.mrb[0].mxu0
    %v3341 = vadd.f32 0.0, %v3340
    %v3342 = vpop.f32.mrb[0].mxu0
    %v3343 = vadd.f32 0.0, %v3342
    %v3344 = vpop.f32.mrb[0].mxu0
    %v3345 = vadd.f32 0.0, %v3344
    %v3346 = vpop.f32.mrb[0].mxu0
    %v3347 = vadd.f32 0.0, %v3346
    %3348 = vmatprep.mubr.bf16.mxu0 0
    %3349 = vmatmul.mubr.bf16.gmra.mrb[0].mxu0 %v3304
    %v3350 = vpop.f32.mrb[0].mxu0
    %v3351 = vadd.f32 0.0, %v3350
    %v3352 = vpop.f32.mrb[0].mxu0
    %v3353 = vadd.f32 0.0, %v3352
    %v3354 = vpop.f32.mrb[0].mxu0
    %v3355 = vadd.f32 0.0, %v3354
    %v3356 = vpop.f32.mrb[0].mxu0
    %v3357 = vadd.f32 0.0, %v3356
    %3358 = vdwg.mxu0
    %v3363 = vunpack.c.l.b16 %v3281
    %v3364 = vunpack.c.l.b16 %v3282
    %v3365 = vunpack.c.l.b16 %v3283
    %v3366 = vunpack.c.l.b16 %v3284
    %v3367 = vpack.c.b16 %v3364, %v3363
    %v3368 = vpack.c.b16 %v3366, %v3365
    %v3370 = vsel %vm221, %v3367, 0
    %v3373 = vsel %vm221, %v3368, 0
    %3375 = vmatprep.subr.bf16.mxu0 %v3274
    %3376 = vmatpush1.bf16.msra.mxu0 %v3273
    %3377 = vmatprep.subr.bf16.mxu0 0
    %3378 = vmatpush1.bf16.msra.mxu0 0
    %3379 = vmatprep.subr.bf16.mxu0 0
    %3380 = vmatpush1.bf16.msra.mxu0 0
    %3381 = vmatprep.subr.bf16.mxu0 0
    %3382 = vmatpush1.bf16.msra.mxu0 0
    %3383 = vmatprep.subr.bf16.mxu0 0
    %3384 = vmatpush1.bf16.msra.mxu0 0
    %3385 = vmatprep.subr.bf16.mxu0 0
    %3386 = vmatpush1.bf16.msra.mxu0 0
    %3387 = vmatprep.subr.bf16.mxu0 0
    %3388 = vmatpush1.bf16.msra.mxu0 0
    %3389 = vmatprep.subr.bf16.mxu0 0
    %3390 = vmatpush1.bf16.msra.mxu0 0
    %3391 = vmatprep.subr.bf16.mxu0 0
    %3392 = vmatpush1.bf16.msra.mxu0 0
    %3393 = vmatprep.subr.bf16.mxu0 0
    %3394 = vmatpush1.bf16.msra.mxu0 0
    %3395 = vmatprep.subr.bf16.mxu0 0
    %3396 = vmatpush1.bf16.msra.mxu0 0
    %3397 = vmatprep.subr.bf16.mxu0 0
    %3398 = vmatpush1.bf16.msra.mxu0 0
    %3399 = vmatprep.subr.bf16.mxu0 0
    %3400 = vmatpush1.bf16.msra.mxu0 0
    %3401 = vmatprep.subr.bf16.mxu0 0
    %3402 = vmatpush1.bf16.msra.mxu0 0
    %3403 = vmatprep.subr.bf16.mxu0 0
    %3404 = vmatpush1.bf16.msra.mxu0 0
    %3405 = vmatprep.subr.bf16.mxu0 0
    %3406 = vmatpush1.bf16.msra.mxu0 0
    %3407 = vmatprep.mubr.bf16.mxu0 0
    %3408 = vmatmul.mubr.bf16.gmra.mrb[0].mxu0 %v3370
    %v3409 = vpop.f32.mrb[0].mxu0
    %v3410 = vadd.f32 %v3341, %v3409
    %v3411 = vpop.f32.mrb[0].mxu0
    %v3412 = vadd.f32 %v3343, %v3411
    %v3413 = vpop.f32.mrb[0].mxu0
    %v3414 = vadd.f32 %v3345, %v3413
    %v3415 = vpop.f32.mrb[0].mxu0
    %v3416 = vadd.f32 %v3347, %v3415
    %3417 = vmatprep.mubr.bf16.mxu0 0
    %3418 = vmatmul.mubr.bf16.gmra.mrb[0].mxu0 %v3373
    %v3419 = vpop.f32.mrb[0].mxu0
    %v3420 = vadd.f32 %v3351, %v3419
    %v3421 = vpop.f32.mrb[0].mxu0
    %v3422 = vadd.f32 %v3353, %v3421
    %v3423 = vpop.f32.mrb[0].mxu0
    %v3424 = vadd.f32 %v3355, %v3423
    %v3425 = vpop.f32.mrb[0].mxu0
    %v3426 = vadd.f32 %v3357, %v3425
    %3427 = vdwg.mxu0
    %s3428 = scalar_lea.vmem %s7, 32
    %v3429 = vld [vmem:[%s3428] sm:$0xf]
    %v3430 = vld [vmem:[%s3428 + $0x4] sm:$0xf]
    %v3431 = vld [vmem:[%s3428 + $0x8] sm:$0xf]
    %v3432 = vld [vmem:[%s3428 + $0xc] sm:$0xf]
    %v3437 = vunpack.c.l.b16 %v3429
    %v3438 = vunpack.c.l.b16 %v3430
    %v3439 = vunpack.c.l.b16 %v3431
    %v3440 = vunpack.c.l.b16 %v3432
    %v3441 = vpack.c.b16 %v3438, %v3437
    %v3442 = vpack.c.b16 %v3440, %v3439
    %v3444 = vsel %vm221, %v3441, 0
    %v3447 = vsel %vm221, %v3442, 0
    %3449 = vmatprep.subr.bf16.mxu0 %v3278
    %3450 = vmatpush1.bf16.msra.mxu0 %v3277
    %3451 = vmatprep.subr.bf16.mxu0 0
    %3452 = vmatpush1.bf16.msra.mxu0 0
    %3453 = vmatprep.subr.bf16.mxu0 0
    %3454 = vmatpush1.bf16.msra.mxu0 0
    %3455 = vmatprep.subr.bf16.mxu0 0
    %3456 = vmatpush1.bf16.msra.mxu0 0
    %3457 = vmatprep.subr.bf16.mxu0 0
    %3458 = vmatpush1.bf16.msra.mxu0 0
    %3459 = vmatprep.subr.bf16.mxu0 0
    %3460 = vmatpush1.bf16.msra.mxu0 0
    %3461 = vmatprep.subr.bf16.mxu0 0
    %3462 = vmatpush1.bf16.msra.mxu0 0
    %3463 = vmatprep.subr.bf16.mxu0 0
    %3464 = vmatpush1.bf16.msra.mxu0 0
    %3465 = vmatprep.subr.bf16.mxu0 0
    %3466 = vmatpush1.bf16.msra.mxu0 0
    %3467 = vmatprep.subr.bf16.mxu0 0
    %3468 = vmatpush1.bf16.msra.mxu0 0
    %3469 = vmatprep.subr.bf16.mxu0 0
    %3470 = vmatpush1.bf16.msra.mxu0 0
    %3471 = vmatprep.subr.bf16.mxu0 0
    %3472 = vmatpush1.bf16.msra.mxu0 0
    %3473 = vmatprep.subr.bf16.mxu0 0
    %3474 = vmatpush1.bf16.msra.mxu0 0
    %3475 = vmatprep.subr.bf16.mxu0 0
    %3476 = vmatpush1.bf16.msra.mxu0 0
    %3477 = vmatprep.subr.bf16.mxu0 0
    %3478 = vmatpush1.bf16.msra.mxu0 0
    %3479 = vmatprep.subr.bf16.mxu0 0
    %3480 = vmatpush1.bf16.msra.mxu0 0
    %3481 = vmatprep.mubr.bf16.mxu0 0
    %3482 = vmatmul.mubr.bf16.gmra.mrb[0].mxu0 %v3444
    %v3483 = vpop.f32.mrb[0].mxu0
    %v3484 = vadd.f32 0.0, %v3483
    %v3485 = vpop.f32.mrb[0].mxu0
    %v3486 = vadd.f32 0.0, %v3485
    %v3487 = vpop.f32.mrb[0].mxu0
    %v3488 = vadd.f32 0.0, %v3487
    %v3489 = vpop.f32.mrb[0].mxu0
    %v3490 = vadd.f32 0.0, %v3489
    %3491 = vmatprep.mubr.bf16.mxu0 0
    %3492 = vmatmul.mubr.bf16.gmra.mrb[0].mxu0 %v3447
    %v3493 = vpop.f32.mrb[0].mxu0
    %v3494 = vadd.f32 0.0, %v3493
    %v3495 = vpop.f32.mrb[0].mxu0
    %v3496 = vadd.f32 0.0, %v3495
    %v3497 = vpop.f32.mrb[0].mxu0
    %v3498 = vadd.f32 0.0, %v3497
    %v3499 = vpop.f32.mrb[0].mxu0
    %v3500 = vadd.f32 0.0, %v3499
    %3501 = vdwg.mxu0
    %v3502 = vadd.f32 %v3410, %v3484
    %v3503 = vadd.f32 %v3412, %v3486
    %v3504 = vadd.f32 %v3414, %v3488
    %v3505 = vadd.f32 %v3416, %v3490
    %v3506 = vadd.f32 %v3420, %v3494
    %v3507 = vadd.f32 %v3422, %v3496
    %v3508 = vadd.f32 %v3424, %v3498
    %v3509 = vadd.f32 %v3426, %v3500
    %s3510 = scalar_lea.vmem %s7, 48
    %v3511 = vld [vmem:[%s3510] sm:$0xf]
    %v3512 = vld [vmem:[%s3510 + $0x4] sm:$0xf]
    %v3513 = vld [vmem:[%s3510 + $0x8] sm:$0xf]
    %v3514 = vld [vmem:[%s3510 + $0xc] sm:$0xf]
    %v3519 = vunpack.c.l.b16 %v3511
    %v3520 = vunpack.c.l.b16 %v3512
    %v3521 = vunpack.c.l.b16 %v3513
    %v3522 = vunpack.c.l.b16 %v3514
    %v3523 = vpack.c.b16 %v3520, %v3519
    %v3524 = vpack.c.b16 %v3522, %v3521
    %v3526 = vsel %vm221, %v3523, 0
    %v3529 = vsel %vm221, %v3524, 0
    %3531 = vmatprep.subr.bf16.mxu0 %v3280
    %3532 = vmatpush1.bf16.msra.mxu0 %v3279
    %3533 = vmatprep.subr.bf16.mxu0 0
    %3534 = vmatpush1.bf16.msra.mxu0 0
    %3535 = vmatprep.subr.bf16.mxu0 0
    %3536 = vmatpush1.bf16.msra.mxu0 0
    %3537 = vmatprep.subr.bf16.mxu0 0
    %3538 = vmatpush1.bf16.msra.mxu0 0
    %3539 = vmatprep.subr.bf16.mxu0 0
    %3540 = vmatpush1.bf16.msra.mxu0 0
    %3541 = vmatprep.subr.bf16.mxu0 0
    %3542 = vmatpush1.bf16.msra.mxu0 0
    %3543 = vmatprep.subr.bf16.mxu0 0
    %3544 = vmatpush1.bf16.msra.mxu0 0
    %3545 = vmatprep.subr.bf16.mxu0 0
    %3546 = vmatpush1.bf16.msra.mxu0 0
    %3547 = vmatprep.subr.bf16.mxu0 0
    %3548 = vmatpush1.bf16.msra.mxu0 0
    %3549 = vmatprep.subr.bf16.mxu0 0
    %3550 = vmatpush1.bf16.msra.mxu0 0
    %3551 = vmatprep.subr.bf16.mxu0 0
    %3552 = vmatpush1.bf16.msra.mxu0 0
    %3553 = vmatprep.subr.bf16.mxu0 0
    %3554 = vmatpush1.bf16.msra.mxu0 0
    %3555 = vmatprep.subr.bf16.mxu0 0
    %3556 = vmatpush1.bf16.msra.mxu0 0
    %3557 = vmatprep.subr.bf16.mxu0 0
    %3558 = vmatpush1.bf16.msra.mxu0 0
    %3559 = vmatprep.subr.bf16.mxu0 0
    %3560 = vmatpush1.bf16.msra.mxu0 0
    %3561 = vmatprep.subr.bf16.mxu0 0
    %3562 = vmatpush1.bf16.msra.mxu0 0
    %3563 = vmatprep.mubr.bf16.mxu0 0
    %3564 = vmatmul.mubr.bf16.gmra.mrb[0].mxu0 %v3526
    %v3565 = vpop.f32.mrb[0].mxu0
    %v3566 = vadd.f32 0.0, %v3565
    %v3567 = vpop.f32.mrb[0].mxu0
    %v3568 = vadd.f32 0.0, %v3567
    %v3569 = vpop.f32.mrb[0].mxu0
    %v3570 = vadd.f32 0.0, %v3569
    %v3571 = vpop.f32.mrb[0].mxu0
    %v3572 = vadd.f32 0.0, %v3571
    %3573 = vmatprep.mubr.bf16.mxu0 0
    %3574 = vmatmul.mubr.bf16.gmra.mrb[0].mxu0 %v3529
    %v3575 = vpop.f32.mrb[0].mxu0
    %v3576 = vadd.f32 0.0, %v3575
    %v3577 = vpop.f32.mrb[0].mxu0
    %v3578 = vadd.f32 0.0, %v3577
    %v3579 = vpop.f32.mrb[0].mxu0
    %v3580 = vadd.f32 0.0, %v3579
    %v3581 = vpop.f32.mrb[0].mxu0
    %v3582 = vadd.f32 0.0, %v3581
    %3583 = vdwg.mxu0
    %v3584 = vadd.f32 %v3502, %v3566
    %v3585 = vadd.f32 %v3503, %v3568
    %v3586 = vadd.f32 %v3504, %v3570
    %v3587 = vadd.f32 %v3505, %v3572
    %v3588 = vadd.f32 %v3506, %v3576
    %v3589 = vadd.f32 %v3507, %v3578
    %v3590 = vadd.f32 %v3508, %v3580
    %v3591 = vadd.f32 %v3509, %v3582
    %v3592 = vadd.f32 %v3584, %v3586
    %v3593 = vadd.f32 %v3592, %v3588
    %v3594 = vadd.f32 %v3593, %v3590
    %v3595 = vrot.slane %v3594, 4
    %v3596 = vadd.f32 %v3594, %v3595
    %v3597 = vrot.slane %v3596, 2
    %v3598 = vadd.f32 %v3596, %v3597
    %v3599 = vrot.slane %v3598, 1
    %v3600 = vadd.f32 %v3598, %v3599
    %v3601 = vadd.f32 %v3585, %v3587
    %v3602 = vadd.f32 %v3601, %v3589
    %v3603 = vadd.f32 %v3602, %v3591
    %v3604 = vrot.slane %v3603, 4
    %v3605 = vadd.f32 %v3603, %v3604
    %v3606 = vrot.slane %v3605, 2
    %v3607 = vadd.f32 %v3605, %v3606
    %v3608 = vrot.slane %v3607, 1
    %v3609 = vadd.f32 %v3607, %v3608
    %v3610 = vmul.f32 %v3584, %v3584
    %v3611 = vmul.f32 %v3585, %v3585
    %v3612 = vmul.f32 %v3586, %v3586
    %v3613 = vmul.f32 %v3587, %v3587
    %v3614 = vmul.f32 %v3588, %v3588
    %v3615 = vmul.f32 %v3589, %v3589
    %v3616 = vmul.f32 %v3590, %v3590
    %v3617 = vmul.f32 %v3591, %v3591
    %v3618 = vadd.f32 %v3610, %v3612
    %v3619 = vadd.f32 %v3618, %v3614
    %v3620 = vadd.f32 %v3619, %v3616
    %v3621 = vrot.slane %v3620, 4
    %v3622 = vadd.f32 %v3620, %v3621
    %v3623 = vrot.slane %v3622, 2
    %v3624 = vadd.f32 %v3622, %v3623
    %v3625 = vrot.slane %v3624, 1
    %v3626 = vadd.f32 %v3624, %v3625
    %v3627 = vadd.f32 %v3611, %v3613
    %v3628 = vadd.f32 %v3627, %v3615
    %v3629 = vadd.f32 %v3628, %v3617
    %v3630 = vrot.slane %v3629, 4
    %v3631 = vadd.f32 %v3629, %v3630
    %v3632 = vrot.slane %v3631, 2
    %v3633 = vadd.f32 %v3631, %v3632
    %v3634 = vrot.slane %v3633, 1
    %v3635 = vadd.f32 %v3633, %v3634
    %v3636 = vsel %vm404, %v3600, %v3626
    %v3637 = vsel %vm404, %v3609, %v3635
    %v3638 = vld [vmem:[%s11] sm:$0xff]
    %v3639 = vld [vmem:[%s11 + $0x8] sm:$0xff]
    %v3640 = vld [vmem:[%s11 + $0x10] sm:$0xff]
    %v3641 = vld [vmem:[%s11 + $0x18] sm:$0xff]
    %v3642 = vld [vmem:[%s11 + $0x20] sm:$0xff]
    %v3643 = vld [vmem:[%s11 + $0x28] sm:$0xff]
    %v3644 = vld [vmem:[%s11 + $0x30] sm:$0xff]
    %v3645 = vld [vmem:[%s11 + $0x38] sm:$0xff]
    %v3646 = vld [vmem:[%s11 + $0x40] sm:$0xff]
    %v3647 = vld [vmem:[%s11 + $0x48] sm:$0xff]
    %v3648 = vld [vmem:[%s11 + $0x50] sm:$0xff]
    %v3649 = vld [vmem:[%s11 + $0x58] sm:$0xff]
    %v3650 = vld [vmem:[%s11 + $0x60] sm:$0xff]
    %v3651 = vld [vmem:[%s11 + $0x68] sm:$0xff]
    %v3652 = vld [vmem:[%s11 + $0x70] sm:$0xff]
    %v3653 = vld [vmem:[%s11 + $0x78] sm:$0xff]
    %v3654 = vld [vmem:[%s11 + $0x80] sm:$0xff]
    %v3655 = vld [vmem:[%s11 + $0x88] sm:$0xff]
    %v3656 = vld [vmem:[%s11 + $0x90] sm:$0xff]
    %v3657 = vld [vmem:[%s11 + $0x98] sm:$0xff]
    %v3658 = vld [vmem:[%s11 + $0xa0] sm:$0xff]
    %v3659 = vld [vmem:[%s11 + $0xa8] sm:$0xff]
    %v3660 = vld [vmem:[%s11 + $0xb0] sm:$0xff]
    %v3661 = vld [vmem:[%s11 + $0xb8] sm:$0xff]
    %v3662 = vld [vmem:[%s11 + $0xc0] sm:$0xff]
    %v3663 = vld [vmem:[%s11 + $0xc8] sm:$0xff]
    %v3664 = vld [vmem:[%s11 + $0xd0] sm:$0xff]
    %v3665 = vld [vmem:[%s11 + $0xd8] sm:$0xff]
    %v3666 = vld [vmem:[%s11 + $0xe0] sm:$0xff]
    %v3667 = vld [vmem:[%s11 + $0xe8] sm:$0xff]
    %v3668 = vld [vmem:[%s11 + $0xf0] sm:$0xff]
    %v3669 = vld [vmem:[%s11 + $0xf8] sm:$0xff]
    %3670 = vmatprep.subr.mxu0 0.0
    %3671 = vmatpush1.msra.mxu0 %v3638
    %3672 = vmatprep.subr.mxu0 0.0
    %3673 = vmatpush1.msra.mxu0 %v3639
    %3674 = vmatprep.subr.mxu0 0.0
    %3675 = vmatpush1.msra.mxu0 %v3640
    %3676 = vmatprep.subr.mxu0 0.0
    %3677 = vmatpush1.msra.mxu0 %v3641
    %3678 = vmatprep.subr.mxu0 0.0
    %3679 = vmatpush1.msra.mxu0 %v3642
    %3680 = vmatprep.subr.mxu0 0.0
    %3681 = vmatpush1.msra.mxu0 %v3643
    %3682 = vmatprep.subr.mxu0 0.0
    %3683 = vmatpush1.msra.mxu0 %v3644
    %3684 = vmatprep.subr.mxu0 0.0
    %3685 = vmatpush1.msra.mxu0 %v3645
    %3686 = vmatprep.subr.mxu0 0.0
    %3687 = vmatpush1.msra.mxu0 %v3646
    %3688 = vmatprep.subr.mxu0 0.0
    %3689 = vmatpush1.msra.mxu0 %v3647
    %3690 = vmatprep.subr.mxu0 0.0
    %3691 = vmatpush1.msra.mxu0 %v3648
    %3692 = vmatprep.subr.mxu0 0.0
    %3693 = vmatpush1.msra.mxu0 %v3649
    %3694 = vmatprep.subr.mxu0 0.0
    %3695 = vmatpush1.msra.mxu0 %v3650
    %3696 = vmatprep.subr.mxu0 0.0
    %3697 = vmatpush1.msra.mxu0 %v3651
    %3698 = vmatprep.subr.mxu0 0.0
    %3699 = vmatpush1.msra.mxu0 %v3652
    %3700 = vmatprep.subr.mxu0 0.0
    %3701 = vmatpush1.msra.mxu0 %v3653
    %3702 = vmatprep.subr.mxu0 0.0
    %3703 = vmatpush1.msra.mxu0 %v3654
    %3704 = vmatprep.subr.mxu0 0.0
    %3705 = vmatpush1.msra.mxu0 %v3655
    %3706 = vmatprep.subr.mxu0 0.0
    %3707 = vmatpush1.msra.mxu0 %v3656
    %3708 = vmatprep.subr.mxu0 0.0
    %3709 = vmatpush1.msra.mxu0 %v3657
    %3710 = vmatprep.subr.mxu0 0.0
    %3711 = vmatpush1.msra.mxu0 %v3658
    %3712 = vmatprep.subr.mxu0 0.0
    %3713 = vmatpush1.msra.mxu0 %v3659
    %3714 = vmatprep.subr.mxu0 0.0
    %3715 = vmatpush1.msra.mxu0 %v3660
    %3716 = vmatprep.subr.mxu0 0.0
    %3717 = vmatpush1.msra.mxu0 %v3661
    %3718 = vmatprep.subr.mxu0 0.0
    %3719 = vmatpush1.msra.mxu0 %v3662
    %3720 = vmatprep.subr.mxu0 0.0
    %3721 = vmatpush1.msra.mxu0 %v3663
    %3722 = vmatprep.subr.mxu0 0.0
    %3723 = vmatpush1.msra.mxu0 %v3664
    %3724 = vmatprep.subr.mxu0 0.0
    %3725 = vmatpush1.msra.mxu0 %v3665
    %3726 = vmatprep.subr.mxu0 0.0
    %3727 = vmatpush1.msra.mxu0 %v3666
    %3728 = vmatprep.subr.mxu0 0.0
    %3729 = vmatpush1.msra.mxu0 %v3667
    %3730 = vmatprep.subr.mxu0 0.0
    %3731 = vmatpush1.msra.mxu0 %v3668
    %3732 = vmatprep.subr.mxu0 0.0
    %3733 = vmatpush1.msra.mxu0 %v3669
    %3734 = vmatprep.mubr.f32.mxu0 %v3637
    %3735 = vmatmul.mubr.f32.gmra.mrb[0].mxu0 %v3636
    %v3736 = vpop.f32.mrb[0].mxu0
    %v3737 = vadd.f32 0.0, %v3736
    %v3738 = vpop.f32.mrb[0].mxu0
    %3739 = vdwg.mxu0
    %v3740 = vmul.f32 %v3737, 0.001953125
    %v3741 = vmul.f32 %v3740, %v3740
    %v3743 = vrot.slane %v3741, 7
    %v3745 = vsub.f32 %v3740, %v3743
    %v3746 = vmax.f32 %v3745, 0.0
    %v3747 = vld [vmem:[#allocation12] sm:$0x3]
    %v3748 = vadd.f32 %v3746, 1e-05
    %v3749 = vrsqrt.pop %v3748
    %v3751 = vrot.slane %v3749, 1
    %v3753 = vmul.f32 %v3747, %v3751
    %v3754 = vmul.f32 %v3740, %v3753
    %v3756 = vrot.slane %v3754, 7
    %v3758 = vsub.f32 %v3747, %v3756
    %v3759 = vsel %vm404, %v3753, %v3758
    %v3760 = vld [vmem:[#allocation6] sm:$0xff]
    %v3761 = vld [vmem:[#allocation6 + $0x8] sm:$0xff]
    %v3762 = vld [vmem:[#allocation6 + $0x10] sm:$0xff]
    %v3763 = vld [vmem:[#allocation6 + $0x18] sm:$0xff]
    %v3765 = vsel %vm221, %v3759, 0
    %3767 = vmatprep.subr.mxu0 %v3761
    %3768 = vmatpush1.msra.mxu0 %v3760
    %3769 = vmatprep.subr.mxu0 %v3763
    %3770 = vmatpush1.msra.mxu0 %v3762
    %3771 = vmatprep.subr.mxu0 0.0
    %3772 = vmatpush1.msra.mxu0 0.0
    %3773 = vmatprep.subr.mxu0 0.0
    %3774 = vmatpush1.msra.mxu0 0.0
    %3775 = vmatprep.subr.mxu0 0.0
    %3776 = vmatpush1.msra.mxu0 0.0
    %3777 = vmatprep.subr.mxu0 0.0
    %3778 = vmatpush1.msra.mxu0 0.0
    %3779 = vmatprep.subr.mxu0 0.0
    %3780 = vmatpush1.msra.mxu0 0.0
    %3781 = vmatprep.subr.mxu0 0.0
    %3782 = vmatpush1.msra.mxu0 0.0
    %3783 = vmatprep.subr.mxu0 0.0
    %3784 = vmatpush1.msra.mxu0 0.0
    %3785 = vmatprep.subr.mxu0 0.0
    %3786 = vmatpush1.msra.mxu0 0.0
    %3787 = vmatprep.subr.mxu0 0.0
    %3788 = vmatpush1.msra.mxu0 0.0
    %3789 = vmatprep.subr.mxu0 0.0
    %3790 = vmatpush1.msra.mxu0 0.0
    %3791 = vmatprep.subr.mxu0 0.0
    %3792 = vmatpush1.msra.mxu0 0.0
    %3793 = vmatprep.subr.mxu0 0.0
    %3794 = vmatpush1.msra.mxu0 0.0
    %3795 = vmatprep.subr.mxu0 0.0
    %3796 = vmatpush1.msra.mxu0 0.0
    %3797 = vmatprep.subr.mxu0 0.0
    %3798 = vmatpush1.msra.mxu0 0.0
    %3799 = vmatprep.subr.mxu0 0.0
    %3800 = vmatpush1.msra.mxu0 0.0
    %3801 = vmatprep.subr.mxu0 0.0
    %3802 = vmatpush1.msra.mxu0 0.0
    %3803 = vmatprep.subr.mxu0 0.0
    %3804 = vmatpush1.msra.mxu0 0.0
    %3805 = vmatprep.subr.mxu0 0.0
    %3806 = vmatpush1.msra.mxu0 0.0
    %3807 = vmatprep.subr.mxu0 0.0
    %3808 = vmatpush1.msra.mxu0 0.0
    %3809 = vmatprep.subr.mxu0 0.0
    %3810 = vmatpush1.msra.mxu0 0.0
    %3811 = vmatprep.subr.mxu0 0.0
    %3812 = vmatpush1.msra.mxu0 0.0
    %3813 = vmatprep.subr.mxu0 0.0
    %3814 = vmatpush1.msra.mxu0 0.0
    %3815 = vmatprep.subr.mxu0 0.0
    %3816 = vmatpush1.msra.mxu0 0.0
    %3817 = vmatprep.subr.mxu0 0.0
    %3818 = vmatpush1.msra.mxu0 0.0
    %3819 = vmatprep.subr.mxu0 0.0
    %3820 = vmatpush1.msra.mxu0 0.0
    %3821 = vmatprep.subr.mxu0 0.0
    %3822 = vmatpush1.msra.mxu0 0.0
    %3823 = vmatprep.subr.mxu0 0.0
    %3824 = vmatpush1.msra.mxu0 0.0
    %3825 = vmatprep.subr.mxu0 0.0
    %3826 = vmatpush1.msra.mxu0 0.0
    %3827 = vmatprep.subr.mxu0 0.0
    %3828 = vmatpush1.msra.mxu0 0.0
    %3829 = vmatprep.subr.mxu0 0.0
    %3830 = vmatpush1.msra.mxu0 0.0
    %3831 = vmatprep.mubr.f32.mxu0 0.0
    %3832 = vmatmul.mubr.f32.gmra.mrb[0].mxu0 %v3765
    %v3833 = vpop.f32.mrb[0].mxu0
    %v3834 = vadd.f32 0.0, %v3833
    %v3835 = vpop.f32.mrb[0].mxu0
    %v3836 = vadd.f32 0.0, %v3835
    %3837 = vdwg.mxu0
    %v3838 = vlaneseq
    %v3839 = vshrl.u32 %v3838, 7
    %v3840 = vsub.s32 0, %v3839
    %v3841 = vrot.slane %v3834, %v3840
    %v3842 = vlaneseq
    %v3843 = vshrl.u32 %v3842, 7
    %v3844 = vsub.s32 0, %v3843
    %v3845 = vrot.slane %v3836, %v3844
    %v3846 = vmul.f32 %v3584, %v3841
    %v3847 = vmul.f32 %v3585, %v3845
    %v3848 = vmul.f32 %v3586, %v3841
    %v3849 = vmul.f32 %v3587, %v3845
    %v3850 = vmul.f32 %v3588, %v3841
    %v3851 = vmul.f32 %v3589, %v3845
    %v3852 = vmul.f32 %v3590, %v3841
    %v3853 = vmul.f32 %v3591, %v3845
    %v3854 = vlaneseq
    %v3855 = vshrl.u32 %v3854, 7
    %v3856 = vsub.s32 1, %v3855
    %v3857 = vrot.slane %v3834, %v3856
    %v3858 = vlaneseq
    %v3859 = vshrl.u32 %v3858, 7
    %v3860 = vsub.s32 1, %v3859
    %v3861 = vrot.slane %v3836, %v3860
    %v3862 = vadd.f32 %v3846, %v3857
    %v3863 = vadd.f32 %v3847, %v3861
    %v3864 = vadd.f32 %v3848, %v3857
    %v3865 = vadd.f32 %v3849, %v3861
    %v3866 = vadd.f32 %v3850, %v3857
    %v3867 = vadd.f32 %v3851, %v3861
    %v3868 = vadd.f32 %v3852, %v3857
    %v3869 = vadd.f32 %v3853, %v3861
    %v3870 = vmax.f32 %v3862, 0.0
    %v3871 = vmax.f32 %v3863, 0.0
    %v3872 = vmax.f32 %v3864, 0.0
    %v3873 = vmax.f32 %v3865, 0.0
    %v3874 = vmax.f32 %v3866, 0.0
    %v3875 = vmax.f32 %v3867, 0.0
    %v3876 = vmax.f32 %v3868, 0.0
    %v3877 = vmax.f32 %v3869, 0.0
    %v3878 = vpack.c.bf16 %v3872, %v3870
    %v3879 = vpack.c.bf16 %v3873, %v3871
    %v3880 = vpack.c.bf16 %v3876, %v3874
    %v3881 = vpack.c.bf16 %v3877, %v3875
    %v3882 = vld [vmem:[#allocation4] sm:$0xff]
    %v3883 = vld [vmem:[#allocation4 + $0x8] sm:$0xff]
    %v3884 = vld [vmem:[#allocation4 + $0x10] sm:$0xff]
    %v3885 = vld [vmem:[#allocation4 + $0x18] sm:$0xff]
    %v3886 = vld [vmem:[#allocation4 + $0x20] sm:$0xff]
    %v3887 = vld [vmem:[#allocation4 + $0x28] sm:$0xff]
    %v3888 = vld [vmem:[#allocation4 + $0x30] sm:$0xff]
    %v3889 = vld [vmem:[#allocation4 + $0x38] sm:$0xff]
    %v3890 = vld [vmem:[#allocation4 + $0x40] sm:$0xff]
    %v3891 = vld [vmem:[#allocation4 + $0x48] sm:$0xff]
    %v3892 = vld [vmem:[#allocation4 + $0x50] sm:$0xff]
    %v3893 = vld [vmem:[#allocation4 + $0x58] sm:$0xff]
    %v3894 = vld [vmem:[#allocation4 + $0x60] sm:$0xff]
    %v3895 = vld [vmem:[#allocation4 + $0x68] sm:$0xff]
    %v3896 = vld [vmem:[#allocation4 + $0x70] sm:$0xff]
    %v3897 = vld [vmem:[#allocation4 + $0x78] sm:$0xff]
    %v3898 = vld [vmem:[#allocation4 + $0x80] sm:$0xff]
    %v3899 = vld [vmem:[#allocation4 + $0x88] sm:$0xff]
    %v3900 = vld [vmem:[#allocation4 + $0x90] sm:$0xff]
    %v3901 = vld [vmem:[#allocation4 + $0x98] sm:$0xff]
    %v3902 = vld [vmem:[#allocation4 + $0xa0] sm:$0xff]
    %v3903 = vld [vmem:[#allocation4 + $0xa8] sm:$0xff]
    %v3904 = vld [vmem:[#allocation4 + $0xb0] sm:$0xff]
    %v3905 = vld [vmem:[#allocation4 + $0xb8] sm:$0xff]
    %v3906 = vld [vmem:[#allocation4 + $0xc0] sm:$0xff]
    %v3907 = vld [vmem:[#allocation4 + $0xc8] sm:$0xff]
    %v3908 = vld [vmem:[#allocation4 + $0xd0] sm:$0xff]
    %v3909 = vld [vmem:[#allocation4 + $0xd8] sm:$0xff]
    %v3910 = vld [vmem:[#allocation4 + $0xe0] sm:$0xff]
    %v3911 = vld [vmem:[#allocation4 + $0xe8] sm:$0xff]
    %v3912 = vld [vmem:[#allocation4 + $0xf0] sm:$0xff]
    %v3913 = vld [vmem:[#allocation4 + $0xf8] sm:$0xff]
    %v3914 = vld [vmem:[#allocation4 + $0x100] sm:$0xff]
    %v3915 = vld [vmem:[#allocation4 + $0x108] sm:$0xff]
    %v3916 = vld [vmem:[#allocation4 + $0x110] sm:$0xff]
    %v3917 = vld [vmem:[#allocation4 + $0x118] sm:$0xff]
    %v3918 = vld [vmem:[#allocation4 + $0x120] sm:$0xff]
    %v3919 = vld [vmem:[#allocation4 + $0x128] sm:$0xff]
    %v3920 = vld [vmem:[#allocation4 + $0x130] sm:$0xff]
    %v3921 = vld [vmem:[#allocation4 + $0x138] sm:$0xff]
    %v3922 = vld [vmem:[#allocation4 + $0x140] sm:$0xff]
    %v3923 = vld [vmem:[#allocation4 + $0x148] sm:$0xff]
    %v3924 = vld [vmem:[#allocation4 + $0x150] sm:$0xff]
    %v3925 = vld [vmem:[#allocation4 + $0x158] sm:$0xff]
    %v3926 = vld [vmem:[#allocation4 + $0x160] sm:$0xff]
    %v3927 = vld [vmem:[#allocation4 + $0x168] sm:$0xff]
    %v3928 = vld [vmem:[#allocation4 + $0x170] sm:$0xff]
    %v3929 = vld [vmem:[#allocation4 + $0x178] sm:$0xff]
    %v3930 = vld [vmem:[#allocation4 + $0x180] sm:$0xff]
    %v3931 = vld [vmem:[#allocation4 + $0x188] sm:$0xff]
    %v3932 = vld [vmem:[#allocation4 + $0x190] sm:$0xff]
    %v3933 = vld [vmem:[#allocation4 + $0x198] sm:$0xff]
    %v3934 = vld [vmem:[#allocation4 + $0x1a0] sm:$0xff]
    %v3935 = vld [vmem:[#allocation4 + $0x1a8] sm:$0xff]
    %v3936 = vld [vmem:[#allocation4 + $0x1b0] sm:$0xff]
    %v3937 = vld [vmem:[#allocation4 + $0x1b8] sm:$0xff]
    %v3938 = vld [vmem:[#allocation4 + $0x1c0] sm:$0xff]
    %v3939 = vld [vmem:[#allocation4 + $0x1c8] sm:$0xff]
    %v3940 = vld [vmem:[#allocation4 + $0x1d0] sm:$0xff]
    %v3941 = vld [vmem:[#allocation4 + $0x1d8] sm:$0xff]
    %v3942 = vld [vmem:[#allocation4 + $0x1e0] sm:$0xff]
    %v3943 = vld [vmem:[#allocation4 + $0x1e8] sm:$0xff]
    %v3944 = vld [vmem:[#allocation4 + $0x1f0] sm:$0xff]
    %v3945 = vld [vmem:[#allocation4 + $0x1f8] sm:$0xff]
    %v3946 = vld [vmem:[#allocation4 + $0x200] sm:$0xff]
    %v3947 = vld [vmem:[#allocation4 + $0x208] sm:$0xff]
    %v3948 = vld [vmem:[#allocation4 + $0x210] sm:$0xff]
    %v3949 = vld [vmem:[#allocation4 + $0x218] sm:$0xff]
    %v3950 = vld [vmem:[#allocation4 + $0x220] sm:$0xff]
    %v3951 = vld [vmem:[#allocation4 + $0x228] sm:$0xff]
    %v3952 = vld [vmem:[#allocation4 + $0x230] sm:$0xff]
    %v3953 = vld [vmem:[#allocation4 + $0x238] sm:$0xff]
    %v3954 = vld [vmem:[#allocation4 + $0x240] sm:$0xff]
    %v3955 = vld [vmem:[#allocation4 + $0x248] sm:$0xff]
    %v3956 = vld [vmem:[#allocation4 + $0x250] sm:$0xff]
    %v3957 = vld [vmem:[#allocation4 + $0x258] sm:$0xff]
    %v3958 = vld [vmem:[#allocation4 + $0x260] sm:$0xff]
    %v3959 = vld [vmem:[#allocation4 + $0x268] sm:$0xff]
    %v3960 = vld [vmem:[#allocation4 + $0x270] sm:$0xff]
    %v3961 = vld [vmem:[#allocation4 + $0x278] sm:$0xff]
    %v3962 = vld [vmem:[#allocation4 + $0x280] sm:$0xff]
    %v3963 = vld [vmem:[#allocation4 + $0x288] sm:$0xff]
    %v3964 = vld [vmem:[#allocation4 + $0x290] sm:$0xff]
    %v3965 = vld [vmem:[#allocation4 + $0x298] sm:$0xff]
    %v3966 = vld [vmem:[#allocation4 + $0x2a0] sm:$0xff]
    %v3967 = vld [vmem:[#allocation4 + $0x2a8] sm:$0xff]
    %v3968 = vld [vmem:[#allocation4 + $0x2b0] sm:$0xff]
    %v3969 = vld [vmem:[#allocation4 + $0x2b8] sm:$0xff]
    %v3970 = vld [vmem:[#allocation4 + $0x2c0] sm:$0xff]
    %v3971 = vld [vmem:[#allocation4 + $0x2c8] sm:$0xff]
    %v3972 = vld [vmem:[#allocation4 + $0x2d0] sm:$0xff]
    %v3973 = vld [vmem:[#allocation4 + $0x2d8] sm:$0xff]
    %v3974 = vld [vmem:[#allocation4 + $0x2e0] sm:$0xff]
    %v3975 = vld [vmem:[#allocation4 + $0x2e8] sm:$0xff]
    %v3976 = vld [vmem:[#allocation4 + $0x2f0] sm:$0xff]
    %v3977 = vld [vmem:[#allocation4 + $0x2f8] sm:$0xff]
    %v3978 = vld [vmem:[#allocation4 + $0x300] sm:$0xff]
    %v3979 = vld [vmem:[#allocation4 + $0x308] sm:$0xff]
    %v3980 = vld [vmem:[#allocation4 + $0x310] sm:$0xff]
    %v3981 = vld [vmem:[#allocation4 + $0x318] sm:$0xff]
    %v3982 = vld [vmem:[#allocation4 + $0x320] sm:$0xff]
    %v3983 = vld [vmem:[#allocation4 + $0x328] sm:$0xff]
    %v3984 = vld [vmem:[#allocation4 + $0x330] sm:$0xff]
    %v3985 = vld [vmem:[#allocation4 + $0x338] sm:$0xff]
    %v3986 = vld [vmem:[#allocation4 + $0x340] sm:$0xff]
    %v3987 = vld [vmem:[#allocation4 + $0x348] sm:$0xff]
    %v3988 = vld [vmem:[#allocation4 + $0x350] sm:$0xff]
    %v3989 = vld [vmem:[#allocation4 + $0x358] sm:$0xff]
    %v3990 = vld [vmem:[#allocation4 + $0x360] sm:$0xff]
    %v3991 = vld [vmem:[#allocation4 + $0x368] sm:$0xff]
    %v3992 = vld [vmem:[#allocation4 + $0x370] sm:$0xff]
    %v3993 = vld [vmem:[#allocation4 + $0x378] sm:$0xff]
    %v3994 = vld [vmem:[#allocation4 + $0x380] sm:$0xff]
    %v3995 = vld [vmem:[#allocation4 + $0x388] sm:$0xff]
    %v3996 = vld [vmem:[#allocation4 + $0x390] sm:$0xff]
    %v3997 = vld [vmem:[#allocation4 + $0x398] sm:$0xff]
    %v3998 = vld [vmem:[#allocation4 + $0x3a0] sm:$0xff]
    %v3999 = vld [vmem:[#allocation4 + $0x3a8] sm:$0xff]
    %v4000 = vld [vmem:[#allocation4 + $0x3b0] sm:$0xff]
    %v4001 = vld [vmem:[#allocation4 + $0x3b8] sm:$0xff]
    %v4002 = vld [vmem:[#allocation4 + $0x3c0] sm:$0xff]
    %v4003 = vld [vmem:[#allocation4 + $0x3c8] sm:$0xff]
    %v4004 = vld [vmem:[#allocation4 + $0x3d0] sm:$0xff]
    %v4005 = vld [vmem:[#allocation4 + $0x3d8] sm:$0xff]
    %v4006 = vld [vmem:[#allocation4 + $0x3e0] sm:$0xff]
    %v4007 = vld [vmem:[#allocation4 + $0x3e8] sm:$0xff]
    %v4008 = vld [vmem:[#allocation4 + $0x3f0] sm:$0xff]
    %v4009 = vld [vmem:[#allocation4 + $0x3f8] sm:$0xff]
    %v4138 = vunpack.c.l.b16 %v3882
    %v4139 = vunpack.c.h.b16 %v3882
    %v4140 = vunpack.c.l.b16 %v3883
    %v4141 = vunpack.c.h.b16 %v3883
    %v4142 = vunpack.c.l.b16 %v3884
    %v4143 = vunpack.c.h.b16 %v3884
    %v4144 = vunpack.c.l.b16 %v3885
    %v4145 = vunpack.c.h.b16 %v3885
    %v4146 = vunpack.c.l.b16 %v3886
    %v4147 = vunpack.c.h.b16 %v3886
    %v4148 = vunpack.c.l.b16 %v3887
    %v4149 = vunpack.c.h.b16 %v3887
    %v4150 = vunpack.c.l.b16 %v3888
    %v4151 = vunpack.c.h.b16 %v3888
    %v4152 = vunpack.c.l.b16 %v3889
    %v4153 = vunpack.c.h.b16 %v3889
    %v4154 = vunpack.c.l.b16 %v3890
    %v4155 = vunpack.c.h.b16 %v3890
    %v4156 = vunpack.c.l.b16 %v3891
    %v4157 = vunpack.c.h.b16 %v3891
    %v4158 = vunpack.c.l.b16 %v3892
    %v4159 = vunpack.c.h.b16 %v3892
    %v4160 = vunpack.c.l.b16 %v3893
    %v4161 = vunpack.c.h.b16 %v3893
    %v4162 = vunpack.c.l.b16 %v3894
    %v4163 = vunpack.c.h.b16 %v3894
    %v4164 = vunpack.c.l.b16 %v3895
    %v4165 = vunpack.c.h.b16 %v3895
    %v4166 = vunpack.c.l.b16 %v3896
    %v4167 = vunpack.c.h.b16 %v3896
    %v4168 = vunpack.c.l.b16 %v3897
    %v4169 = vunpack.c.h.b16 %v3897
    %v4170 = vunpack.c.l.b16 %v3898
    %v4171 = vunpack.c.h.b16 %v3898
    %v4172 = vunpack.c.l.b16 %v3899
    %v4173 = vunpack.c.h.b16 %v3899
    %v4174 = vunpack.c.l.b16 %v3900
    %v4175 = vunpack.c.h.b16 %v3900
    %v4176 = vunpack.c.l.b16 %v3901
    %v4177 = vunpack.c.h.b16 %v3901
    %v4178 = vunpack.c.l.b16 %v3902
    %v4179 = vunpack.c.h.b16 %v3902
    %v4180 = vunpack.c.l.b16 %v3903
    %v4181 = vunpack.c.h.b16 %v3903
    %v4182 = vunpack.c.l.b16 %v3904
    %v4183 = vunpack.c.h.b16 %v3904
    %v4184 = vunpack.c.l.b16 %v3905
    %v4185 = vunpack.c.h.b16 %v3905
    %v4186 = vunpack.c.l.b16 %v3906
    %v4187 = vunpack.c.h.b16 %v3906
    %v4188 = vunpack.c.l.b16 %v3907
    %v4189 = vunpack.c.h.b16 %v3907
    %v4190 = vunpack.c.l.b16 %v3908
    %v4191 = vunpack.c.h.b16 %v3908
    %v4192 = vunpack.c.l.b16 %v3909
    %v4193 = vunpack.c.h.b16 %v3909
    %v4194 = vunpack.c.l.b16 %v3910
    %v4195 = vunpack.c.h.b16 %v3910
    %v4196 = vunpack.c.l.b16 %v3911
    %v4197 = vunpack.c.h.b16 %v3911
    %v4198 = vunpack.c.l.b16 %v3912
    %v4199 = vunpack.c.h.b16 %v3912
    %v4200 = vunpack.c.l.b16 %v3913
    %v4201 = vunpack.c.h.b16 %v3913
    %v4202 = vunpack.c.l.b16 %v3914
    %v4203 = vunpack.c.h.b16 %v3914
    %v4204 = vunpack.c.l.b16 %v3915
    %v4205 = vunpack.c.h.b16 %v3915
    %v4206 = vunpack.c.l.b16 %v3916
    %v4207 = vunpack.c.h.b16 %v3916
    %v4208 = vunpack.c.l.b16 %v3917
    %v4209 = vunpack.c.h.b16 %v3917
    %v4210 = vunpack.c.l.b16 %v3918
    %v4211 = vunpack.c.h.b16 %v3918
    %v4212 = vunpack.c.l.b16 %v3919
    %v4213 = vunpack.c.h.b16 %v3919
    %v4214 = vunpack.c.l.b16 %v3920
    %v4215 = vunpack.c.h.b16 %v3920
    %v4216 = vunpack.c.l.b16 %v3921
    %v4217 = vunpack.c.h.b16 %v3921
    %v4218 = vunpack.c.l.b16 %v3922
    %v4219 = vunpack.c.h.b16 %v3922
    %v4220 = vunpack.c.l.b16 %v3923
    %v4221 = vunpack.c.h.b16 %v3923
    %v4222 = vunpack.c.l.b16 %v3924
    %v4223 = vunpack.c.h.b16 %v3924
    %v4224 = vunpack.c.l.b16 %v3925
    %v4225 = vunpack.c.h.b16 %v3925
    %v4226 = vunpack.c.l.b16 %v3926
    %v4227 = vunpack.c.h.b16 %v3926
    %v4228 = vunpack.c.l.b16 %v3927
    %v4229 = vunpack.c.h.b16 %v3927
    %v4230 = vunpack.c.l.b16 %v3928
    %v4231 = vunpack.c.h.b16 %v3928
    %v4232 = vunpack.c.l.b16 %v3929
    %v4233 = vunpack.c.h.b16 %v3929
    %v4234 = vunpack.c.l.b16 %v3930
    %v4235 = vunpack.c.h.b16 %v3930
    %v4236 = vunpack.c.l.b16 %v3931
    %v4237 = vunpack.c.h.b16 %v3931
    %v4238 = vunpack.c.l.b16 %v3932
    %v4239 = vunpack.c.h.b16 %v3932
    %v4240 = vunpack.c.l.b16 %v3933
    %v4241 = vunpack.c.h.b16 %v3933
    %v4242 = vunpack.c.l.b16 %v3934
    %v4243 = vunpack.c.h.b16 %v3934
    %v4244 = vunpack.c.l.b16 %v3935
    %v4245 = vunpack.c.h.b16 %v3935
    %v4246 = vunpack.c.l.b16 %v3936
    %v4247 = vunpack.c.h.b16 %v3936
    %v4248 = vunpack.c.l.b16 %v3937
    %v4249 = vunpack.c.h.b16 %v3937
    %v4250 = vunpack.c.l.b16 %v3938
    %v4251 = vunpack.c.h.b16 %v3938
    %v4252 = vunpack.c.l.b16 %v3939
    %v4253 = vunpack.c.h.b16 %v3939
    %v4254 = vunpack.c.l.b16 %v3940
    %v4255 = vunpack.c.h.b16 %v3940
    %v4256 = vunpack.c.l.b16 %v3941
    %v4257 = vunpack.c.h.b16 %v3941
    %v4258 = vunpack.c.l.b16 %v3942
    %v4259 = vunpack.c.h.b16 %v3942
    %v4260 = vunpack.c.l.b16 %v3943
    %v4261 = vunpack.c.h.b16 %v3943
    %v4262 = vunpack.c.l.b16 %v3944
    %v4263 = vunpack.c.h.b16 %v3944
    %v4264 = vunpack.c.l.b16 %v3945
    %v4265 = vunpack.c.h.b16 %v3945
    %v4266 = vunpack.c.l.b16 %v3946
    %v4267 = vunpack.c.h.b16 %v3946
    %v4268 = vunpack.c.l.b16 %v3947
    %v4269 = vunpack.c.h.b16 %v3947
    %v4270 = vunpack.c.l.b16 %v3948
    %v4271 = vunpack.c.h.b16 %v3948
    %v4272 = vunpack.c.l.b16 %v3949
    %v4273 = vunpack.c.h.b16 %v3949
    %v4274 = vunpack.c.l.b16 %v3950
    %v4275 = vunpack.c.h.b16 %v3950
    %v4276 = vunpack.c.l.b16 %v3951
    %v4277 = vunpack.c.h.b16 %v3951
    %v4278 = vunpack.c.l.b16 %v3952
    %v4279 = vunpack.c.h.b16 %v3952
    %v4280 = vunpack.c.l.b16 %v3953
    %v4281 = vunpack.c.h.b16 %v3953
    %v4282 = vunpack.c.l.b16 %v3954
    %v4283 = vunpack.c.h.b16 %v3954
    %v4284 = vunpack.c.l.b16 %v3955
    %v4285 = vunpack.c.h.b16 %v3955
    %v4286 = vunpack.c.l.b16 %v3956
    %v4287 = vunpack.c.h.b16 %v3956
    %v4288 = vunpack.c.l.b16 %v3957
    %v4289 = vunpack.c.h.b16 %v3957
    %v4290 = vunpack.c.l.b16 %v3958
    %v4291 = vunpack.c.h.b16 %v3958
    %v4292 = vunpack.c.l.b16 %v3959
    %v4293 = vunpack.c.h.b16 %v3959
    %v4294 = vunpack.c.l.b16 %v3960
    %v4295 = vunpack.c.h.b16 %v3960
    %v4296 = vunpack.c.l.b16 %v3961
    %v4297 = vunpack.c.h.b16 %v3961
    %v4298 = vunpack.c.l.b16 %v3962
    %v4299 = vunpack.c.h.b16 %v3962
    %v4300 = vunpack.c.l.b16 %v3963
    %v4301 = vunpack.c.h.b16 %v3963
    %v4302 = vunpack.c.l.b16 %v3964
    %v4303 = vunpack.c.h.b16 %v3964
    %v4304 = vunpack.c.l.b16 %v3965
    %v4305 = vunpack.c.h.b16 %v3965
    %v4306 = vunpack.c.l.b16 %v3966
    %v4307 = vunpack.c.h.b16 %v3966
    %v4308 = vunpack.c.l.b16 %v3967
    %v4309 = vunpack.c.h.b16 %v3967
    %v4310 = vunpack.c.l.b16 %v3968
    %v4311 = vunpack.c.h.b16 %v3968
    %v4312 = vunpack.c.l.b16 %v3969
    %v4313 = vunpack.c.h.b16 %v3969
    %v4314 = vunpack.c.l.b16 %v3970
    %v4315 = vunpack.c.h.b16 %v3970
    %v4316 = vunpack.c.l.b16 %v3971
    %v4317 = vunpack.c.h.b16 %v3971
    %v4318 = vunpack.c.l.b16 %v3972
    %v4319 = vunpack.c.h.b16 %v3972
    %v4320 = vunpack.c.l.b16 %v3973
    %v4321 = vunpack.c.h.b16 %v3973
    %v4322 = vunpack.c.l.b16 %v3974
    %v4323 = vunpack.c.h.b16 %v3974
    %v4324 = vunpack.c.l.b16 %v3975
    %v4325 = vunpack.c.h.b16 %v3975
    %v4326 = vunpack.c.l.b16 %v3976
    %v4327 = vunpack.c.h.b16 %v3976
    %v4328 = vunpack.c.l.b16 %v3977
    %v4329 = vunpack.c.h.b16 %v3977
    %v4330 = vunpack.c.l.b16 %v3978
    %v4331 = vunpack.c.h.b16 %v3978
    %v4332 = vunpack.c.l.b16 %v3979
    %v4333 = vunpack.c.h.b16 %v3979
    %v4334 = vunpack.c.l.b16 %v3980
    %v4335 = vunpack.c.h.b16 %v3980
    %v4336 = vunpack.c.l.b16 %v3981
    %v4337 = vunpack.c.h.b16 %v3981
    %v4338 = vunpack.c.l.b16 %v3982
    %v4339 = vunpack.c.h.b16 %v3982
    %v4340 = vunpack.c.l.b16 %v3983
    %v4341 = vunpack.c.h.b16 %v3983
    %v4342 = vunpack.c.l.b16 %v3984
    %v4343 = vunpack.c.h.b16 %v3984
    %v4344 = vunpack.c.l.b16 %v3985
    %v4345 = vunpack.c.h.b16 %v3985
    %v4346 = vunpack.c.l.b16 %v3986
    %v4347 = vunpack.c.h.b16 %v3986
    %v4348 = vunpack.c.l.b16 %v3987
    %v4349 = vunpack.c.h.b16 %v3987
    %v4350 = vunpack.c.l.b16 %v3988
    %v4351 = vunpack.c.h.b16 %v3988
    %v4352 = vunpack.c.l.b16 %v3989
    %v4353 = vunpack.c.h.b16 %v3989
    %v4354 = vunpack.c.l.b16 %v3990
    %v4355 = vunpack.c.h.b16 %v3990
    %v4356 = vunpack.c.l.b16 %v3991
    %v4357 = vunpack.c.h.b16 %v3991
    %v4358 = vunpack.c.l.b16 %v3992
    %v4359 = vunpack.c.h.b16 %v3992
    %v4360 = vunpack.c.l.b16 %v3993
    %v4361 = vunpack.c.h.b16 %v3993
    %v4362 = vunpack.c.l.b16 %v3994
    %v4363 = vunpack.c.h.b16 %v3994
    %v4364 = vunpack.c.l.b16 %v3995
    %v4365 = vunpack.c.h.b16 %v3995
    %v4366 = vunpack.c.l.b16 %v3996
    %v4367 = vunpack.c.h.b16 %v3996
    %v4368 = vunpack.c.l.b16 %v3997
    %v4369 = vunpack.c.h.b16 %v3997
    %v4370 = vunpack.c.l.b16 %v3998
    %v4371 = vunpack.c.h.b16 %v3998
    %v4372 = vunpack.c.l.b16 %v3999
    %v4373 = vunpack.c.h.b16 %v3999
    %v4374 = vunpack.c.l.b16 %v4000
    %v4375 = vunpack.c.h.b16 %v4000
    %v4376 = vunpack.c.l.b16 %v4001
    %v4377 = vunpack.c.h.b16 %v4001
    %v4378 = vunpack.c.l.b16 %v4002
    %v4379 = vunpack.c.h.b16 %v4002
    %v4380 = vunpack.c.l.b16 %v4003
    %v4381 = vunpack.c.h.b16 %v4003
    %v4382 = vunpack.c.l.b16 %v4004
    %v4383 = vunpack.c.h.b16 %v4004
    %v4384 = vunpack.c.l.b16 %v4005
    %v4385 = vunpack.c.h.b16 %v4005
    %v4386 = vunpack.c.l.b16 %v4006
    %v4387 = vunpack.c.h.b16 %v4006
    %v4388 = vunpack.c.l.b16 %v4007
    %v4389 = vunpack.c.h.b16 %v4007
    %v4390 = vunpack.c.l.b16 %v4008
    %v4391 = vunpack.c.h.b16 %v4008
    %v4392 = vunpack.c.l.b16 %v4009
    %v4393 = vunpack.c.h.b16 %v4009
    %v4394 = vpack.c.b16 %v4146, %v4138
    %v4395 = vpack.c.b16 %v4147, %v4139
    %v4396 = vpack.c.b16 %v4148, %v4140
    %v4397 = vpack.c.b16 %v4149, %v4141
    %v4398 = vpack.c.b16 %v4150, %v4142
    %v4399 = vpack.c.b16 %v4151, %v4143
    %v4400 = vpack.c.b16 %v4152, %v4144
    %v4401 = vpack.c.b16 %v4153, %v4145
    %v4402 = vpack.c.b16 %v4162, %v4154
    %v4403 = vpack.c.b16 %v4163, %v4155
    %v4404 = vpack.c.b16 %v4164, %v4156
    %v4405 = vpack.c.b16 %v4165, %v4157
    %v4406 = vpack.c.b16 %v4166, %v4158
    %v4407 = vpack.c.b16 %v4167, %v4159
    %v4408 = vpack.c.b16 %v4168, %v4160
    %v4409 = vpack.c.b16 %v4169, %v4161
    %v4410 = vpack.c.b16 %v4178, %v4170
    %v4411 = vpack.c.b16 %v4179, %v4171
    %v4412 = vpack.c.b16 %v4180, %v4172
    %v4413 = vpack.c.b16 %v4181, %v4173
    %v4414 = vpack.c.b16 %v4182, %v4174
    %v4415 = vpack.c.b16 %v4183, %v4175
    %v4416 = vpack.c.b16 %v4184, %v4176
    %v4417 = vpack.c.b16 %v4185, %v4177
    %v4418 = vpack.c.b16 %v4194, %v4186
    %v4419 = vpack.c.b16 %v4195, %v4187
    %v4420 = vpack.c.b16 %v4196, %v4188
    %v4421 = vpack.c.b16 %v4197, %v4189
    %v4422 = vpack.c.b16 %v4198, %v4190
    %v4423 = vpack.c.b16 %v4199, %v4191
    %v4424 = vpack.c.b16 %v4200, %v4192
    %v4425 = vpack.c.b16 %v4201, %v4193
    %v4426 = vpack.c.b16 %v4210, %v4202
    %v4427 = vpack.c.b16 %v4211, %v4203
    %v4428 = vpack.c.b16 %v4212, %v4204
    %v4429 = vpack.c.b16 %v4213, %v4205
    %v4430 = vpack.c.b16 %v4214, %v4206
    %v4431 = vpack.c.b16 %v4215, %v4207
    %v4432 = vpack.c.b16 %v4216, %v4208
    %v4433 = vpack.c.b16 %v4217, %v4209
    %v4434 = vpack.c.b16 %v4226, %v4218
    %v4435 = vpack.c.b16 %v4227, %v4219
    %v4436 = vpack.c.b16 %v4228, %v4220
    %v4437 = vpack.c.b16 %v4229, %v4221
    %v4438 = vpack.c.b16 %v4230, %v4222
    %v4439 = vpack.c.b16 %v4231, %v4223
    %v4440 = vpack.c.b16 %v4232, %v4224
    %v4441 = vpack.c.b16 %v4233, %v4225
    %v4442 = vpack.c.b16 %v4242, %v4234
    %v4443 = vpack.c.b16 %v4243, %v4235
    %v4444 = vpack.c.b16 %v4244, %v4236
    %v4445 = vpack.c.b16 %v4245, %v4237
    %v4446 = vpack.c.b16 %v4246, %v4238
    %v4447 = vpack.c.b16 %v4247, %v4239
    %v4448 = vpack.c.b16 %v4248, %v4240
    %v4449 = vpack.c.b16 %v4249, %v4241
    %v4450 = vpack.c.b16 %v4258, %v4250
    %v4451 = vpack.c.b16 %v4259, %v4251
    %v4452 = vpack.c.b16 %v4260, %v4252
    %v4453 = vpack.c.b16 %v4261, %v4253
    %v4454 = vpack.c.b16 %v4262, %v4254
    %v4455 = vpack.c.b16 %v4263, %v4255
    %v4456 = vpack.c.b16 %v4264, %v4256
    %v4457 = vpack.c.b16 %v4265, %v4257
    %v4458 = vpack.c.b16 %v4274, %v4266
    %v4459 = vpack.c.b16 %v4275, %v4267
    %v4460 = vpack.c.b16 %v4276, %v4268
    %v4461 = vpack.c.b16 %v4277, %v4269
    %v4462 = vpack.c.b16 %v4278, %v4270
    %v4463 = vpack.c.b16 %v4279, %v4271
    %v4464 = vpack.c.b16 %v4280, %v4272
    %v4465 = vpack.c.b16 %v4281, %v4273
    %v4466 = vpack.c.b16 %v4290, %v4282
    %v4467 = vpack.c.b16 %v4291, %v4283
    %v4468 = vpack.c.b16 %v4292, %v4284
    %v4469 = vpack.c.b16 %v4293, %v4285
    %v4470 = vpack.c.b16 %v4294, %v4286
    %v4471 = vpack.c.b16 %v4295, %v4287
    %v4472 = vpack.c.b16 %v4296, %v4288
    %v4473 = vpack.c.b16 %v4297, %v4289
    %v4474 = vpack.c.b16 %v4306, %v4298
    %v4475 = vpack.c.b16 %v4307, %v4299
    %v4476 = vpack.c.b16 %v4308, %v4300
    %v4477 = vpack.c.b16 %v4309, %v4301
    %v4478 = vpack.c.b16 %v4310, %v4302
    %v4479 = vpack.c.b16 %v4311, %v4303
    %v4480 = vpack.c.b16 %v4312, %v4304
    %v4481 = vpack.c.b16 %v4313, %v4305
    %v4482 = vpack.c.b16 %v4322, %v4314
    %v4483 = vpack.c.b16 %v4323, %v4315
    %v4484 = vpack.c.b16 %v4324, %v4316
    %v4485 = vpack.c.b16 %v4325, %v4317
    %v4486 = vpack.c.b16 %v4326, %v4318
    %v4487 = vpack.c.b16 %v4327, %v4319
    %v4488 = vpack.c.b16 %v4328, %v4320
    %v4489 = vpack.c.b16 %v4329, %v4321
    %v4490 = vpack.c.b16 %v4338, %v4330
    %v4491 = vpack.c.b16 %v4339, %v4331
    %v4492 = vpack.c.b16 %v4340, %v4332
    %v4493 = vpack.c.b16 %v4341, %v4333
    %v4494 = vpack.c.b16 %v4342, %v4334
    %v4495 = vpack.c.b16 %v4343, %v4335
    %v4496 = vpack.c.b16 %v4344, %v4336
    %v4497 = vpack.c.b16 %v4345, %v4337
    %v4498 = vpack.c.b16 %v4354, %v4346
    %v4499 = vpack.c.b16 %v4355, %v4347
    %v4500 = vpack.c.b16 %v4356, %v4348
    %v4501 = vpack.c.b16 %v4357, %v4349
    %v4502 = vpack.c.b16 %v4358, %v4350
    %v4503 = vpack.c.b16 %v4359, %v4351
    %v4504 = vpack.c.b16 %v4360, %v4352
    %v4505 = vpack.c.b16 %v4361, %v4353
    %v4506 = vpack.c.b16 %v4370, %v4362
    %v4507 = vpack.c.b16 %v4371, %v4363
    %v4508 = vpack.c.b16 %v4372, %v4364
    %v4509 = vpack.c.b16 %v4373, %v4365
    %v4510 = vpack.c.b16 %v4374, %v4366
    %v4511 = vpack.c.b16 %v4375, %v4367
    %v4512 = vpack.c.b16 %v4376, %v4368
    %v4513 = vpack.c.b16 %v4377, %v4369
    %v4514 = vpack.c.b16 %v4386, %v4378
    %v4515 = vpack.c.b16 %v4387, %v4379
    %v4516 = vpack.c.b16 %v4388, %v4380
    %v4517 = vpack.c.b16 %v4389, %v4381
    %v4518 = vpack.c.b16 %v4390, %v4382
    %v4519 = vpack.c.b16 %v4391, %v4383
    %v4520 = vpack.c.b16 %v4392, %v4384
    %v4521 = vpack.c.b16 %v4393, %v4385
    %4650 = vmatprep.subr.bf16.mxu0 %v4395
    %4651 = vmatpush1.bf16.msra.mxu0 %v4394
    %4652 = vmatprep.subr.bf16.mxu0 %v4403
    %4653 = vmatpush1.bf16.msra.mxu0 %v4402
    %4654 = vmatprep.subr.bf16.mxu0 %v4411
    %4655 = vmatpush1.bf16.msra.mxu0 %v4410
    %4656 = vmatprep.subr.bf16.mxu0 %v4419
    %4657 = vmatpush1.bf16.msra.mxu0 %v4418
    %4658 = vmatprep.subr.bf16.mxu0 %v4427
    %4659 = vmatpush1.bf16.msra.mxu0 %v4426
    %4660 = vmatprep.subr.bf16.mxu0 %v4435
    %4661 = vmatpush1.bf16.msra.mxu0 %v4434
    %4662 = vmatprep.subr.bf16.mxu0 %v4443
    %4663 = vmatpush1.bf16.msra.mxu0 %v4442
    %4664 = vmatprep.subr.bf16.mxu0 %v4451
    %4665 = vmatpush1.bf16.msra.mxu0 %v4450
    %4666 = vmatprep.subr.bf16.mxu0 %v4459
    %4667 = vmatpush1.bf16.msra.mxu0 %v4458
    %4668 = vmatprep.subr.bf16.mxu0 %v4467
    %4669 = vmatpush1.bf16.msra.mxu0 %v4466
    %4670 = vmatprep.subr.bf16.mxu0 %v4475
    %4671 = vmatpush1.bf16.msra.mxu0 %v4474
    %4672 = vmatprep.subr.bf16.mxu0 %v4483
    %4673 = vmatpush1.bf16.msra.mxu0 %v4482
    %4674 = vmatprep.subr.bf16.mxu0 %v4491
    %4675 = vmatpush1.bf16.msra.mxu0 %v4490
    %4676 = vmatprep.subr.bf16.mxu0 %v4499
    %4677 = vmatpush1.bf16.msra.mxu0 %v4498
    %4678 = vmatprep.subr.bf16.mxu0 %v4507
    %4679 = vmatpush1.bf16.msra.mxu0 %v4506
    %4680 = vmatprep.subr.bf16.mxu0 %v4515
    %4681 = vmatpush1.bf16.msra.mxu0 %v4514
    %4682 = vmatprep.mubr.bf16.mxu0 %v3879
    %4683 = vmatmul.mubr.bf16.gmra.mrb[0].mxu0 %v3878
    %v4684 = vpop.f32.mrb[0].mxu0
    %v4685 = vadd.f32 0.0, %v4684
    %v4686 = vpop.f32.mrb[0].mxu0
    %v4687 = vadd.f32 0.0, %v4686
    %v4688 = vpop.f32.mrb[0].mxu0
    %v4689 = vadd.f32 0.0, %v4688
    %v4690 = vpop.f32.mrb[0].mxu0
    %v4691 = vadd.f32 0.0, %v4690
    %4692 = vmatprep.mubr.bf16.mxu0 %v3881
    %4693 = vmatmul.mubr.bf16.gmra.mrb[0].mxu0 %v3880
    %v4694 = vpop.f32.mrb[0].mxu0
    %v4695 = vadd.f32 0.0, %v4694
    %v4696 = vpop.f32.mrb[0].mxu0
    %v4697 = vadd.f32 0.0, %v4696
    %v4698 = vpop.f32.mrb[0].mxu0
    %v4699 = vadd.f32 0.0, %v4698
    %v4700 = vpop.f32.mrb[0].mxu0
    %v4701 = vadd.f32 0.0, %v4700
    %4702 = vdwg.mxu0
    %4703 = vmatprep.subr.bf16.mxu0 %v4397
    %4704 = vmatpush1.bf16.msra.mxu0 %v4396
    %4705 = vmatprep.subr.bf16.mxu0 %v4405
    %4706 = vmatpush1.bf16.msra.mxu0 %v4404
    %4707 = vmatprep.subr.bf16.mxu0 %v4413
    %4708 = vmatpush1.bf16.msra.mxu0 %v4412
    %4709 = vmatprep.subr.bf16.mxu0 %v4421
    %4710 = vmatpush1.bf16.msra.mxu0 %v4420
    %4711 = vmatprep.subr.bf16.mxu0 %v4429
    %4712 = vmatpush1.bf16.msra.mxu0 %v4428
    %4713 = vmatprep.subr.bf16.mxu0 %v4437
    %4714 = vmatpush1.bf16.msra.mxu0 %v4436
    %4715 = vmatprep.subr.bf16.mxu0 %v4445
    %4716 = vmatpush1.bf16.msra.mxu0 %v4444
    %4717 = vmatprep.subr.bf16.mxu0 %v4453
    %4718 = vmatpush1.bf16.msra.mxu0 %v4452
    %4719 = vmatprep.subr.bf16.mxu0 %v4461
    %4720 = vmatpush1.bf16.msra.mxu0 %v4460
    %4721 = vmatprep.subr.bf16.mxu0 %v4469
    %4722 = vmatpush1.bf16.msra.mxu0 %v4468
    %4723 = vmatprep.subr.bf16.mxu0 %v4477
    %4724 = vmatpush1.bf16.msra.mxu0 %v4476
    %4725 = vmatprep.subr.bf16.mxu0 %v4485
    %4726 = vmatpush1.bf16.msra.mxu0 %v4484
    %4727 = vmatprep.subr.bf16.mxu0 %v4493
    %4728 = vmatpush1.bf16.msra.mxu0 %v4492
    %4729 = vmatprep.subr.bf16.mxu0 %v4501
    %4730 = vmatpush1.bf16.msra.mxu0 %v4500
    %4731 = vmatprep.subr.bf16.mxu0 %v4509
    %4732 = vmatpush1.bf16.msra.mxu0 %v4508
    %4733 = vmatprep.subr.bf16.mxu0 %v4517
    %4734 = vmatpush1.bf16.msra.mxu0 %v4516
    %4735 = vmatprep.mubr.bf16.mxu0 %v3879
    %4736 = vmatmul.mubr.bf16.gmra.mrb[0].mxu0 %v3878
    %v4737 = vpop.f32.mrb[0].mxu0
    %v4738 = vadd.f32 0.0, %v4737
    %v4739 = vpop.f32.mrb[0].mxu0
    %v4740 = vadd.f32 0.0, %v4739
    %v4741 = vpop.f32.mrb[0].mxu0
    %v4742 = vadd.f32 0.0, %v4741
    %v4743 = vpop.f32.mrb[0].mxu0
    %v4744 = vadd.f32 0.0, %v4743
    %4745 = vmatprep.mubr.bf16.mxu0 %v3881
    %4746 = vmatmul.mubr.bf16.gmra.mrb[0].mxu0 %v3880
    %v4747 = vpop.f32.mrb[0].mxu0
    %v4748 = vadd.f32 0.0, %v4747
    %v4749 = vpop.f32.mrb[0].mxu0
    %v4750 = vadd.f32 0.0, %v4749
    %v4751 = vpop.f32.mrb[0].mxu0
    %v4752 = vadd.f32 0.0, %v4751
    %v4753 = vpop.f32.mrb[0].mxu0
    %v4754 = vadd.f32 0.0, %v4753
    %4755 = vdwg.mxu0
    %4756 = vmatprep.subr.bf16.mxu0 %v4399
    %4757 = vmatpush1.bf16.msra.mxu0 %v4398
    %4758 = vmatprep.subr.bf16.mxu0 %v4407
    %4759 = vmatpush1.bf16.msra.mxu0 %v4406
    %4760 = vmatprep.subr.bf16.mxu0 %v4415
    %4761 = vmatpush1.bf16.msra.mxu0 %v4414
    %4762 = vmatprep.subr.bf16.mxu0 %v4423
    %4763 = vmatpush1.bf16.msra.mxu0 %v4422
    %4764 = vmatprep.subr.bf16.mxu0 %v4431
    %4765 = vmatpush1.bf16.msra.mxu0 %v4430
    %4766 = vmatprep.subr.bf16.mxu0 %v4439
    %4767 = vmatpush1.bf16.msra.mxu0 %v4438
    %4768 = vmatprep.subr.bf16.mxu0 %v4447
    %4769 = vmatpush1.bf16.msra.mxu0 %v4446
    %4770 = vmatprep.subr.bf16.mxu0 %v4455
    %4771 = vmatpush1.bf16.msra.mxu0 %v4454
    %4772 = vmatprep.subr.bf16.mxu0 %v4463
    %4773 = vmatpush1.bf16.msra.mxu0 %v4462
    %4774 = vmatprep.subr.bf16.mxu0 %v4471
    %4775 = vmatpush1.bf16.msra.mxu0 %v4470
    %4776 = vmatprep.subr.bf16.mxu0 %v4479
    %4777 = vmatpush1.bf16.msra.mxu0 %v4478
    %4778 = vmatprep.subr.bf16.mxu0 %v4487
    %4779 = vmatpush1.bf16.msra.mxu0 %v4486
    %4780 = vmatprep.subr.bf16.mxu0 %v4495
    %4781 = vmatpush1.bf16.msra.mxu0 %v4494
    %4782 = vmatprep.subr.bf16.mxu0 %v4503
    %4783 = vmatpush1.bf16.msra.mxu0 %v4502
    %4784 = vmatprep.subr.bf16.mxu0 %v4511
    %4785 = vmatpush1.bf16.msra.mxu0 %v4510
    %4786 = vmatprep.subr.bf16.mxu0 %v4519
    %4787 = vmatpush1.bf16.msra.mxu0 %v4518
    %4788 = vmatprep.mubr.bf16.mxu0 %v3879
    %4789 = vmatmul.mubr.bf16.gmra.mrb[0].mxu0 %v3878
    %v4790 = vpop.f32.mrb[0].mxu0
    %v4791 = vadd.f32 0.0, %v4790
    %v4792 = vpop.f32.mrb[0].mxu0
    %v4793 = vadd.f32 0.0, %v4792
    %v4794 = vpop.f32.mrb[0].mxu0
    %v4795 = vadd.f32 0.0, %v4794
    %v4796 = vpop.f32.mrb[0].mxu0
    %v4797 = vadd.f32 0.0, %v4796
    %4798 = vmatprep.mubr.bf16.mxu0 %v3881
    %4799 = vmatmul.mubr.bf16.gmra.mrb[0].mxu0 %v3880
    %v4800 = vpop.f32.mrb[0].mxu0
    %v4801 = vadd.f32 0.0, %v4800
    %v4802 = vpop.f32.mrb[0].mxu0
    %v4803 = vadd.f32 0.0, %v4802
    %v4804 = vpop.f32.mrb[0].mxu0
    %v4805 = vadd.f32 0.0, %v4804
    %v4806 = vpop.f32.mrb[0].mxu0
    %v4807 = vadd.f32 0.0, %v4806
    %4808 = vdwg.mxu0
    %4809 = vmatprep.subr.bf16.mxu0 %v4401
    %4810 = vmatpush1.bf16.msra.mxu0 %v4400
    %4811 = vmatprep.subr.bf16.mxu0 %v4409
    %4812 = vmatpush1.bf16.msra.mxu0 %v4408
    %4813 = vmatprep.subr.bf16.mxu0 %v4417
    %4814 = vmatpush1.bf16.msra.mxu0 %v4416
    %4815 = vmatprep.subr.bf16.mxu0 %v4425
    %4816 = vmatpush1.bf16.msra.mxu0 %v4424
    %4817 = vmatprep.subr.bf16.mxu0 %v4433
    %4818 = vmatpush1.bf16.msra.mxu0 %v4432
    %4819 = vmatprep.subr.bf16.mxu0 %v4441
    %4820 = vmatpush1.bf16.msra.mxu0 %v4440
    %4821 = vmatprep.subr.bf16.mxu0 %v4449
    %4822 = vmatpush1.bf16.msra.mxu0 %v4448
    %4823 = vmatprep.subr.bf16.mxu0 %v4457
    %4824 = vmatpush1.bf16.msra.mxu0 %v4456
    %4825 = vmatprep.subr.bf16.mxu0 %v4465
    %4826 = vmatpush1.bf16.msra.mxu0 %v4464
    %4827 = vmatprep.subr.bf16.mxu0 %v4473
    %4828 = vmatpush1.bf16.msra.mxu0 %v4472
    %4829 = vmatprep.subr.bf16.mxu0 %v4481
    %4830 = vmatpush1.bf16.msra.mxu0 %v4480
    %4831 = vmatprep.subr.bf16.mxu0 %v4489
    %4832 = vmatpush1.bf16.msra.mxu0 %v4488
    %4833 = vmatprep.subr.bf16.mxu0 %v4497
    %4834 = vmatpush1.bf16.msra.mxu0 %v4496
    %4835 = vmatprep.subr.bf16.mxu0 %v4505
    %4836 = vmatpush1.bf16.msra.mxu0 %v4504
    %4837 = vmatprep.subr.bf16.mxu0 %v4513
    %4838 = vmatpush1.bf16.msra.mxu0 %v4512
    %4839 = vmatprep.subr.bf16.mxu0 %v4521
    %4840 = vmatpush1.bf16.msra.mxu0 %v4520
    %4841 = vmatprep.mubr.bf16.mxu0 %v3879
    %4842 = vmatmul.mubr.bf16.gmra.mrb[0].mxu0 %v3878
    %v4843 = vpop.f32.mrb[0].mxu0
    %v4844 = vadd.f32 0.0, %v4843
    %v4845 = vpop.f32.mrb[0].mxu0
    %v4846 = vadd.f32 0.0, %v4845
    %v4847 = vpop.f32.mrb[0].mxu0
    %v4848 = vadd.f32 0.0, %v4847
    %v4849 = vpop.f32.mrb[0].mxu0
    %v4850 = vadd.f32 0.0, %v4849
    %4851 = vmatprep.mubr.bf16.mxu0 %v3881
    %4852 = vmatmul.mubr.bf16.gmra.mrb[0].mxu0 %v3880
    %v4853 = vpop.f32.mrb[0].mxu0
    %v4854 = vadd.f32 0.0, %v4853
    %v4855 = vpop.f32.mrb[0].mxu0
    %v4856 = vadd.f32 0.0, %v4855
    %v4857 = vpop.f32.mrb[0].mxu0
    %v4858 = vadd.f32 0.0, %v4857
    %v4859 = vpop.f32.mrb[0].mxu0
    %v4860 = vadd.f32 0.0, %v4859
    %4861 = vdwg.mxu0
    %v4862 = vpack.c.bf16 %v4689, %v4685
    %v4863 = vpack.c.bf16 %v4691, %v4687
    %v4864 = vpack.c.bf16 %v4742, %v4738
    %v4865 = vpack.c.bf16 %v4744, %v4740
    %v4866 = vpack.c.bf16 %v4795, %v4791
    %v4867 = vpack.c.bf16 %v4797, %v4793
    %v4868 = vpack.c.bf16 %v4848, %v4844
    %v4869 = vpack.c.bf16 %v4850, %v4846
    %v4870 = vpack.c.bf16 %v4699, %v4695
    %v4871 = vpack.c.bf16 %v4701, %v4697
    %v4872 = vpack.c.bf16 %v4752, %v4748
    %v4873 = vpack.c.bf16 %v4754, %v4750
    %v4874 = vpack.c.bf16 %v4805, %v4801
    %v4875 = vpack.c.bf16 %v4807, %v4803
    %v4876 = vpack.c.bf16 %v4858, %v4854
    %v4877 = vpack.c.bf16 %v4860, %v4856
    %v4878 = vld [vmem:[%s8] sm:$0xf]
    %v4879 = vld [vmem:[%s8 + $0x4] sm:$0xf]
    %v4880 = vld [vmem:[%s8 + $0x8] sm:$0xf]
    %v4881 = vld [vmem:[%s8 + $0xc] sm:$0xf]
    %v4882 = vld [vmem:[%s8 + $0x10] sm:$0xf]
    %v4883 = vld [vmem:[%s8 + $0x14] sm:$0xf]
    %v4884 = vld [vmem:[%s8 + $0x18] sm:$0xf]
    %v4885 = vld [vmem:[%s8 + $0x1c] sm:$0xf]
    %s4886 = scalar_lea.vmem %s8, 32
    %v4887 = vld [vmem:[%s4886] sm:$0xf]
    %v4888 = vld [vmem:[%s4886 + $0x4] sm:$0xf]
    %v4889 = vld [vmem:[%s4886 + $0x8] sm:$0xf]
    %v4890 = vld [vmem:[%s4886 + $0xc] sm:$0xf]
    %v4891 = vld [vmem:[%s4886 + $0x10] sm:$0xf]
    %v4892 = vld [vmem:[%s4886 + $0x14] sm:$0xf]
    %v4893 = vld [vmem:[%s4886 + $0x18] sm:$0xf]
    %v4894 = vld [vmem:[%s4886 + $0x1c] sm:$0xf]
    %v4903 = vunpack.c.l.b16 %v4887
    %v4904 = vunpack.c.l.b16 %v4888
    %v4905 = vunpack.c.l.b16 %v4889
    %v4906 = vunpack.c.l.b16 %v4890
    %v4907 = vunpack.c.l.b16 %v4891
    %v4908 = vunpack.c.l.b16 %v4892
    %v4909 = vunpack.c.l.b16 %v4893
    %v4910 = vunpack.c.l.b16 %v4894
    %v4911 = vpack.c.b16 %v4904, %v4903
    %v4912 = vpack.c.b16 %v4906, %v4905
    %v4913 = vpack.c.b16 %v4908, %v4907
    %v4914 = vpack.c.b16 %v4910, %v4909
    %v4916 = vsel %vm2228, %v4911, 0
    %v4919 = vsel %vm2228, %v4912, 0
    %v4922 = vsel %vm2228, %v4913, 0
    %v4925 = vsel %vm2228, %v4914, 0
    %4927 = vmatprep.subr.bf16.mxu0 %v4865
    %4928 = vmatpush1.bf16.msra.mxu0 %v4864
    %4929 = vmatprep.subr.bf16.mxu0 %v4873
    %4930 = vmatpush1.bf16.msra.mxu0 %v4872
    %4931 = vmatprep.subr.bf16.mxu0 0
    %4932 = vmatpush1.bf16.msra.mxu0 0
    %4933 = vmatprep.subr.bf16.mxu0 0
    %4934 = vmatpush1.bf16.msra.mxu0 0
    %4935 = vmatprep.subr.bf16.mxu0 0
    %4936 = vmatpush1.bf16.msra.mxu0 0
    %4937 = vmatprep.subr.bf16.mxu0 0
    %4938 = vmatpush1.bf16.msra.mxu0 0
    %4939 = vmatprep.subr.bf16.mxu0 0
    %4940 = vmatpush1.bf16.msra.mxu0 0
    %4941 = vmatprep.subr.bf16.mxu0 0
    %4942 = vmatpush1.bf16.msra.mxu0 0
    %4943 = vmatprep.subr.bf16.mxu0 0
    %4944 = vmatpush1.bf16.msra.mxu0 0
    %4945 = vmatprep.subr.bf16.mxu0 0
    %4946 = vmatpush1.bf16.msra.mxu0 0
    %4947 = vmatprep.subr.bf16.mxu0 0
    %4948 = vmatpush1.bf16.msra.mxu0 0
    %4949 = vmatprep.subr.bf16.mxu0 0
    %4950 = vmatpush1.bf16.msra.mxu0 0
    %4951 = vmatprep.subr.bf16.mxu0 0
    %4952 = vmatpush1.bf16.msra.mxu0 0
    %4953 = vmatprep.subr.bf16.mxu0 0
    %4954 = vmatpush1.bf16.msra.mxu0 0
    %4955 = vmatprep.subr.bf16.mxu0 0
    %4956 = vmatpush1.bf16.msra.mxu0 0
    %4957 = vmatprep.subr.bf16.mxu0 0
    %4958 = vmatpush1.bf16.msra.mxu0 0
    %4959 = vmatprep.mubr.bf16.mxu0 0
    %4960 = vmatmul.mubr.bf16.gmra.mrb[0].mxu0 %v4916
    %v4961 = vpop.f32.mrb[0].mxu0
    %v4962 = vadd.f32 0.0, %v4961
    %v4963 = vpop.f32.mrb[0].mxu0
    %v4964 = vadd.f32 0.0, %v4963
    %v4965 = vpop.f32.mrb[0].mxu0
    %v4966 = vadd.f32 0.0, %v4965
    %v4967 = vpop.f32.mrb[0].mxu0
    %v4968 = vadd.f32 0.0, %v4967
    %4969 = vmatprep.mubr.bf16.mxu0 0
    %4970 = vmatmul.mubr.bf16.gmra.mrb[0].mxu0 %v4919
    %v4971 = vpop.f32.mrb[0].mxu0
    %v4972 = vadd.f32 0.0, %v4971
    %v4973 = vpop.f32.mrb[0].mxu0
    %v4974 = vadd.f32 0.0, %v4973
    %v4975 = vpop.f32.mrb[0].mxu0
    %v4976 = vadd.f32 0.0, %v4975
    %v4977 = vpop.f32.mrb[0].mxu0
    %v4978 = vadd.f32 0.0, %v4977
    %4979 = vmatprep.mubr.bf16.mxu0 0
    %4980 = vmatmul.mubr.bf16.gmra.mrb[0].mxu0 %v4922
    %v4981 = vpop.f32.mrb[0].mxu0
    %v4982 = vadd.f32 0.0, %v4981
    %v4983 = vpop.f32.mrb[0].mxu0
    %v4984 = vadd.f32 0.0, %v4983
    %v4985 = vpop.f32.mrb[0].mxu0
    %v4986 = vadd.f32 0.0, %v4985
    %v4987 = vpop.f32.mrb[0].mxu0
    %v4988 = vadd.f32 0.0, %v4987
    %4989 = vmatprep.mubr.bf16.mxu0 0
    %4990 = vmatmul.mubr.bf16.gmra.mrb[0].mxu0 %v4925
    %v4991 = vpop.f32.mrb[0].mxu0
    %v4992 = vadd.f32 0.0, %v4991
    %v4993 = vpop.f32.mrb[0].mxu0
    %v4994 = vadd.f32 0.0, %v4993
    %v4995 = vpop.f32.mrb[0].mxu0
    %v4996 = vadd.f32 0.0, %v4995
    %v4997 = vpop.f32.mrb[0].mxu0
    %v4998 = vadd.f32 0.0, %v4997
    %4999 = vdwg.mxu0
    %v5008 = vunpack.c.l.b16 %v4878
    %v5009 = vunpack.c.l.b16 %v4879
    %v5010 = vunpack.c.l.b16 %v4880
    %v5011 = vunpack.c.l.b16 %v4881
    %v5012 = vunpack.c.l.b16 %v4882
    %v5013 = vunpack.c.l.b16 %v4883
    %v5014 = vunpack.c.l.b16 %v4884
    %v5015 = vunpack.c.l.b16 %v4885
    %v5016 = vpack.c.b16 %v5009, %v5008
    %v5017 = vpack.c.b16 %v5011, %v5010
    %v5018 = vpack.c.b16 %v5013, %v5012
    %v5019 = vpack.c.b16 %v5015, %v5014
    %v5021 = vsel %vm2228, %v5016, 0
    %v5024 = vsel %vm2228, %v5017, 0
    %v5027 = vsel %vm2228, %v5018, 0
    %v5030 = vsel %vm2228, %v5019, 0
    %5032 = vmatprep.subr.bf16.mxu0 %v4863
    %5033 = vmatpush1.bf16.msra.mxu0 %v4862
    %5034 = vmatprep.subr.bf16.mxu0 %v4871
    %5035 = vmatpush1.bf16.msra.mxu0 %v4870
    %5036 = vmatprep.subr.bf16.mxu0 0
    %5037 = vmatpush1.bf16.msra.mxu0 0
    %5038 = vmatprep.subr.bf16.mxu0 0
    %5039 = vmatpush1.bf16.msra.mxu0 0
    %5040 = vmatprep.subr.bf16.mxu0 0
    %5041 = vmatpush1.bf16.msra.mxu0 0
    %5042 = vmatprep.subr.bf16.mxu0 0
    %5043 = vmatpush1.bf16.msra.mxu0 0
    %5044 = vmatprep.subr.bf16.mxu0 0
    %5045 = vmatpush1.bf16.msra.mxu0 0
    %5046 = vmatprep.subr.bf16.mxu0 0
    %5047 = vmatpush1.bf16.msra.mxu0 0
    %5048 = vmatprep.subr.bf16.mxu0 0
    %5049 = vmatpush1.bf16.msra.mxu0 0
    %5050 = vmatprep.subr.bf16.mxu0 0
    %5051 = vmatpush1.bf16.msra.mxu0 0
    %5052 = vmatprep.subr.bf16.mxu0 0
    %5053 = vmatpush1.bf16.msra.mxu0 0
    %5054 = vmatprep.subr.bf16.mxu0 0
    %5055 = vmatpush1.bf16.msra.mxu0 0
    %5056 = vmatprep.subr.bf16.mxu0 0
    %5057 = vmatpush1.bf16.msra.mxu0 0
    %5058 = vmatprep.subr.bf16.mxu0 0
    %5059 = vmatpush1.bf16.msra.mxu0 0
    %5060 = vmatprep.subr.bf16.mxu0 0
    %5061 = vmatpush1.bf16.msra.mxu0 0
    %5062 = vmatprep.subr.bf16.mxu0 0
    %5063 = vmatpush1.bf16.msra.mxu0 0
    %5064 = vmatprep.mubr.bf16.mxu0 0
    %5065 = vmatmul.mubr.bf16.gmra.mrb[0].mxu0 %v5021
    %v5066 = vpop.f32.mrb[0].mxu0
    %v5067 = vadd.f32 %v4962, %v5066
    %v5068 = vpop.f32.mrb[0].mxu0
    %v5069 = vadd.f32 %v4964, %v5068
    %v5070 = vpop.f32.mrb[0].mxu0
    %v5071 = vadd.f32 %v4966, %v5070
    %v5072 = vpop.f32.mrb[0].mxu0
    %v5073 = vadd.f32 %v4968, %v5072
    %5074 = vmatprep.mubr.bf16.mxu0 0
    %5075 = vmatmul.mubr.bf16.gmra.mrb[0].mxu0 %v5024
    %v5076 = vpop.f32.mrb[0].mxu0
    %v5077 = vadd.f32 %v4972, %v5076
    %v5078 = vpop.f32.mrb[0].mxu0
    %v5079 = vadd.f32 %v4974, %v5078
    %v5080 = vpop.f32.mrb[0].mxu0
    %v5081 = vadd.f32 %v4976, %v5080
    %v5082 = vpop.f32.mrb[0].mxu0
    %v5083 = vadd.f32 %v4978, %v5082
    %5084 = vmatprep.mubr.bf16.mxu0 0
    %5085 = vmatmul.mubr.bf16.gmra.mrb[0].mxu0 %v5027
    %v5086 = vpop.f32.mrb[0].mxu0
    %v5087 = vadd.f32 %v4982, %v5086
    %v5088 = vpop.f32.mrb[0].mxu0
    %v5089 = vadd.f32 %v4984, %v5088
    %v5090 = vpop.f32.mrb[0].mxu0
    %v5091 = vadd.f32 %v4986, %v5090
    %v5092 = vpop.f32.mrb[0].mxu0
    %v5093 = vadd.f32 %v4988, %v5092
    %5094 = vmatprep.mubr.bf16.mxu0 0
    %5095 = vmatmul.mubr.bf16.gmra.mrb[0].mxu0 %v5030
    %v5096 = vpop.f32.mrb[0].mxu0
    %v5097 = vadd.f32 %v4992, %v5096
    %v5098 = vpop.f32.mrb[0].mxu0
    %v5099 = vadd.f32 %v4994, %v5098
    %v5100 = vpop.f32.mrb[0].mxu0
    %v5101 = vadd.f32 %v4996, %v5100
    %v5102 = vpop.f32.mrb[0].mxu0
    %v5103 = vadd.f32 %v4998, %v5102
    %5104 = vdwg.mxu0
    %s5105 = scalar_lea.vmem %s8, 64
    %v5106 = vld [vmem:[%s5105] sm:$0xf]
    %v5107 = vld [vmem:[%s5105 + $0x4] sm:$0xf]
    %v5108 = vld [vmem:[%s5105 + $0x8] sm:$0xf]
    %v5109 = vld [vmem:[%s5105 + $0xc] sm:$0xf]
    %v5110 = vld [vmem:[%s5105 + $0x10] sm:$0xf]
    %v5111 = vld [vmem:[%s5105 + $0x14] sm:$0xf]
    %v5112 = vld [vmem:[%s5105 + $0x18] sm:$0xf]
    %v5113 = vld [vmem:[%s5105 + $0x1c] sm:$0xf]
    %v5122 = vunpack.c.l.b16 %v5106
    %v5123 = vunpack.c.l.b16 %v5107
    %v5124 = vunpack.c.l.b16 %v5108
    %v5125 = vunpack.c.l.b16 %v5109
    %v5126 = vunpack.c.l.b16 %v5110
    %v5127 = vunpack.c.l.b16 %v5111
    %v5128 = vunpack.c.l.b16 %v5112
    %v5129 = vunpack.c.l.b16 %v5113
    %v5130 = vpack.c.b16 %v5123, %v5122
    %v5131 = vpack.c.b16 %v5125, %v5124
    %v5132 = vpack.c.b16 %v5127, %v5126
    %v5133 = vpack.c.b16 %v5129, %v5128
    %v5135 = vsel %vm2228, %v5130, 0
    %v5138 = vsel %vm2228, %v5131, 0
    %v5141 = vsel %vm2228, %v5132, 0
    %v5144 = vsel %vm2228, %v5133, 0
    %5146 = vmatprep.subr.bf16.mxu0 %v4867
    %5147 = vmatpush1.bf16.msra.mxu0 %v4866
    %5148 = vmatprep.subr.bf16.mxu0 %v4875
    %5149 = vmatpush1.bf16.msra.mxu0 %v4874
    %5150 = vmatprep.subr.bf16.mxu0 0
    %5151 = vmatpush1.bf16.msra.mxu0 0
    %5152 = vmatprep.subr.bf16.mxu0 0
    %5153 = vmatpush1.bf16.msra.mxu0 0
    %5154 = vmatprep.subr.bf16.mxu0 0
    %5155 = vmatpush1.bf16.msra.mxu0 0
    %5156 = vmatprep.subr.bf16.mxu0 0
    %5157 = vmatpush1.bf16.msra.mxu0 0
    %5158 = vmatprep.subr.bf16.mxu0 0
    %5159 = vmatpush1.bf16.msra.mxu0 0
    %5160 = vmatprep.subr.bf16.mxu0 0
    %5161 = vmatpush1.bf16.msra.mxu0 0
    %5162 = vmatprep.subr.bf16.mxu0 0
    %5163 = vmatpush1.bf16.msra.mxu0 0
    %5164 = vmatprep.subr.bf16.mxu0 0
    %5165 = vmatpush1.bf16.msra.mxu0 0
    %5166 = vmatprep.subr.bf16.mxu0 0
    %5167 = vmatpush1.bf16.msra.mxu0 0
    %5168 = vmatprep.subr.bf16.mxu0 0
    %5169 = vmatpush1.bf16.msra.mxu0 0
    %5170 = vmatprep.subr.bf16.mxu0 0
    %5171 = vmatpush1.bf16.msra.mxu0 0
    %5172 = vmatprep.subr.bf16.mxu0 0
    %5173 = vmatpush1.bf16.msra.mxu0 0
    %5174 = vmatprep.subr.bf16.mxu0 0
    %5175 = vmatpush1.bf16.msra.mxu0 0
    %5176 = vmatprep.subr.bf16.mxu0 0
    %5177 = vmatpush1.bf16.msra.mxu0 0
    %5178 = vmatprep.mubr.bf16.mxu0 0
    %5179 = vmatmul.mubr.bf16.gmra.mrb[0].mxu0 %v5135
    %v5180 = vpop.f32.mrb[0].mxu0
    %v5181 = vadd.f32 0.0, %v5180
    %v5182 = vpop.f32.mrb[0].mxu0
    %v5183 = vadd.f32 0.0, %v5182
    %v5184 = vpop.f32.mrb[0].mxu0
    %v5185 = vadd.f32 0.0, %v5184
    %v5186 = vpop.f32.mrb[0].mxu0
    %v5187 = vadd.f32 0.0, %v5186
    %5188 = vmatprep.mubr.bf16.mxu0 0
    %5189 = vmatmul.mubr.bf16.gmra.mrb[0].mxu0 %v5138
    %v5190 = vpop.f32.mrb[0].mxu0
    %v5191 = vadd.f32 0.0, %v5190
    %v5192 = vpop.f32.mrb[0].mxu0
    %v5193 = vadd.f32 0.0, %v5192
    %v5194 = vpop.f32.mrb[0].mxu0
    %v5195 = vadd.f32 0.0, %v5194
    %v5196 = vpop.f32.mrb[0].mxu0
    %v5197 = vadd.f32 0.0, %v5196
    %5198 = vmatprep.mubr.bf16.mxu0 0
    %5199 = vmatmul.mubr.bf16.gmra.mrb[0].mxu0 %v5141
    %v5200 = vpop.f32.mrb[0].mxu0
    %v5201 = vadd.f32 0.0, %v5200
    %v5202 = vpop.f32.mrb[0].mxu0
    %v5203 = vadd.f32 0.0, %v5202
    %v5204 = vpop.f32.mrb[0].mxu0
    %v5205 = vadd.f32 0.0, %v5204
    %v5206 = vpop.f32.mrb[0].mxu0
    %v5207 = vadd.f32 0.0, %v5206
    %5208 = vmatprep.mubr.bf16.mxu0 0
    %5209 = vmatmul.mubr.bf16.gmra.mrb[0].mxu0 %v5144
    %v5210 = vpop.f32.mrb[0].mxu0
    %v5211 = vadd.f32 0.0, %v5210
    %v5212 = vpop.f32.mrb[0].mxu0
    %v5213 = vadd.f32 0.0, %v5212
    %v5214 = vpop.f32.mrb[0].mxu0
    %v5215 = vadd.f32 0.0, %v5214
    %v5216 = vpop.f32.mrb[0].mxu0
    %v5217 = vadd.f32 0.0, %v5216
    %5218 = vdwg.mxu0
    %v5219 = vadd.f32 %v5067, %v5181
    %v5220 = vadd.f32 %v5069, %v5183
    %v5221 = vadd.f32 %v5071, %v5185
    %v5222 = vadd.f32 %v5073, %v5187
    %v5223 = vadd.f32 %v5077, %v5191
    %v5224 = vadd.f32 %v5079, %v5193
    %v5225 = vadd.f32 %v5081, %v5195
    %v5226 = vadd.f32 %v5083, %v5197
    %v5227 = vadd.f32 %v5087, %v5201
    %v5228 = vadd.f32 %v5089, %v5203
    %v5229 = vadd.f32 %v5091, %v5205
    %v5230 = vadd.f32 %v5093, %v5207
    %v5231 = vadd.f32 %v5097, %v5211
    %v5232 = vadd.f32 %v5099, %v5213
    %v5233 = vadd.f32 %v5101, %v5215
    %v5234 = vadd.f32 %v5103, %v5217
    %s5235 = scalar_lea.vmem %s8, 96
    %v5236 = vld [vmem:[%s5235] sm:$0xf]
    %v5237 = vld [vmem:[%s5235 + $0x4] sm:$0xf]
    %v5238 = vld [vmem:[%s5235 + $0x8] sm:$0xf]
    %v5239 = vld [vmem:[%s5235 + $0xc] sm:$0xf]
    %v5240 = vld [vmem:[%s5235 + $0x10] sm:$0xf]
    %v5241 = vld [vmem:[%s5235 + $0x14] sm:$0xf]
    %v5242 = vld [vmem:[%s5235 + $0x18] sm:$0xf]
    %v5243 = vld [vmem:[%s5235 + $0x1c] sm:$0xf]
    %v5252 = vunpack.c.l.b16 %v5236
    %v5253 = vunpack.c.l.b16 %v5237
    %v5254 = vunpack.c.l.b16 %v5238
    %v5255 = vunpack.c.l.b16 %v5239
    %v5256 = vunpack.c.l.b16 %v5240
    %v5257 = vunpack.c.l.b16 %v5241
    %v5258 = vunpack.c.l.b16 %v5242
    %v5259 = vunpack.c.l.b16 %v5243
    %v5260 = vpack.c.b16 %v5253, %v5252
    %v5261 = vpack.c.b16 %v5255, %v5254
    %v5262 = vpack.c.b16 %v5257, %v5256
    %v5263 = vpack.c.b16 %v5259, %v5258
    %v5265 = vsel %vm2228, %v5260, 0
    %v5268 = vsel %vm2228, %v5261, 0
    %v5271 = vsel %vm2228, %v5262, 0
    %v5274 = vsel %vm2228, %v5263, 0
    %5276 = vmatprep.subr.bf16.mxu0 %v4869
    %5277 = vmatpush1.bf16.msra.mxu0 %v4868
    %5278 = vmatprep.subr.bf16.mxu0 %v4877
    %5279 = vmatpush1.bf16.msra.mxu0 %v4876
    %5280 = vmatprep.subr.bf16.mxu0 0
    %5281 = vmatpush1.bf16.msra.mxu0 0
    %5282 = vmatprep.subr.bf16.mxu0 0
    %5283 = vmatpush1.bf16.msra.mxu0 0
    %5284 = vmatprep.subr.bf16.mxu0 0
    %5285 = vmatpush1.bf16.msra.mxu0 0
    %5286 = vmatprep.subr.bf16.mxu0 0
    %5287 = vmatpush1.bf16.msra.mxu0 0
    %5288 = vmatprep.subr.bf16.mxu0 0
    %5289 = vmatpush1.bf16.msra.mxu0 0
    %5290 = vmatprep.subr.bf16.mxu0 0
    %5291 = vmatpush1.bf16.msra.mxu0 0
    %5292 = vmatprep.subr.bf16.mxu0 0
    %5293 = vmatpush1.bf16.msra.mxu0 0
    %5294 = vmatprep.subr.bf16.mxu0 0
    %5295 = vmatpush1.bf16.msra.mxu0 0
    %5296 = vmatprep.subr.bf16.mxu0 0
    %5297 = vmatpush1.bf16.msra.mxu0 0
    %5298 = vmatprep.subr.bf16.mxu0 0
    %5299 = vmatpush1.bf16.msra.mxu0 0
    %5300 = vmatprep.subr.bf16.mxu0 0
    %5301 = vmatpush1.bf16.msra.mxu0 0
    %5302 = vmatprep.subr.bf16.mxu0 0
    %5303 = vmatpush1.bf16.msra.mxu0 0
    %5304 = vmatprep.subr.bf16.mxu0 0
    %5305 = vmatpush1.bf16.msra.mxu0 0
    %5306 = vmatprep.subr.bf16.mxu0 0
    %5307 = vmatpush1.bf16.msra.mxu0 0
    %5308 = vmatprep.mubr.bf16.mxu0 0
    %5309 = vmatmul.mubr.bf16.gmra.mrb[0].mxu0 %v5265
    %v5310 = vpop.f32.mrb[0].mxu0
    %v5311 = vadd.f32 0.0, %v5310
    %v5312 = vpop.f32.mrb[0].mxu0
    %v5313 = vadd.f32 0.0, %v5312
    %v5314 = vpop.f32.mrb[0].mxu0
    %v5315 = vadd.f32 0.0, %v5314
    %v5316 = vpop.f32.mrb[0].mxu0
    %v5317 = vadd.f32 0.0, %v5316
    %5318 = vmatprep.mubr.bf16.mxu0 0
    %5319 = vmatmul.mubr.bf16.gmra.mrb[0].mxu0 %v5268
    %v5320 = vpop.f32.mrb[0].mxu0
    %v5321 = vadd.f32 0.0, %v5320
    %v5322 = vpop.f32.mrb[0].mxu0
    %v5323 = vadd.f32 0.0, %v5322
    %v5324 = vpop.f32.mrb[0].mxu0
    %v5325 = vadd.f32 0.0, %v5324
    %v5326 = vpop.f32.mrb[0].mxu0
    %v5327 = vadd.f32 0.0, %v5326
    %5328 = vmatprep.mubr.bf16.mxu0 0
    %5329 = vmatmul.mubr.bf16.gmra.mrb[0].mxu0 %v5271
    %v5330 = vpop.f32.mrb[0].mxu0
    %v5331 = vadd.f32 0.0, %v5330
    %v5332 = vpop.f32.mrb[0].mxu0
    %v5333 = vadd.f32 0.0, %v5332
    %v5334 = vpop.f32.mrb[0].mxu0
    %v5335 = vadd.f32 0.0, %v5334
    %v5336 = vpop.f32.mrb[0].mxu0
    %v5337 = vadd.f32 0.0, %v5336
    %5338 = vmatprep.mubr.bf16.mxu0 0
    %5339 = vmatmul.mubr.bf16.gmra.mrb[0].mxu0 %v5274
    %v5340 = vpop.f32.mrb[0].mxu0
    %v5341 = vadd.f32 0.0, %v5340
    %v5342 = vpop.f32.mrb[0].mxu0
    %v5343 = vadd.f32 0.0, %v5342
    %v5344 = vpop.f32.mrb[0].mxu0
    %v5345 = vadd.f32 0.0, %v5344
    %v5346 = vpop.f32.mrb[0].mxu0
    %v5347 = vadd.f32 0.0, %v5346
    %5348 = vdwg.mxu0
    %v5349 = vadd.f32 %v5219, %v5311
    %v5350 = vadd.f32 %v5220, %v5313
    %v5351 = vadd.f32 %v5221, %v5315
    %v5352 = vadd.f32 %v5222, %v5317
    %v5353 = vadd.f32 %v5223, %v5321
    %v5354 = vadd.f32 %v5224, %v5323
    %v5355 = vadd.f32 %v5225, %v5325
    %v5356 = vadd.f32 %v5226, %v5327
    %v5357 = vadd.f32 %v5227, %v5331
    %v5358 = vadd.f32 %v5228, %v5333
    %v5359 = vadd.f32 %v5229, %v5335
    %v5360 = vadd.f32 %v5230, %v5337
    %v5361 = vadd.f32 %v5231, %v5341
    %v5362 = vadd.f32 %v5232, %v5343
    %v5363 = vadd.f32 %v5233, %v5345
    %v5364 = vadd.f32 %v5234, %v5347
    %v5365 = vadd.f32 %v5349, %v5351
    %v5366 = vadd.f32 %v5365, %v5353
    %v5367 = vadd.f32 %v5366, %v5355
    %v5368 = vadd.f32 %v5367, %v5357
    %v5369 = vadd.f32 %v5368, %v5359
    %v5370 = vadd.f32 %v5369, %v5361
    %v5371 = vadd.f32 %v5370, %v5363
    %v5372 = vrot.slane %v5371, 4
    %v5373 = vadd.f32 %v5371, %v5372
    %v5374 = vrot.slane %v5373, 2
    %v5375 = vadd.f32 %v5373, %v5374
    %v5376 = vrot.slane %v5375, 1
    %v5377 = vadd.f32 %v5375, %v5376
    %v5378 = vadd.f32 %v5350, %v5352
    %v5379 = vadd.f32 %v5378, %v5354
    %v5380 = vadd.f32 %v5379, %v5356
    %v5381 = vadd.f32 %v5380, %v5358
    %v5382 = vadd.f32 %v5381, %v5360
    %v5383 = vadd.f32 %v5382, %v5362
    %v5384 = vadd.f32 %v5383, %v5364
    %v5385 = vrot.slane %v5384, 4
    %v5386 = vadd.f32 %v5384, %v5385
    %v5387 = vrot.slane %v5386, 2
    %v5388 = vadd.f32 %v5386, %v5387
    %v5389 = vrot.slane %v5388, 1
    %v5390 = vadd.f32 %v5388, %v5389
    %v5391 = vmul.f32 %v5349, %v5349
    %v5392 = vmul.f32 %v5350, %v5350
    %v5393 = vmul.f32 %v5351, %v5351
    %v5394 = vmul.f32 %v5352, %v5352
    %v5395 = vmul.f32 %v5353, %v5353
    %v5396 = vmul.f32 %v5354, %v5354
    %v5397 = vmul.f32 %v5355, %v5355
    %v5398 = vmul.f32 %v5356, %v5356
    %v5399 = vmul.f32 %v5357, %v5357
    %v5400 = vmul.f32 %v5358, %v5358
    %v5401 = vmul.f32 %v5359, %v5359
    %v5402 = vmul.f32 %v5360, %v5360
    %v5403 = vmul.f32 %v5361, %v5361
    %v5404 = vmul.f32 %v5362, %v5362
    %v5405 = vmul.f32 %v5363, %v5363
    %v5406 = vmul.f32 %v5364, %v5364
    %v5407 = vadd.f32 %v5391, %v5393
    %v5408 = vadd.f32 %v5407, %v5395
    %v5409 = vadd.f32 %v5408, %v5397
    %v5410 = vadd.f32 %v5409, %v5399
    %v5411 = vadd.f32 %v5410, %v5401
    %v5412 = vadd.f32 %v5411, %v5403
    %v5413 = vadd.f32 %v5412, %v5405
    %v5414 = vrot.slane %v5413, 4
    %v5415 = vadd.f32 %v5413, %v5414
    %v5416 = vrot.slane %v5415, 2
    %v5417 = vadd.f32 %v5415, %v5416
    %v5418 = vrot.slane %v5417, 1
    %v5419 = vadd.f32 %v5417, %v5418
    %v5420 = vadd.f32 %v5392, %v5394
    %v5421 = vadd.f32 %v5420, %v5396
    %v5422 = vadd.f32 %v5421, %v5398
    %v5423 = vadd.f32 %v5422, %v5400
    %v5424 = vadd.f32 %v5423, %v5402
    %v5425 = vadd.f32 %v5424, %v5404
    %v5426 = vadd.f32 %v5425, %v5406
    %v5427 = vrot.slane %v5426, 4
    %v5428 = vadd.f32 %v5426, %v5427
    %v5429 = vrot.slane %v5428, 2
    %v5430 = vadd.f32 %v5428, %v5429
    %v5431 = vrot.slane %v5430, 1
    %v5432 = vadd.f32 %v5430, %v5431
    %v5433 = vsel %vm404, %v5377, %v5419
    %v5434 = vsel %vm404, %v5390, %v5432
    %v5435 = vld [vmem:[%s12] sm:$0xff]
    %v5436 = vld [vmem:[%s12 + $0x8] sm:$0xff]
    %v5437 = vld [vmem:[%s12 + $0x10] sm:$0xff]
    %v5438 = vld [vmem:[%s12 + $0x18] sm:$0xff]
    %v5439 = vld [vmem:[%s12 + $0x20] sm:$0xff]
    %v5440 = vld [vmem:[%s12 + $0x28] sm:$0xff]
    %v5441 = vld [vmem:[%s12 + $0x30] sm:$0xff]
    %v5442 = vld [vmem:[%s12 + $0x38] sm:$0xff]
    %v5443 = vld [vmem:[%s12 + $0x40] sm:$0xff]
    %v5444 = vld [vmem:[%s12 + $0x48] sm:$0xff]
    %v5445 = vld [vmem:[%s12 + $0x50] sm:$0xff]
    %v5446 = vld [vmem:[%s12 + $0x58] sm:$0xff]
    %v5447 = vld [vmem:[%s12 + $0x60] sm:$0xff]
    %v5448 = vld [vmem:[%s12 + $0x68] sm:$0xff]
    %v5449 = vld [vmem:[%s12 + $0x70] sm:$0xff]
    %v5450 = vld [vmem:[%s12 + $0x78] sm:$0xff]
    %v5451 = vld [vmem:[%s12 + $0x80] sm:$0xff]
    %v5452 = vld [vmem:[%s12 + $0x88] sm:$0xff]
    %v5453 = vld [vmem:[%s12 + $0x90] sm:$0xff]
    %v5454 = vld [vmem:[%s12 + $0x98] sm:$0xff]
    %v5455 = vld [vmem:[%s12 + $0xa0] sm:$0xff]
    %v5456 = vld [vmem:[%s12 + $0xa8] sm:$0xff]
    %v5457 = vld [vmem:[%s12 + $0xb0] sm:$0xff]
    %v5458 = vld [vmem:[%s12 + $0xb8] sm:$0xff]
    %v5459 = vld [vmem:[%s12 + $0xc0] sm:$0xff]
    %v5460 = vld [vmem:[%s12 + $0xc8] sm:$0xff]
    %v5461 = vld [vmem:[%s12 + $0xd0] sm:$0xff]
    %v5462 = vld [vmem:[%s12 + $0xd8] sm:$0xff]
    %v5463 = vld [vmem:[%s12 + $0xe0] sm:$0xff]
    %v5464 = vld [vmem:[%s12 + $0xe8] sm:$0xff]
    %v5465 = vld [vmem:[%s12 + $0xf0] sm:$0xff]
    %v5466 = vld [vmem:[%s12 + $0xf8] sm:$0xff]
    %5467 = vmatprep.subr.mxu0 0.0
    %5468 = vmatpush1.msra.mxu0 %v5435
    %5469 = vmatprep.subr.mxu0 0.0
    %5470 = vmatpush1.msra.mxu0 %v5436
    %5471 = vmatprep.subr.mxu0 0.0
    %5472 = vmatpush1.msra.mxu0 %v5437
    %5473 = vmatprep.subr.mxu0 0.0
    %5474 = vmatpush1.msra.mxu0 %v5438
    %5475 = vmatprep.subr.mxu0 0.0
    %5476 = vmatpush1.msra.mxu0 %v5439
    %5477 = vmatprep.subr.mxu0 0.0
    %5478 = vmatpush1.msra.mxu0 %v5440
    %5479 = vmatprep.subr.mxu0 0.0
    %5480 = vmatpush1.msra.mxu0 %v5441
    %5481 = vmatprep.subr.mxu0 0.0
    %5482 = vmatpush1.msra.mxu0 %v5442
    %5483 = vmatprep.subr.mxu0 0.0
    %5484 = vmatpush1.msra.mxu0 %v5443
    %5485 = vmatprep.subr.mxu0 0.0
    %5486 = vmatpush1.msra.mxu0 %v5444
    %5487 = vmatprep.subr.mxu0 0.0
    %5488 = vmatpush1.msra.mxu0 %v5445
    %5489 = vmatprep.subr.mxu0 0.0
    %5490 = vmatpush1.msra.mxu0 %v5446
    %5491 = vmatprep.subr.mxu0 0.0
    %5492 = vmatpush1.msra.mxu0 %v5447
    %5493 = vmatprep.subr.mxu0 0.0
    %5494 = vmatpush1.msra.mxu0 %v5448
    %5495 = vmatprep.subr.mxu0 0.0
    %5496 = vmatpush1.msra.mxu0 %v5449
    %5497 = vmatprep.subr.mxu0 0.0
    %5498 = vmatpush1.msra.mxu0 %v5450
    %5499 = vmatprep.subr.mxu0 0.0
    %5500 = vmatpush1.msra.mxu0 %v5451
    %5501 = vmatprep.subr.mxu0 0.0
    %5502 = vmatpush1.msra.mxu0 %v5452
    %5503 = vmatprep.subr.mxu0 0.0
    %5504 = vmatpush1.msra.mxu0 %v5453
    %5505 = vmatprep.subr.mxu0 0.0
    %5506 = vmatpush1.msra.mxu0 %v5454
    %5507 = vmatprep.subr.mxu0 0.0
    %5508 = vmatpush1.msra.mxu0 %v5455
    %5509 = vmatprep.subr.mxu0 0.0
    %5510 = vmatpush1.msra.mxu0 %v5456
    %5511 = vmatprep.subr.mxu0 0.0
    %5512 = vmatpush1.msra.mxu0 %v5457
    %5513 = vmatprep.subr.mxu0 0.0
    %5514 = vmatpush1.msra.mxu0 %v5458
    %5515 = vmatprep.subr.mxu0 0.0
    %5516 = vmatpush1.msra.mxu0 %v5459
    %5517 = vmatprep.subr.mxu0 0.0
    %5518 = vmatpush1.msra.mxu0 %v5460
    %5519 = vmatprep.subr.mxu0 0.0
    %5520 = vmatpush1.msra.mxu0 %v5461
    %5521 = vmatprep.subr.mxu0 0.0
    %5522 = vmatpush1.msra.mxu0 %v5462
    %5523 = vmatprep.subr.mxu0 0.0
    %5524 = vmatpush1.msra.mxu0 %v5463
    %5525 = vmatprep.subr.mxu0 0.0
    %5526 = vmatpush1.msra.mxu0 %v5464
    %5527 = vmatprep.subr.mxu0 0.0
    %5528 = vmatpush1.msra.mxu0 %v5465
    %5529 = vmatprep.subr.mxu0 0.0
    %5530 = vmatpush1.msra.mxu0 %v5466
    %5531 = vmatprep.mubr.f32.mxu0 %v5434
    %5532 = vmatmul.mubr.f32.gmra.mrb[0].mxu0 %v5433
    %v5533 = vpop.f32.mrb[0].mxu0
    %v5534 = vadd.f32 0.0, %v5533
    %v5535 = vpop.f32.mrb[0].mxu0
    %5536 = vdwg.mxu0
    %v5537 = vmul.f32 %v5534, 0.00048828125
    %v5538 = vmul.f32 %v5537, %v5537
    %v5540 = vrot.slane %v5538, 7
    %v5542 = vsub.f32 %v5537, %v5540
    %v5543 = vmax.f32 %v5542, 0.0
    %v5544 = vld [vmem:[#allocation13] sm:$0x3]
    %v5545 = vadd.f32 %v5543, 1e-05
    %v5546 = vrsqrt.pop %v5545
    %v5548 = vrot.slane %v5546, 1
    %v5550 = vmul.f32 %v5544, %v5548
    %v5551 = vmul.f32 %v5537, %v5550
    %v5553 = vrot.slane %v5551, 7
    %v5555 = vsub.f32 %v5544, %v5553
    %v5556 = vsel %vm404, %v5550, %v5555
    %v5557 = vld [vmem:[#allocation7] sm:$0xff]
    %v5558 = vld [vmem:[#allocation7 + $0x8] sm:$0xff]
    %v5560 = vsel %vm1825, %v5556, 0
    %5562 = vmatprep.subr.mxu0 %v5558
    %5563 = vmatpush1.msra.mxu0 %v5557
    %5564 = vmatprep.subr.mxu0 0.0
    %5565 = vmatpush1.msra.mxu0 0.0
    %5566 = vmatprep.subr.mxu0 0.0
    %5567 = vmatpush1.msra.mxu0 0.0
    %5568 = vmatprep.subr.mxu0 0.0
    %5569 = vmatpush1.msra.mxu0 0.0
    %5570 = vmatprep.subr.mxu0 0.0
    %5571 = vmatpush1.msra.mxu0 0.0
    %5572 = vmatprep.subr.mxu0 0.0
    %5573 = vmatpush1.msra.mxu0 0.0
    %5574 = vmatprep.subr.mxu0 0.0
    %5575 = vmatpush1.msra.mxu0 0.0
    %5576 = vmatprep.subr.mxu0 0.0
    %5577 = vmatpush1.msra.mxu0 0.0
    %5578 = vmatprep.subr.mxu0 0.0
    %5579 = vmatpush1.msra.mxu0 0.0
    %5580 = vmatprep.subr.mxu0 0.0
    %5581 = vmatpush1.msra.mxu0 0.0
    %5582 = vmatprep.subr.mxu0 0.0
    %5583 = vmatpush1.msra.mxu0 0.0
    %5584 = vmatprep.subr.mxu0 0.0
    %5585 = vmatpush1.msra.mxu0 0.0
    %5586 = vmatprep.subr.mxu0 0.0
    %5587 = vmatpush1.msra.mxu0 0.0
    %5588 = vmatprep.subr.mxu0 0.0
    %5589 = vmatpush1.msra.mxu0 0.0
    %5590 = vmatprep.subr.mxu0 0.0
    %5591 = vmatpush1.msra.mxu0 0.0
    %5592 = vmatprep.subr.mxu0 0.0
    %5593 = vmatpush1.msra.mxu0 0.0
    %5594 = vmatprep.subr.mxu0 0.0
    %5595 = vmatpush1.msra.mxu0 0.0
    %5596 = vmatprep.subr.mxu0 0.0
    %5597 = vmatpush1.msra.mxu0 0.0
    %5598 = vmatprep.subr.mxu0 0.0
    %5599 = vmatpush1.msra.mxu0 0.0
    %5600 = vmatprep.subr.mxu0 0.0
    %5601 = vmatpush1.msra.mxu0 0.0
    %5602 = vmatprep.subr.mxu0 0.0
    %5603 = vmatpush1.msra.mxu0 0.0
    %5604 = vmatprep.subr.mxu0 0.0
    %5605 = vmatpush1.msra.mxu0 0.0
    %5606 = vmatprep.subr.mxu0 0.0
    %5607 = vmatpush1.msra.mxu0 0.0
    %5608 = vmatprep.subr.mxu0 0.0
    %5609 = vmatpush1.msra.mxu0 0.0
    %5610 = vmatprep.subr.mxu0 0.0
    %5611 = vmatpush1.msra.mxu0 0.0
    %5612 = vmatprep.subr.mxu0 0.0
    %5613 = vmatpush1.msra.mxu0 0.0
    %5614 = vmatprep.subr.mxu0 0.0
    %5615 = vmatpush1.msra.mxu0 0.0
    %5616 = vmatprep.subr.mxu0 0.0
    %5617 = vmatpush1.msra.mxu0 0.0
    %5618 = vmatprep.subr.mxu0 0.0
    %5619 = vmatpush1.msra.mxu0 0.0
    %5620 = vmatprep.subr.mxu0 0.0
    %5621 = vmatpush1.msra.mxu0 0.0
    %5622 = vmatprep.subr.mxu0 0.0
    %5623 = vmatpush1.msra.mxu0 0.0
    %5624 = vmatprep.subr.mxu0 0.0
    %5625 = vmatpush1.msra.mxu0 0.0
    %5626 = vmatprep.mubr.f32.mxu0 0.0
    %5627 = vmatmul.mubr.f32.gmra.mrb[0].mxu0 %v5560
    %v5628 = vpop.f32.mrb[0].mxu0
    %v5629 = vadd.f32 0.0, %v5628
    %v5630 = vpop.f32.mrb[0].mxu0
    %v5631 = vadd.f32 0.0, %v5630
    %5632 = vdwg.mxu0
    %v5633 = vlaneseq
    %v5634 = vshrl.u32 %v5633, 7
    %v5635 = vsub.s32 0, %v5634
    %v5636 = vrot.slane %v5629, %v5635
    %v5637 = vlaneseq
    %v5638 = vshrl.u32 %v5637, 7
    %v5639 = vsub.s32 0, %v5638
    %v5640 = vrot.slane %v5631, %v5639
    %v5641 = vmul.f32 %v5349, %v5636
    %v5642 = vmul.f32 %v5350, %v5640
    %v5643 = vmul.f32 %v5351, %v5636
    %v5644 = vmul.f32 %v5352, %v5640
    %v5645 = vmul.f32 %v5353, %v5636
    %v5646 = vmul.f32 %v5354, %v5640
    %v5647 = vmul.f32 %v5355, %v5636
    %v5648 = vmul.f32 %v5356, %v5640
    %v5649 = vmul.f32 %v5357, %v5636
    %v5650 = vmul.f32 %v5358, %v5640
    %v5651 = vmul.f32 %v5359, %v5636
    %v5652 = vmul.f32 %v5360, %v5640
    %v5653 = vmul.f32 %v5361, %v5636
    %v5654 = vmul.f32 %v5362, %v5640
    %v5655 = vmul.f32 %v5363, %v5636
    %v5656 = vmul.f32 %v5364, %v5640
    %v5657 = vlaneseq
    %v5658 = vshrl.u32 %v5657, 7
    %v5659 = vsub.s32 1, %v5658
    %v5660 = vrot.slane %v5629, %v5659
    %v5661 = vlaneseq
    %v5662 = vshrl.u32 %v5661, 7
    %v5663 = vsub.s32 1, %v5662
    %v5664 = vrot.slane %v5631, %v5663
    %v5665 = vadd.f32 %v5641, %v5660
    %v5666 = vadd.f32 %v5642, %v5664
    %v5667 = vadd.f32 %v5643, %v5660
    %v5668 = vadd.f32 %v5644, %v5664
    %v5669 = vadd.f32 %v5645, %v5660
    %v5670 = vadd.f32 %v5646, %v5664
    %v5671 = vadd.f32 %v5647, %v5660
    %v5672 = vadd.f32 %v5648, %v5664
    %v5673 = vadd.f32 %v5649, %v5660
    %v5674 = vadd.f32 %v5650, %v5664
    %v5675 = vadd.f32 %v5651, %v5660
    %v5676 = vadd.f32 %v5652, %v5664
    %v5677 = vadd.f32 %v5653, %v5660
    %v5678 = vadd.f32 %v5654, %v5664
    %v5679 = vadd.f32 %v5655, %v5660
    %v5680 = vadd.f32 %v5656, %v5664
    %v5681 = vmax.f32 %v5665, 0.0
    %v5682 = vmax.f32 %v5666, 0.0
    %v5683 = vmax.f32 %v5667, 0.0
    %v5684 = vmax.f32 %v5668, 0.0
    %v5685 = vmax.f32 %v5669, 0.0
    %v5686 = vmax.f32 %v5670, 0.0
    %v5687 = vmax.f32 %v5671, 0.0
    %v5688 = vmax.f32 %v5672, 0.0
    %v5689 = vmax.f32 %v5673, 0.0
    %v5690 = vmax.f32 %v5674, 0.0
    %v5691 = vmax.f32 %v5675, 0.0
    %v5692 = vmax.f32 %v5676, 0.0
    %v5693 = vmax.f32 %v5677, 0.0
    %v5694 = vmax.f32 %v5678, 0.0
    %v5695 = vmax.f32 %v5679, 0.0
    %v5696 = vmax.f32 %v5680, 0.0
    %v5697 = vpack.c.bf16 %v5683, %v5681
    %v5698 = vpack.c.bf16 %v5684, %v5682
    %v5699 = vpack.c.bf16 %v5687, %v5685
    %v5700 = vpack.c.bf16 %v5688, %v5686
    %v5701 = vpack.c.bf16 %v5691, %v5689
    %v5702 = vpack.c.bf16 %v5692, %v5690
    %v5703 = vpack.c.bf16 %v5695, %v5693
    %v5704 = vpack.c.bf16 %v5696, %v5694
    %v5705 = vld [vmem:[%s21] sm:$0xf]
    %v5706 = vld [vmem:[%s21 + $0x4] sm:$0xf]
    %v5707 = vld [vmem:[%s21 + $0x8] sm:$0xf]
    %v5708 = vld [vmem:[%s21 + $0xc] sm:$0xf]
    %v5709 = vld [vmem:[%s21 + $0x10] sm:$0xf]
    %v5710 = vld [vmem:[%s21 + $0x14] sm:$0xf]
    %v5711 = vld [vmem:[%s21 + $0x18] sm:$0xf]
    %v5712 = vld [vmem:[%s21 + $0x1c] sm:$0xf]
    %v5713 = vld [vmem:[%s21 + $0x20] sm:$0xf]
    %v5714 = vld [vmem:[%s21 + $0x24] sm:$0xf]
    %v5715 = vld [vmem:[%s21 + $0x28] sm:$0xf]
    %v5716 = vld [vmem:[%s21 + $0x2c] sm:$0xf]
    %v5717 = vld [vmem:[%s21 + $0x30] sm:$0xf]
    %v5718 = vld [vmem:[%s21 + $0x34] sm:$0xf]
    %v5719 = vld [vmem:[%s21 + $0x38] sm:$0xf]
    %v5720 = vld [vmem:[%s21 + $0x3c] sm:$0xf]
    %v5721 = vld [vmem:[%s21 + $0x40] sm:$0xf]
    %v5722 = vld [vmem:[%s21 + $0x44] sm:$0xf]
    %v5723 = vld [vmem:[%s21 + $0x48] sm:$0xf]
    %v5724 = vld [vmem:[%s21 + $0x4c] sm:$0xf]
    %v5725 = vld [vmem:[%s21 + $0x50] sm:$0xf]
    %v5726 = vld [vmem:[%s21 + $0x54] sm:$0xf]
    %v5727 = vld [vmem:[%s21 + $0x58] sm:$0xf]
    %v5728 = vld [vmem:[%s21 + $0x5c] sm:$0xf]
    %v5729 = vld [vmem:[%s21 + $0x60] sm:$0xf]
    %v5730 = vld [vmem:[%s21 + $0x64] sm:$0xf]
    %v5731 = vld [vmem:[%s21 + $0x68] sm:$0xf]
    %v5732 = vld [vmem:[%s21 + $0x6c] sm:$0xf]
    %v5733 = vld [vmem:[%s21 + $0x70] sm:$0xf]
    %v5734 = vld [vmem:[%s21 + $0x74] sm:$0xf]
    %v5735 = vld [vmem:[%s21 + $0x78] sm:$0xf]
    %v5736 = vld [vmem:[%s21 + $0x7c] sm:$0xf]
    %v5769 = vunpack.c.l.b16 %v5705
    %v5770 = vunpack.c.l.b16 %v5706
    %v5771 = vunpack.c.l.b16 %v5707
    %v5772 = vunpack.c.l.b16 %v5708
    %v5773 = vunpack.c.l.b16 %v5709
    %v5774 = vunpack.c.l.b16 %v5710
    %v5775 = vunpack.c.l.b16 %v5711
    %v5776 = vunpack.c.l.b16 %v5712
    %v5777 = vunpack.c.l.b16 %v5713
    %v5778 = vunpack.c.l.b16 %v5714
    %v5779 = vunpack.c.l.b16 %v5715
    %v5780 = vunpack.c.l.b16 %v5716
    %v5781 = vunpack.c.l.b16 %v5717
    %v5782 = vunpack.c.l.b16 %v5718
    %v5783 = vunpack.c.l.b16 %v5719
    %v5784 = vunpack.c.l.b16 %v5720
    %v5785 = vunpack.c.l.b16 %v5721
    %v5786 = vunpack.c.l.b16 %v5722
    %v5787 = vunpack.c.l.b16 %v5723
    %v5788 = vunpack.c.l.b16 %v5724
    %v5789 = vunpack.c.l.b16 %v5725
    %v5790 = vunpack.c.l.b16 %v5726
    %v5791 = vunpack.c.l.b16 %v5727
    %v5792 = vunpack.c.l.b16 %v5728
    %v5793 = vunpack.c.l.b16 %v5729
    %v5794 = vunpack.c.l.b16 %v5730
    %v5795 = vunpack.c.l.b16 %v5731
    %v5796 = vunpack.c.l.b16 %v5732
    %v5797 = vunpack.c.l.b16 %v5733
    %v5798 = vunpack.c.l.b16 %v5734
    %v5799 = vunpack.c.l.b16 %v5735
    %v5800 = vunpack.c.l.b16 %v5736
    %v5801 = vpack.c.b16 %v5770, %v5769
    %v5802 = vpack.c.b16 %v5772, %v5771
    %v5803 = vpack.c.b16 %v5774, %v5773
    %v5804 = vpack.c.b16 %v5776, %v5775
    %v5805 = vpack.c.b16 %v5778, %v5777
    %v5806 = vpack.c.b16 %v5780, %v5779
    %v5807 = vpack.c.b16 %v5782, %v5781
    %v5808 = vpack.c.b16 %v5784, %v5783
    %v5809 = vpack.c.b16 %v5786, %v5785
    %v5810 = vpack.c.b16 %v5788, %v5787
    %v5811 = vpack.c.b16 %v5790, %v5789
    %v5812 = vpack.c.b16 %v5792, %v5791
    %v5813 = vpack.c.b16 %v5794, %v5793
    %v5814 = vpack.c.b16 %v5796, %v5795
    %v5815 = vpack.c.b16 %v5798, %v5797
    %v5816 = vpack.c.b16 %v5800, %v5799
    %5833 = vmatprep.subr.bf16.mxu0 0
    %5834 = vmatpush1.bf16.msra.mxu0 %v5801
    %5835 = vmatprep.subr.bf16.mxu0 0
    %5836 = vmatpush1.bf16.msra.mxu0 %v5802
    %5837 = vmatprep.subr.bf16.mxu0 0
    %5838 = vmatpush1.bf16.msra.mxu0 %v5803
    %5839 = vmatprep.subr.bf16.mxu0 0
    %5840 = vmatpush1.bf16.msra.mxu0 %v5804
    %5841 = vmatprep.subr.bf16.mxu0 0
    %5842 = vmatpush1.bf16.msra.mxu0 %v5805
    %5843 = vmatprep.subr.bf16.mxu0 0
    %5844 = vmatpush1.bf16.msra.mxu0 %v5806
    %5845 = vmatprep.subr.bf16.mxu0 0
    %5846 = vmatpush1.bf16.msra.mxu0 %v5807
    %5847 = vmatprep.subr.bf16.mxu0 0
    %5848 = vmatpush1.bf16.msra.mxu0 %v5808
    %5849 = vmatprep.subr.bf16.mxu0 0
    %5850 = vmatpush1.bf16.msra.mxu0 %v5809
    %5851 = vmatprep.subr.bf16.mxu0 0
    %5852 = vmatpush1.bf16.msra.mxu0 %v5810
    %5853 = vmatprep.subr.bf16.mxu0 0
    %5854 = vmatpush1.bf16.msra.mxu0 %v5811
    %5855 = vmatprep.subr.bf16.mxu0 0
    %5856 = vmatpush1.bf16.msra.mxu0 %v5812
    %5857 = vmatprep.subr.bf16.mxu0 0
    %5858 = vmatpush1.bf16.msra.mxu0 %v5813
    %5859 = vmatprep.subr.bf16.mxu0 0
    %5860 = vmatpush1.bf16.msra.mxu0 %v5814
    %5861 = vmatprep.subr.bf16.mxu0 0
    %5862 = vmatpush1.bf16.msra.mxu0 %v5815
    %5863 = vmatprep.subr.bf16.mxu0 0
    %5864 = vmatpush1.bf16.msra.mxu0 %v5816
    %5865 = vmatprep.mubr.bf16.mxu0 %v5698
    %5866 = vmatmul.mubr.bf16.gmra.mrb[0].mxu0 %v5697
    %v5867 = vpop.f32.mrb[0].mxu0
    %v5868 = vadd.f32 0.0, %v5867
    %v5869 = vpop.f32.mrb[0].mxu0
    %v5870 = vpop.f32.mrb[0].mxu0
    %v5871 = vadd.f32 0.0, %v5870
    %v5872 = vpop.f32.mrb[0].mxu0
    %5873 = vmatprep.mubr.bf16.mxu0 %v5700
    %5874 = vmatmul.mubr.bf16.gmra.mrb[0].mxu0 %v5699
    %v5875 = vpop.f32.mrb[0].mxu0
    %v5876 = vadd.f32 0.0, %v5875
    %v5877 = vpop.f32.mrb[0].mxu0
    %v5878 = vpop.f32.mrb[0].mxu0
    %v5879 = vadd.f32 0.0, %v5878
    %v5880 = vpop.f32.mrb[0].mxu0
    %5881 = vmatprep.mubr.bf16.mxu0 %v5702
    %5882 = vmatmul.mubr.bf16.gmra.mrb[0].mxu0 %v5701
    %v5883 = vpop.f32.mrb[0].mxu0
    %v5884 = vadd.f32 0.0, %v5883
    %v5885 = vpop.f32.mrb[0].mxu0
    %v5886 = vpop.f32.mrb[0].mxu0
    %v5887 = vadd.f32 0.0, %v5886
    %v5888 = vpop.f32.mrb[0].mxu0
    %5889 = vmatprep.mubr.bf16.mxu0 %v5704
    %5890 = vmatmul.mubr.bf16.gmra.mrb[0].mxu0 %v5703
    %v5891 = vpop.f32.mrb[0].mxu0
    %v5892 = vadd.f32 0.0, %v5891
    %v5893 = vpop.f32.mrb[0].mxu0
    %v5894 = vpop.f32.mrb[0].mxu0
    %v5895 = vadd.f32 0.0, %v5894
    %v5896 = vpop.f32.mrb[0].mxu0
    %5897 = vdwg.mxu0
    %v5898 = vtanh.pop %v5868
    %v5899 = vtanh.pop %v5871
    %v5900 = vtanh.pop %v5876
    %v5901 = vtanh.pop %v5879
    %v5902 = vtanh.pop %v5884
    %v5903 = vtanh.pop %v5887
    %v5904 = vtanh.pop %v5892
    %v5905 = vtanh.pop %v5895
    %5906 = vst [vmem:[%s22] sm:$0xff] %v5898
    %5907 = vst [vmem:[%s22 + $0x8] sm:$0xff] %v5899
    %5908 = vst [vmem:[%s22 + $0x10] sm:$0xff] %v5900
    %5909 = vst [vmem:[%s22 + $0x18] sm:$0xff] %v5901
    %5910 = vst [vmem:[%s22 + $0x20] sm:$0xff] %v5902
    %5911 = vst [vmem:[%s22 + $0x28] sm:$0xff] %v5903
    %5912 = vst [vmem:[%s22 + $0x30] sm:$0xff] %v5904
    %5913 = vst [vmem:[%s22 + $0x38] sm:$0xff] %v5905
    // Predicated region
    $region122: #{generator_forward.1} parent=1 // pred_check
      _
    $region123: #{generator_forward.1} parent=1 // pred_check_branch
      %5915 = sbr.rel (0) target = $region125
    $region124: #{generator_forward.1} parent=1 // pred_region
      _
    $region125: #{generator_forward.1} parent=1 // pred_fallthru
      _
    // Predicated region
    $region126: #{generator_forward.1} parent=1 // pred_check
      _
    $region127: #{generator_forward.1} parent=1 // pred_check_branch
      %5917 = sbr.rel (0) target = $region129
    $region128: #{generator_forward.1} parent=1 // pred_region
      _
    $region129: #{generator_forward.1} parent=1 // pred_fallthru
      _
    %5918 = vsyncpa [#allocation3], 1
    %5919 = vsyncpa [#allocation5], 1
    %5920 = vsyncpa [#allocation8], 1
    %5921 = vsyncpa [#allocation11], 1
    %5922 = vsyncpa [#allocation14], 1

</llo_original>
